<compile_context>
chip_gen: v7x
topology: tpu7x:2x2x1
jax: 0.10.0
libtpu: 0.0.40
codegen_flags: <defaults>
</compile_context>

<pallas_src>
import functools

import jax
import jax.numpy as jnp
import numpy as np
from jax.experimental import pallas as pl
from jax.experimental.pallas import tpu as pltpu


def _round_up(n, m):
    return ((n + m - 1) // m) * m


def _convlstm_attention_kernel(x_ref, wx_ref, wh_ref, b_ref, mh_ref, mx_ref,
                               out_ref, xpat_ref, gx_ref, *, seq_len, img_w):
    # x_ref   : (Cpx, T*HW)    input sequence, channel-padded, lane-dense
    # wx_ref  : (4*G, 9*Cpx)   input-half conv weight  (tap-major K, padded rows)
    # wh_ref  : (4*G, 9*G)     recurrent-half conv weight
    # b_ref   : (4*G, 1)       conv bias (zero on pad rows)
    # mh_ref  : (9, HW)        per-tap 'same'-padding validity mask (one frame)
    # mx_ref  : (9, T*HW)      same mask tiled over the T frames
    # out_ref : (G, HW)        attention-weighted hidden state (rows >= Chid are 0)
    # xpat_ref: (9*Cpx, T*HW)  im2col patches of the whole input sequence
    # gx_ref  : (4*G, T*HW)    hoisted input-half gate pre-activations (+ bias)
    T = seq_len
    W = img_w
    Cpx, THW = x_ref.shape
    HW = THW // T
    C4p = wh_ref.shape[0]
    G = C4p // 4                              # channels padded to the 8-row tile

    offs = [di * W + dj for di in (-1, 0, 1) for dj in (-1, 0, 1)]

    # ---- hoisted x-half: im2col via circular lane rolls + validity masks,
    #      then ONE wide MXU matmul (N = T*HW) off the serial recurrence. ----
    x8 = x_ref[...]
    for k, off in enumerate(offs):
        if off == 0:
            xpat_ref[k * Cpx:(k + 1) * Cpx, :] = x8          # center tap: no shift
        else:
            sx = pltpu.roll(x8, (-off) % THW, axis=1)
            xpat_ref[k * Cpx:(k + 1) * Cpx, :] = sx * mx_ref[k:k + 1, :]
    bias = jnp.broadcast_to(b_ref[...], (C4p, THW))          # hoisted, one-time
    gx_ref[...] = jnp.dot(wx_ref[...], xpat_ref[...],
                          preferred_element_type=jnp.float32) + bias

    # ---- recurrence: only the h-half conv stays on the serial chain ----
    wh = wh_ref[...]
    # hoist the (1,HW)->(G,HW) mask broadcasts out of the time loop
    mh = [jnp.broadcast_to(mh_ref[k:k + 1, :], (G, HW)) for k in range(9)]

    h = jnp.zeros((G, HW), jnp.float32)       # rows >= Chid stay exactly 0
    c = jnp.zeros((G, HW), jnp.float32)
    hs = []
    for t in range(T):                        # static unroll: T == step_max is small
        # 9 shifted taps of h, built in registers; every piece is one 8-row
        # sublane tile so the concat is tile-aligned (no relayout / masked vst).
        taps = []
        for k, off in enumerate(offs):
            if off == 0:
                taps.append(h)
            else:
                taps.append(pltpu.roll(h, (-off) % HW, axis=1) * mh[k])
        hpat = jnp.concatenate(taps, axis=0)                 # (9*G, HW)

        # Per-step fused matmul (recurrent half) + hoisted x-half contribution.
        acc = jnp.dot(wh, hpat, preferred_element_type=jnp.float32)
        acc = acc + gx_ref[:, t * HW:(t + 1) * HW]

        # Gate order matches torch.split(..., hidden_dim, dim=1): i, f, o, g.
        # Pad rows of acc are exactly 0 (zero weight rows + zero bias), so
        # sigmoid(0)=0.5 / tanh(0)=0 keep the padded rows of c and h at 0.
        ifo = jax.nn.sigmoid(acc[0:3 * G, :])
        gg = jnp.tanh(acc[3 * G:4 * G, :])
        gi = ifo[0:G, :]
        gf = ifo[G:2 * G, :]
        go = ifo[2 * G:3 * G, :]

        c = gf * c + gi * gg
        h = go * jnp.tanh(c)
        hs.append(h)                          # T*G*HW f32 = a few vregs: keep live

    # ---- attention epilogue: batched logits, then weighted sum ----
    h_last = hs[-1]
    hs_all = jnp.concatenate(hs, axis=0)                      # (T*G, HW)
    hl_rep = jnp.concatenate([h_last] * T, axis=0)            # (T*G, HW)
    rowsum = jnp.sum(hs_all * hl_rep, axis=1, keepdims=True)  # one lane reduce
    logits = [jnp.sum(rowsum[k * G:(k + 1) * G, :]) * (1.0 / T) for k in range(T)]
    m = logits[0]
    for k in range(1, T):
        m = jnp.maximum(m, logits[k])
    exps = [jnp.exp(l - m) for l in logits]
    denom = exps[0]
    for k in range(1, T):
        denom = denom + exps[k]
    inv = 1.0 / denom                         # exact scalar divide (tolerance)
    out = (exps[0] * inv) * hs[0]
    for k in range(1, T):
        out = out + (exps[k] * inv) * hs[k]
    out_ref[...] = out


def conv_lstm_attention_forward(x, w_conv, b_conv):
    """x: (1, T, C, H, W) float32 (PyTorch batch_first NCHW-per-step).
       w_conv: (4*Chid, C+Chid, 3, 3) PyTorch OIHW conv weight.
       b_conv: (4*Chid,) conv bias.
       Returns (1, C, H, W) float32, matching the torch module output."""
    B, T, C, H, W = x.shape
    assert B == 1, "module semantics assume batch size 1 (uses outputs[0])"
    C4, Ctot, kh, kw = w_conv.shape
    Chid = C4 // 4
    Cin = C
    assert Ctot == Cin + Chid and kh == 3 and kw == 3
    # The torch module reshapes the output to (1, C, H, W): this only makes
    # sense when hidden_dim == input_dim, so make that assumption explicit.
    assert Chid == Cin, "output reshape requires hidden_dim == input_dim"
    HW = H * W

    G = _round_up(Chid, 8)        # gate-slab / h-channel padding (8-sublane tile)
    Cpx = _round_up(Cin, 8)       # x-channel padding

    # ---- plain-JAX glue: layout plumbing + weight repacking (no compute) ----
    # x as (Cpx, T*HW): channel-major, each 256-lane block is one timestep frame.
    x_cm = jnp.transpose(x[0], (1, 0, 2, 3)).reshape(Cin, T * HW)
    x_flat = jnp.pad(x_cm, ((0, Cpx - Cin), (0, 0))).astype(jnp.float32)

    def pack(w_part, cin_real, cin_pad):
        # (4*Chid, cin_real, 3, 3) -> (4*G, 9*cin_pad); row = gate*G + r,
        # col = (kh*3 + kw)*cin_pad + c; pad rows/cols are zero.
        wp = w_part.reshape(4, Chid, cin_real, 3, 3)
        wp = jnp.pad(wp, ((0, 0), (0, G - Chid), (0, cin_pad - cin_real),
                          (0, 0), (0, 0)))
        wp = jnp.transpose(wp, (0, 1, 3, 4, 2))       # (4, G, 3, 3, cin_pad)
        return wp.reshape(4 * G, 9 * cin_pad).astype(jnp.float32)

    wx = pack(w_conv[:, :Cin], Cin, Cpx)              # input half
    wh = pack(w_conv[:, Cin:], Chid, G)               # recurrent half
    b2 = jnp.pad(b_conv.reshape(4, Chid).astype(jnp.float32),
                 ((0, 0), (0, G - Chid))).reshape(4 * G, 1)

    # Per-tap validity masks reproducing 'same' 3x3 zero padding in the flat
    # H*W layout (also kill circular-roll wraparound across rows / frames).
    idx = jnp.arange(HW, dtype=jnp.int32)
    ii, jj = idx // W, idx % W
    rows = []
    for di in (-1, 0, 1):
        for dj in (-1, 0, 1):
            valid = ((ii + di >= 0) & (ii + di < H)
                     & (jj + dj >= 0) & (jj + dj < W))
            rows.append(valid.astype(jnp.float32))
    mask_h = jnp.stack(rows, axis=0)                  # (9, HW)
    mask_x = jnp.tile(mask_h, (1, T))                 # (9, T*HW)

    kernel = functools.partial(_convlstm_attention_kernel, seq_len=T, img_w=W)

    out8 = pl.pallas_call(
        kernel,
        out_shape=jax.ShapeDtypeStruct((G, HW), jnp.float32),
        in_specs=[pl.BlockSpec(memory_space=pltpu.MemorySpace.VMEM)] * 6,
        out_specs=pl.BlockSpec(memory_space=pltpu.MemorySpace.VMEM),
        scratch_shapes=[
            pltpu.VMEM((9 * Cpx, T * HW), jnp.float32),   # x im2col patches
            pltpu.VMEM((4 * G, T * HW), jnp.float32),     # hoisted gates_x (+bias)
        ],
    )(x_flat, wx, wh, b2, mask_h, mask_x)

    return out8[:Chid].reshape(Chid, H, W)[None]          # (1, C, H, W)


def reference_forward(x, w_conv, b_conv):
    """Pure-JAX reference mirroring the PyTorch module (for validation)."""
    B, T, C, H, W = x.shape
    C4 = w_conv.shape[0]
    Chid = C4 // 4
    h = jnp.zeros((1, Chid, H, W), jnp.float32)
    c = jnp.zeros_like(h)
    hs = []
    for t in range(T):
        combined = jnp.concatenate([x[:, t], h], axis=1)
        conv = jax.lax.conv_general_dilated(
            combined, w_conv, window_strides=(1, 1), padding="SAME",
            dimension_numbers=("NCHW", "OIHW", "NCHW"))
        conv = conv + b_conv[None, :, None, None]
        cc_i, cc_f, cc_o, cc_g = jnp.split(conv, 4, axis=1)
        gi, gf, go = jax.nn.sigmoid(cc_i), jax.nn.sigmoid(cc_f), jax.nn.sigmoid(cc_o)
        gg = jnp.tanh(cc_g)
        c = gf * c + gi * gg
        h = go * jnp.tanh(c)
        hs.append(h[0])                                            # (Chid, H, W)
    h_last = hs[-1]
    logits = jnp.stack([jnp.sum(hs[k] * h_last) / T for k in range(T)])
    w_att = jax.nn.softmax(logits)
    flat = jnp.stack([hk.reshape(-1) for hk in hs])                # (T, Chid*H*W)
    out = (w_att[None, :] @ flat).reshape(1, C, H, W)
    return out


if __name__ == "__main__":
    # small shapes consistent with the module: batch=1 (required by forward),
    # seq = step_max = 5, input_dim = hidden_dim = 4, spatial 16x16.
    T, C, H, W = 5, 4, 16, 16
    Chid = C
    Ctot = C + Chid
    C4 = 4 * Chid

    key = jax.random.PRNGKey(0)
    k1, k2, k3 = jax.random.split(key, 3)
    x = jax.random.normal(k1, (1, T, C, H, W), jnp.float32)
    bound = 1.0 / np.sqrt(Ctot * 3 * 3)                            # conv2d-style init
    w_conv = jax.random.uniform(k2, (C4, Ctot, 3, 3), jnp.float32, -bound, bound)
    b_conv = jax.random.uniform(k3, (C4,), jnp.float32, -bound, bound)

    out = jax.block_until_ready(
        jax.jit(conv_lstm_attention_forward)(x, w_conv, b_conv))
    ref = jax.block_until_ready(reference_forward(x, w_conv, b_conv))

    assert out.shape == (1, C, H, W), out.shape
    if not np.allclose(np.asarray(out), np.asarray(ref), rtol=1e-4, atol=1e-4):
        raise AssertionError(
            "Pallas kernel mismatch vs JAX reference; max abs err = "
            f"{np.max(np.abs(np.asarray(out) - np.asarray(ref)))}")
    print("KERNEL_OK")
</pallas_src>

<mosaic_0001>
module attributes {stable_mosaic.version = 11 : i64} {
  func.func @_convlstm_attention_kernel(%arg0: memref<8x1280xf32, #tpu.memory_space<vmem>>, %arg1: memref<32x72xf32, #tpu.memory_space<vmem>>, %arg2: memref<32x72xf32, #tpu.memory_space<vmem>>, %arg3: memref<32x1xf32, #tpu.memory_space<vmem>>, %arg4: memref<9x256xf32, #tpu.memory_space<vmem>>, %arg5: memref<9x1280xf32, #tpu.memory_space<vmem>>, %arg6: memref<8x256xf32, #tpu.memory_space<vmem>>, %arg7: memref<72x1280xf32, #tpu.memory_space<vmem>>, %arg8: memref<32x1280xf32, #tpu.memory_space<vmem>>) attributes {dimension_semantics = [], scalar_prefetch = 0 : i64, scratch_operands = 2 : i64, tpu.core_type = #tpu.core_type<tc>} {
    %c0 = arith.constant 0 : index
    %c0_0 = arith.constant 0 : index
    %0 = vector.load %arg0[%c0, %c0_0] : memref<8x1280xf32, #tpu.memory_space<vmem>>, vector<8x1280xf32>
    %c17_i32 = arith.constant 17 : i32
    %1 = tpu.dynamic_rotate %0 by %c17_i32 dim 1 : vector<8x1280xf32>, i32 -> vector<8x1280xf32>
    %c0_1 = arith.constant 0 : index
    %c0_2 = arith.constant 0 : index
    %2 = vector.load %arg5[%c0_1, %c0_2] : memref<9x1280xf32, #tpu.memory_space<vmem>>, vector<1x1280xf32>
    %3 = vector.broadcast %2 : vector<1x1280xf32> to vector<8x1280xf32>
    %4 = arith.mulf %1, %3 : vector<8x1280xf32>
    %c0_3 = arith.constant 0 : index
    %c0_4 = arith.constant 0 : index
    %5 = vector.load %arg7[%c0_3, %c0_4] : memref<72x1280xf32, #tpu.memory_space<vmem>>, vector<8x1280xf32>
    tpu.vector_store %arg7[%c0_3, %c0_4], %4 {strides = array<i32>} : memref<72x1280xf32, #tpu.memory_space<vmem>>, vector<8x1280xf32>,
    %c16_i32 = arith.constant 16 : i32
    %6 = tpu.dynamic_rotate %0 by %c16_i32 dim 1 : vector<8x1280xf32>, i32 -> vector<8x1280xf32>
    %c1 = arith.constant 1 : index
    %c0_5 = arith.constant 0 : index
    %7 = vector.load %arg5[%c1, %c0_5] : memref<9x1280xf32, #tpu.memory_space<vmem>>, vector<1x1280xf32>
    %8 = vector.broadcast %7 : vector<1x1280xf32> to vector<8x1280xf32>
    %9 = arith.mulf %6, %8 : vector<8x1280xf32>
    %c8 = arith.constant 8 : index
    %c0_6 = arith.constant 0 : index
    %10 = vector.load %arg7[%c8, %c0_6] : memref<72x1280xf32, #tpu.memory_space<vmem>>, vector<8x1280xf32>
    tpu.vector_store %arg7[%c8, %c0_6], %9 {strides = array<i32>} : memref<72x1280xf32, #tpu.memory_space<vmem>>, vector<8x1280xf32>,
    %c15_i32 = arith.constant 15 : i32
    %11 = tpu.dynamic_rotate %0 by %c15_i32 dim 1 : vector<8x1280xf32>, i32 -> vector<8x1280xf32>
    %c2 = arith.constant 2 : index
    %c0_7 = arith.constant 0 : index
    %12 = vector.load %arg5[%c2, %c0_7] : memref<9x1280xf32, #tpu.memory_space<vmem>>, vector<1x1280xf32>
    %13 = vector.broadcast %12 : vector<1x1280xf32> to vector<8x1280xf32>
    %14 = arith.mulf %11, %13 : vector<8x1280xf32>
    %c16 = arith.constant 16 : index
    %c0_8 = arith.constant 0 : index
    %15 = vector.load %arg7[%c16, %c0_8] : memref<72x1280xf32, #tpu.memory_space<vmem>>, vector<8x1280xf32>
    tpu.vector_store %arg7[%c16, %c0_8], %14 {strides = array<i32>} : memref<72x1280xf32, #tpu.memory_space<vmem>>, vector<8x1280xf32>,
    %c1_i32 = arith.constant 1 : i32
    %16 = tpu.dynamic_rotate %0 by %c1_i32 dim 1 : vector<8x1280xf32>, i32 -> vector<8x1280xf32>
    %c3 = arith.constant 3 : index
    %c0_9 = arith.constant 0 : index
    %17 = vector.load %arg5[%c3, %c0_9] : memref<9x1280xf32, #tpu.memory_space<vmem>>, vector<1x1280xf32>
    %18 = vector.broadcast %17 : vector<1x1280xf32> to vector<8x1280xf32>
    %19 = arith.mulf %16, %18 : vector<8x1280xf32>
    %c24 = arith.constant 24 : index
    %c0_10 = arith.constant 0 : index
    %20 = vector.load %arg7[%c24, %c0_10] : memref<72x1280xf32, #tpu.memory_space<vmem>>, vector<8x1280xf32>
    tpu.vector_store %arg7[%c24, %c0_10], %19 {strides = array<i32>} : memref<72x1280xf32, #tpu.memory_space<vmem>>, vector<8x1280xf32>,
    %c32 = arith.constant 32 : index
    %c0_11 = arith.constant 0 : index
    %21 = vector.load %arg7[%c32, %c0_11] : memref<72x1280xf32, #tpu.memory_space<vmem>>, vector<8x1280xf32>
    tpu.vector_store %arg7[%c32, %c0_11], %0 {strides = array<i32>} : memref<72x1280xf32, #tpu.memory_space<vmem>>, vector<8x1280xf32>,
    %c1279_i32 = arith.constant 1279 : i32
    %22 = tpu.dynamic_rotate %0 by %c1279_i32 dim 1 : vector<8x1280xf32>, i32 -> vector<8x1280xf32>
    %c5 = arith.constant 5 : index
    %c0_12 = arith.constant 0 : index
    %23 = vector.load %arg5[%c5, %c0_12] : memref<9x1280xf32, #tpu.memory_space<vmem>>, vector<1x1280xf32>
    %24 = vector.broadcast %23 : vector<1x1280xf32> to vector<8x1280xf32>
    %25 = arith.mulf %22, %24 : vector<8x1280xf32>
    %c40 = arith.constant 40 : index
    %c0_13 = arith.constant 0 : index
    %26 = vector.load %arg7[%c40, %c0_13] : memref<72x1280xf32, #tpu.memory_space<vmem>>, vector<8x1280xf32>
    tpu.vector_store %arg7[%c40, %c0_13], %25 {strides = array<i32>} : memref<72x1280xf32, #tpu.memory_space<vmem>>, vector<8x1280xf32>,
    %c1265_i32 = arith.constant 1265 : i32
    %27 = tpu.dynamic_rotate %0 by %c1265_i32 dim 1 : vector<8x1280xf32>, i32 -> vector<8x1280xf32>
    %c6 = arith.constant 6 : index
    %c0_14 = arith.constant 0 : index
    %28 = vector.load %arg5[%c6, %c0_14] : memref<9x1280xf32, #tpu.memory_space<vmem>>, vector<1x1280xf32>
    %29 = vector.broadcast %28 : vector<1x1280xf32> to vector<8x1280xf32>
    %30 = arith.mulf %27, %29 : vector<8x1280xf32>
    %c48 = arith.constant 48 : index
    %c0_15 = arith.constant 0 : index
    %31 = vector.load %arg7[%c48, %c0_15] : memref<72x1280xf32, #tpu.memory_space<vmem>>, vector<8x1280xf32>
    tpu.vector_store %arg7[%c48, %c0_15], %30 {strides = array<i32>} : memref<72x1280xf32, #tpu.memory_space<vmem>>, vector<8x1280xf32>,
    %c1264_i32 = arith.constant 1264 : i32
    %32 = tpu.dynamic_rotate %0 by %c1264_i32 dim 1 : vector<8x1280xf32>, i32 -> vector<8x1280xf32>
    %c7 = arith.constant 7 : index
    %c0_16 = arith.constant 0 : index
    %33 = vector.load %arg5[%c7, %c0_16] : memref<9x1280xf32, #tpu.memory_space<vmem>>, vector<1x1280xf32>
    %34 = vector.broadcast %33 : vector<1x1280xf32> to vector<8x1280xf32>
    %35 = arith.mulf %32, %34 : vector<8x1280xf32>
    %c56 = arith.constant 56 : index
    %c0_17 = arith.constant 0 : index
    %36 = vector.load %arg7[%c56, %c0_17] : memref<72x1280xf32, #tpu.memory_space<vmem>>, vector<8x1280xf32>
    tpu.vector_store %arg7[%c56, %c0_17], %35 {strides = array<i32>} : memref<72x1280xf32, #tpu.memory_space<vmem>>, vector<8x1280xf32>,
    %c1263_i32 = arith.constant 1263 : i32
    %37 = tpu.dynamic_rotate %0 by %c1263_i32 dim 1 : vector<8x1280xf32>, i32 -> vector<8x1280xf32>
    %c8_18 = arith.constant 8 : index
    %c0_19 = arith.constant 0 : index
    %38 = vector.load %arg5[%c8_18, %c0_19] : memref<9x1280xf32, #tpu.memory_space<vmem>>, vector<1x1280xf32>
    %39 = vector.broadcast %38 : vector<1x1280xf32> to vector<8x1280xf32>
    %40 = arith.mulf %37, %39 : vector<8x1280xf32>
    %c64 = arith.constant 64 : index
    %c0_20 = arith.constant 0 : index
    %41 = vector.load %arg7[%c64, %c0_20] : memref<72x1280xf32, #tpu.memory_space<vmem>>, vector<8x1280xf32>
    tpu.vector_store %arg7[%c64, %c0_20], %40 {strides = array<i32>} : memref<72x1280xf32, #tpu.memory_space<vmem>>, vector<8x1280xf32>,
    %c0_21 = arith.constant 0 : index
    %c0_22 = arith.constant 0 : index
    %42 = vector.load %arg3[%c0_21, %c0_22] : memref<32x1xf32, #tpu.memory_space<vmem>>, vector<32x1xf32>
    %43 = vector.shape_cast %42 : vector<32x1xf32> to vector<32x1xf32>
    %44 = vector.broadcast %43 : vector<32x1xf32> to vector<32x1280xf32>
    %c0_23 = arith.constant 0 : index
    %c0_24 = arith.constant 0 : index
    %45 = vector.load %arg1[%c0_23, %c0_24] : memref<32x72xf32, #tpu.memory_space<vmem>>, vector<32x72xf32>
    %c0_25 = arith.constant 0 : index
    %c0_26 = arith.constant 0 : index
    %46 = vector.load %arg7[%c0_25, %c0_26] : memref<72x1280xf32, #tpu.memory_space<vmem>>, vector<72x1280xf32>
    %cst = arith.constant dense<0.000000e+00> : vector<32x1280xf32>
    %47 = tpu.matmul %45, %46, %cst {dimension_numbers = #tpu.dot_dimension_numbers<[1], [0], [0], [1], [0, 0, 1, 1], [], []>} : vector<32x72xf32>, vector<72x1280xf32>, vector<32x1280xf32> -> vector<32x1280xf32>
    %48 = arith.addf %47, %44 : vector<32x1280xf32>
    %c0_27 = arith.constant 0 : index
    %c0_28 = arith.constant 0 : index
    %49 = vector.load %arg8[%c0_27, %c0_28] : memref<32x1280xf32, #tpu.memory_space<vmem>>, vector<32x1280xf32>
    tpu.vector_store %arg8[%c0_27, %c0_28], %48 {strides = array<i32>} : memref<32x1280xf32, #tpu.memory_space<vmem>>, vector<32x1280xf32>,
    %c0_29 = arith.constant 0 : index
    %c0_30 = arith.constant 0 : index
    %50 = vector.load %arg2[%c0_29, %c0_30] : memref<32x72xf32, #tpu.memory_space<vmem>>, vector<32x72xf32>
    %c0_31 = arith.constant 0 : index
    %c0_32 = arith.constant 0 : index
    %51 = vector.load %arg4[%c0_31, %c0_32] : memref<9x256xf32, #tpu.memory_space<vmem>>, vector<1x256xf32>
    %52 = vector.shape_cast %51 : vector<1x256xf32> to vector<1x256xf32>
    %53 = vector.broadcast %52 : vector<1x256xf32> to vector<8x256xf32>
    %c1_33 = arith.constant 1 : index
    %c0_34 = arith.constant 0 : index
    %54 = vector.load %arg4[%c1_33, %c0_34] : memref<9x256xf32, #tpu.memory_space<vmem>>, vector<1x256xf32>
    %55 = vector.shape_cast %54 : vector<1x256xf32> to vector<1x256xf32>
    %56 = vector.broadcast %55 : vector<1x256xf32> to vector<8x256xf32>
    %c2_35 = arith.constant 2 : index
    %c0_36 = arith.constant 0 : index
    %57 = vector.load %arg4[%c2_35, %c0_36] : memref<9x256xf32, #tpu.memory_space<vmem>>, vector<1x256xf32>
    %58 = vector.shape_cast %57 : vector<1x256xf32> to vector<1x256xf32>
    %59 = vector.broadcast %58 : vector<1x256xf32> to vector<8x256xf32>
    %c3_37 = arith.constant 3 : index
    %c0_38 = arith.constant 0 : index
    %60 = vector.load %arg4[%c3_37, %c0_38] : memref<9x256xf32, #tpu.memory_space<vmem>>, vector<1x256xf32>
    %61 = vector.shape_cast %60 : vector<1x256xf32> to vector<1x256xf32>
    %62 = vector.broadcast %61 : vector<1x256xf32> to vector<8x256xf32>
    %c5_39 = arith.constant 5 : index
    %c0_40 = arith.constant 0 : index
    %63 = vector.load %arg4[%c5_39, %c0_40] : memref<9x256xf32, #tpu.memory_space<vmem>>, vector<1x256xf32>
    %64 = vector.shape_cast %63 : vector<1x256xf32> to vector<1x256xf32>
    %65 = vector.broadcast %64 : vector<1x256xf32> to vector<8x256xf32>
    %c6_41 = arith.constant 6 : index
    %c0_42 = arith.constant 0 : index
    %66 = vector.load %arg4[%c6_41, %c0_42] : memref<9x256xf32, #tpu.memory_space<vmem>>, vector<1x256xf32>
    %67 = vector.shape_cast %66 : vector<1x256xf32> to vector<1x256xf32>
    %68 = vector.broadcast %67 : vector<1x256xf32> to vector<8x256xf32>
    %c7_43 = arith.constant 7 : index
    %c0_44 = arith.constant 0 : index
    %69 = vector.load %arg4[%c7_43, %c0_44] : memref<9x256xf32, #tpu.memory_space<vmem>>, vector<1x256xf32>
    %70 = vector.shape_cast %69 : vector<1x256xf32> to vector<1x256xf32>
    %71 = vector.broadcast %70 : vector<1x256xf32> to vector<8x256xf32>
    %c8_45 = arith.constant 8 : index
    %c0_46 = arith.constant 0 : index
    %72 = vector.load %arg4[%c8_45, %c0_46] : memref<9x256xf32, #tpu.memory_space<vmem>>, vector<1x256xf32>
    %73 = vector.shape_cast %72 : vector<1x256xf32> to vector<1x256xf32>
    %74 = vector.broadcast %73 : vector<1x256xf32> to vector<8x256xf32>
    %cst_47 = arith.constant 0.000000e+00 : f32
    %75 = vector.broadcast %cst_47 : f32 to vector<8x256xf32>
    %cst_48 = arith.constant 0.000000e+00 : f32
    %76 = vector.broadcast %cst_48 : f32 to vector<8x256xf32>
    %c17_i32_49 = arith.constant 17 : i32
    %77 = tpu.dynamic_rotate %75 by %c17_i32_49 dim 1 : vector<8x256xf32>, i32 -> vector<8x256xf32>
    %78 = arith.mulf %77, %53 : vector<8x256xf32>
    %c16_i32_50 = arith.constant 16 : i32
    %79 = tpu.dynamic_rotate %75 by %c16_i32_50 dim 1 : vector<8x256xf32>, i32 -> vector<8x256xf32>
    %80 = arith.mulf %79, %56 : vector<8x256xf32>
    %c15_i32_51 = arith.constant 15 : i32
    %81 = tpu.dynamic_rotate %75 by %c15_i32_51 dim 1 : vector<8x256xf32>, i32 -> vector<8x256xf32>
    %82 = arith.mulf %81, %59 : vector<8x256xf32>
    %c1_i32_52 = arith.constant 1 : i32
    %83 = tpu.dynamic_rotate %75 by %c1_i32_52 dim 1 : vector<8x256xf32>, i32 -> vector<8x256xf32>
    %84 = arith.mulf %83, %62 : vector<8x256xf32>
    %c255_i32 = arith.constant 255 : i32
    %85 = tpu.dynamic_rotate %75 by %c255_i32 dim 1 : vector<8x256xf32>, i32 -> vector<8x256xf32>
    %86 = arith.mulf %85, %65 : vector<8x256xf32>
    %c241_i32 = arith.constant 241 : i32
    %87 = tpu.dynamic_rotate %75 by %c241_i32 dim 1 : vector<8x256xf32>, i32 -> vector<8x256xf32>
    %88 = arith.mulf %87, %68 : vector<8x256xf32>
    %c240_i32 = arith.constant 240 : i32
    %89 = tpu.dynamic_rotate %75 by %c240_i32 dim 1 : vector<8x256xf32>, i32 -> vector<8x256xf32>
    %90 = arith.mulf %89, %71 : vector<8x256xf32>
    %c239_i32 = arith.constant 239 : i32
    %91 = tpu.dynamic_rotate %75 by %c239_i32 dim 1 : vector<8x256xf32>, i32 -> vector<8x256xf32>
    %92 = arith.mulf %91, %74 : vector<8x256xf32>
    %93 = tpu.concatenate %78, %80, %82, %84, %75, %86, %88, %90, %92 in 0 : vector<8x256xf32>, vector<8x256xf32>, vector<8x256xf32>, vector<8x256xf32>, vector<8x256xf32>, vector<8x256xf32>, vector<8x256xf32>, vector<8x256xf32>, vector<8x256xf32> -> vector<72x256xf32>
    %cst_53 = arith.constant dense<0.000000e+00> : vector<32x256xf32>
    %94 = tpu.matmul %50, %93, %cst_53 {dimension_numbers = #tpu.dot_dimension_numbers<[1], [0], [0], [1], [0, 0, 1, 1], [], []>} : vector<32x72xf32>, vector<72x256xf32>, vector<32x256xf32> -> vector<32x256xf32>
    %c0_54 = arith.constant 0 : index
    %c0_55 = arith.constant 0 : index
    %95 = vector.load %arg8[%c0_54, %c0_55] : memref<32x1280xf32, #tpu.memory_space<vmem>>, vector<32x256xf32>
    %96 = arith.addf %94, %95 : vector<32x256xf32>
    %97 = vector.extract_strided_slice %96 {offsets = [0, 0], sizes = [24, 256], strides = [1, 1]} : vector<32x256xf32> to vector<24x256xf32>
    %98 = arith.negf %97 : vector<24x256xf32>
    %99 = math.exp %98 : vector<24x256xf32>
    %cst_56 = arith.constant 1.000000e+00 : f32
    %100 = vector.broadcast %cst_56 : f32 to vector<24x256xf32>
    %101 = arith.addf %100, %99 : vector<24x256xf32>
    %102 = arith.divf %100, %101 : vector<24x256xf32>
    %103 = vector.extract_strided_slice %96 {offsets = [24, 0], sizes = [8, 256], strides = [1, 1]} : vector<32x256xf32> to vector<8x256xf32>
    %104 = math.tanh %103 : vector<8x256xf32>
    %105 = vector.extract_strided_slice %102 {offsets = [0, 0], sizes = [8, 256], strides = [1, 1]} : vector<24x256xf32> to vector<8x256xf32>
    %106 = vector.extract_strided_slice %102 {offsets = [8, 0], sizes = [8, 256], strides = [1, 1]} : vector<24x256xf32> to vector<8x256xf32>
    %107 = vector.extract_strided_slice %102 {offsets = [16, 0], sizes = [8, 256], strides = [1, 1]} : vector<24x256xf32> to vector<8x256xf32>
    %108 = arith.mulf %106, %76 : vector<8x256xf32>
    %109 = arith.mulf %105, %104 : vector<8x256xf32>
    %110 = arith.addf %108, %109 : vector<8x256xf32>
    %111 = math.tanh %110 : vector<8x256xf32>
    %112 = arith.mulf %107, %111 : vector<8x256xf32>
    %c17_i32_57 = arith.constant 17 : i32
    %113 = tpu.dynamic_rotate %112 by %c17_i32_57 dim 1 : vector<8x256xf32>, i32 -> vector<8x256xf32>
    %114 = arith.mulf %113, %53 : vector<8x256xf32>
    %c16_i32_58 = arith.constant 16 : i32
    %115 = tpu.dynamic_rotate %112 by %c16_i32_58 dim 1 : vector<8x256xf32>, i32 -> vector<8x256xf32>
    %116 = arith.mulf %115, %56 : vector<8x256xf32>
    %c15_i32_59 = arith.constant 15 : i32
    %117 = tpu.dynamic_rotate %112 by %c15_i32_59 dim 1 : vector<8x256xf32>, i32 -> vector<8x256xf32>
    %118 = arith.mulf %117, %59 : vector<8x256xf32>
    %c1_i32_60 = arith.constant 1 : i32
    %119 = tpu.dynamic_rotate %112 by %c1_i32_60 dim 1 : vector<8x256xf32>, i32 -> vector<8x256xf32>
    %120 = arith.mulf %119, %62 : vector<8x256xf32>
    %c255_i32_61 = arith.constant 255 : i32
    %121 = tpu.dynamic_rotate %112 by %c255_i32_61 dim 1 : vector<8x256xf32>, i32 -> vector<8x256xf32>
    %122 = arith.mulf %121, %65 : vector<8x256xf32>
    %c241_i32_62 = arith.constant 241 : i32
    %123 = tpu.dynamic_rotate %112 by %c241_i32_62 dim 1 : vector<8x256xf32>, i32 -> vector<8x256xf32>
    %124 = arith.mulf %123, %68 : vector<8x256xf32>
    %c240_i32_63 = arith.constant 240 : i32
    %125 = tpu.dynamic_rotate %112 by %c240_i32_63 dim 1 : vector<8x256xf32>, i32 -> vector<8x256xf32>
    %126 = arith.mulf %125, %71 : vector<8x256xf32>
    %c239_i32_64 = arith.constant 239 : i32
    %127 = tpu.dynamic_rotate %112 by %c239_i32_64 dim 1 : vector<8x256xf32>, i32 -> vector<8x256xf32>
    %128 = arith.mulf %127, %74 : vector<8x256xf32>
    %129 = tpu.concatenate %114, %116, %118, %120, %112, %122, %124, %126, %128 in 0 : vector<8x256xf32>, vector<8x256xf32>, vector<8x256xf32>, vector<8x256xf32>, vector<8x256xf32>, vector<8x256xf32>, vector<8x256xf32>, vector<8x256xf32>, vector<8x256xf32> -> vector<72x256xf32>
    %cst_65 = arith.constant dense<0.000000e+00> : vector<32x256xf32>
    %130 = tpu.matmul %50, %129, %cst_65 {dimension_numbers = #tpu.dot_dimension_numbers<[1], [0], [0], [1], [0, 0, 1, 1], [], []>} : vector<32x72xf32>, vector<72x256xf32>, vector<32x256xf32> -> vector<32x256xf32>
    %c0_66 = arith.constant 0 : index
    %c256 = arith.constant 256 : index
    %131 = vector.load %arg8[%c0_66, %c256] : memref<32x1280xf32, #tpu.memory_space<vmem>>, vector<32x256xf32>
    %132 = arith.addf %130, %131 : vector<32x256xf32>
    %133 = vector.extract_strided_slice %132 {offsets = [0, 0], sizes = [24, 256], strides = [1, 1]} : vector<32x256xf32> to vector<24x256xf32>
    %134 = arith.negf %133 : vector<24x256xf32>
    %135 = math.exp %134 : vector<24x256xf32>
    %cst_67 = arith.constant 1.000000e+00 : f32
    %136 = vector.broadcast %cst_67 : f32 to vector<24x256xf32>
    %137 = arith.addf %136, %135 : vector<24x256xf32>
    %138 = arith.divf %136, %137 : vector<24x256xf32>
    %139 = vector.extract_strided_slice %132 {offsets = [24, 0], sizes = [8, 256], strides = [1, 1]} : vector<32x256xf32> to vector<8x256xf32>
    %140 = math.tanh %139 : vector<8x256xf32>
    %141 = vector.extract_strided_slice %138 {offsets = [0, 0], sizes = [8, 256], strides = [1, 1]} : vector<24x256xf32> to vector<8x256xf32>
    %142 = vector.extract_strided_slice %138 {offsets = [8, 0], sizes = [8, 256], strides = [1, 1]} : vector<24x256xf32> to vector<8x256xf32>
    %143 = vector.extract_strided_slice %138 {offsets = [16, 0], sizes = [8, 256], strides = [1, 1]} : vector<24x256xf32> to vector<8x256xf32>
    %144 = arith.mulf %142, %110 : vector<8x256xf32>
    %145 = arith.mulf %141, %140 : vector<8x256xf32>
    %146 = arith.addf %144, %145 : vector<8x256xf32>
    %147 = math.tanh %146 : vector<8x256xf32>
    %148 = arith.mulf %143, %147 : vector<8x256xf32>
    %c17_i32_68 = arith.constant 17 : i32
    %149 = tpu.dynamic_rotate %148 by %c17_i32_68 dim 1 : vector<8x256xf32>, i32 -> vector<8x256xf32>
    %150 = arith.mulf %149, %53 : vector<8x256xf32>
    %c16_i32_69 = arith.constant 16 : i32
    %151 = tpu.dynamic_rotate %148 by %c16_i32_69 dim 1 : vector<8x256xf32>, i32 -> vector<8x256xf32>
    %152 = arith.mulf %151, %56 : vector<8x256xf32>
    %c15_i32_70 = arith.constant 15 : i32
    %153 = tpu.dynamic_rotate %148 by %c15_i32_70 dim 1 : vector<8x256xf32>, i32 -> vector<8x256xf32>
    %154 = arith.mulf %153, %59 : vector<8x256xf32>
    %c1_i32_71 = arith.constant 1 : i32
    %155 = tpu.dynamic_rotate %148 by %c1_i32_71 dim 1 : vector<8x256xf32>, i32 -> vector<8x256xf32>
    %156 = arith.mulf %155, %62 : vector<8x256xf32>
    %c255_i32_72 = arith.constant 255 : i32
    %157 = tpu.dynamic_rotate %148 by %c255_i32_72 dim 1 : vector<8x256xf32>, i32 -> vector<8x256xf32>
    %158 = arith.mulf %157, %65 : vector<8x256xf32>
    %c241_i32_73 = arith.constant 241 : i32
    %159 = tpu.dynamic_rotate %148 by %c241_i32_73 dim 1 : vector<8x256xf32>, i32 -> vector<8x256xf32>
    %160 = arith.mulf %159, %68 : vector<8x256xf32>
    %c240_i32_74 = arith.constant 240 : i32
    %161 = tpu.dynamic_rotate %148 by %c240_i32_74 dim 1 : vector<8x256xf32>, i32 -> vector<8x256xf32>
    %162 = arith.mulf %161, %71 : vector<8x256xf32>
    %c239_i32_75 = arith.constant 239 : i32
    %163 = tpu.dynamic_rotate %148 by %c239_i32_75 dim 1 : vector<8x256xf32>, i32 -> vector<8x256xf32>
    %164 = arith.mulf %163, %74 : vector<8x256xf32>
    %165 = tpu.concatenate %150, %152, %154, %156, %148, %158, %160, %162, %164 in 0 : vector<8x256xf32>, vector<8x256xf32>, vector<8x256xf32>, vector<8x256xf32>, vector<8x256xf32>, vector<8x256xf32>, vector<8x256xf32>, vector<8x256xf32>, vector<8x256xf32> -> vector<72x256xf32>
    %cst_76 = arith.constant dense<0.000000e+00> : vector<32x256xf32>
    %166 = tpu.matmul %50, %165, %cst_76 {dimension_numbers = #tpu.dot_dimension_numbers<[1], [0], [0], [1], [0, 0, 1, 1], [], []>} : vector<32x72xf32>, vector<72x256xf32>, vector<32x256xf32> -> vector<32x256xf32>
    %c0_77 = arith.constant 0 : index
    %c512 = arith.constant 512 : index
    %167 = vector.load %arg8[%c0_77, %c512] : memref<32x1280xf32, #tpu.memory_space<vmem>>, vector<32x256xf32>
    %168 = arith.addf %166, %167 : vector<32x256xf32>
    %169 = vector.extract_strided_slice %168 {offsets = [0, 0], sizes = [24, 256], strides = [1, 1]} : vector<32x256xf32> to vector<24x256xf32>
    %170 = arith.negf %169 : vector<24x256xf32>
    %171 = math.exp %170 : vector<24x256xf32>
    %cst_78 = arith.constant 1.000000e+00 : f32
    %172 = vector.broadcast %cst_78 : f32 to vector<24x256xf32>
    %173 = arith.addf %172, %171 : vector<24x256xf32>
    %174 = arith.divf %172, %173 : vector<24x256xf32>
    %175 = vector.extract_strided_slice %168 {offsets = [24, 0], sizes = [8, 256], strides = [1, 1]} : vector<32x256xf32> to vector<8x256xf32>
    %176 = math.tanh %175 : vector<8x256xf32>
    %177 = vector.extract_strided_slice %174 {offsets = [0, 0], sizes = [8, 256], strides = [1, 1]} : vector<24x256xf32> to vector<8x256xf32>
    %178 = vector.extract_strided_slice %174 {offsets = [8, 0], sizes = [8, 256], strides = [1, 1]} : vector<24x256xf32> to vector<8x256xf32>
    %179 = vector.extract_strided_slice %174 {offsets = [16, 0], sizes = [8, 256], strides = [1, 1]} : vector<24x256xf32> to vector<8x256xf32>
    %180 = arith.mulf %178, %146 : vector<8x256xf32>
    %181 = arith.mulf %177, %176 : vector<8x256xf32>
    %182 = arith.addf %180, %181 : vector<8x256xf32>
    %183 = math.tanh %182 : vector<8x256xf32>
    %184 = arith.mulf %179, %183 : vector<8x256xf32>
    %c17_i32_79 = arith.constant 17 : i32
    %185 = tpu.dynamic_rotate %184 by %c17_i32_79 dim 1 : vector<8x256xf32>, i32 -> vector<8x256xf32>
    %186 = arith.mulf %185, %53 : vector<8x256xf32>
    %c16_i32_80 = arith.constant 16 : i32
    %187 = tpu.dynamic_rotate %184 by %c16_i32_80 dim 1 : vector<8x256xf32>, i32 -> vector<8x256xf32>
    %188 = arith.mulf %187, %56 : vector<8x256xf32>
    %c15_i32_81 = arith.constant 15 : i32
    %189 = tpu.dynamic_rotate %184 by %c15_i32_81 dim 1 : vector<8x256xf32>, i32 -> vector<8x256xf32>
    %190 = arith.mulf %189, %59 : vector<8x256xf32>
    %c1_i32_82 = arith.constant 1 : i32
    %191 = tpu.dynamic_rotate %184 by %c1_i32_82 dim 1 : vector<8x256xf32>, i32 -> vector<8x256xf32>
    %192 = arith.mulf %191, %62 : vector<8x256xf32>
    %c255_i32_83 = arith.constant 255 : i32
    %193 = tpu.dynamic_rotate %184 by %c255_i32_83 dim 1 : vector<8x256xf32>, i32 -> vector<8x256xf32>
    %194 = arith.mulf %193, %65 : vector<8x256xf32>
    %c241_i32_84 = arith.constant 241 : i32
    %195 = tpu.dynamic_rotate %184 by %c241_i32_84 dim 1 : vector<8x256xf32>, i32 -> vector<8x256xf32>
    %196 = arith.mulf %195, %68 : vector<8x256xf32>
    %c240_i32_85 = arith.constant 240 : i32
    %197 = tpu.dynamic_rotate %184 by %c240_i32_85 dim 1 : vector<8x256xf32>, i32 -> vector<8x256xf32>
    %198 = arith.mulf %197, %71 : vector<8x256xf32>
    %c239_i32_86 = arith.constant 239 : i32
    %199 = tpu.dynamic_rotate %184 by %c239_i32_86 dim 1 : vector<8x256xf32>, i32 -> vector<8x256xf32>
    %200 = arith.mulf %199, %74 : vector<8x256xf32>
    %201 = tpu.concatenate %186, %188, %190, %192, %184, %194, %196, %198, %200 in 0 : vector<8x256xf32>, vector<8x256xf32>, vector<8x256xf32>, vector<8x256xf32>, vector<8x256xf32>, vector<8x256xf32>, vector<8x256xf32>, vector<8x256xf32>, vector<8x256xf32> -> vector<72x256xf32>
    %cst_87 = arith.constant dense<0.000000e+00> : vector<32x256xf32>
    %202 = tpu.matmul %50, %201, %cst_87 {dimension_numbers = #tpu.dot_dimension_numbers<[1], [0], [0], [1], [0, 0, 1, 1], [], []>} : vector<32x72xf32>, vector<72x256xf32>, vector<32x256xf32> -> vector<32x256xf32>
    %c0_88 = arith.constant 0 : index
    %c768 = arith.constant 768 : index
    %203 = vector.load %arg8[%c0_88, %c768] : memref<32x1280xf32, #tpu.memory_space<vmem>>, vector<32x256xf32>
    %204 = arith.addf %202, %203 : vector<32x256xf32>
    %205 = vector.extract_strided_slice %204 {offsets = [0, 0], sizes = [24, 256], strides = [1, 1]} : vector<32x256xf32> to vector<24x256xf32>
    %206 = arith.negf %205 : vector<24x256xf32>
    %207 = math.exp %206 : vector<24x256xf32>
    %cst_89 = arith.constant 1.000000e+00 : f32
    %208 = vector.broadcast %cst_89 : f32 to vector<24x256xf32>
    %209 = arith.addf %208, %207 : vector<24x256xf32>
    %210 = arith.divf %208, %209 : vector<24x256xf32>
    %211 = vector.extract_strided_slice %204 {offsets = [24, 0], sizes = [8, 256], strides = [1, 1]} : vector<32x256xf32> to vector<8x256xf32>
    %212 = math.tanh %211 : vector<8x256xf32>
    %213 = vector.extract_strided_slice %210 {offsets = [0, 0], sizes = [8, 256], strides = [1, 1]} : vector<24x256xf32> to vector<8x256xf32>
    %214 = vector.extract_strided_slice %210 {offsets = [8, 0], sizes = [8, 256], strides = [1, 1]} : vector<24x256xf32> to vector<8x256xf32>
    %215 = vector.extract_strided_slice %210 {offsets = [16, 0], sizes = [8, 256], strides = [1, 1]} : vector<24x256xf32> to vector<8x256xf32>
    %216 = arith.mulf %214, %182 : vector<8x256xf32>
    %217 = arith.mulf %213, %212 : vector<8x256xf32>
    %218 = arith.addf %216, %217 : vector<8x256xf32>
    %219 = math.tanh %218 : vector<8x256xf32>
    %220 = arith.mulf %215, %219 : vector<8x256xf32>
    %c17_i32_90 = arith.constant 17 : i32
    %221 = tpu.dynamic_rotate %220 by %c17_i32_90 dim 1 : vector<8x256xf32>, i32 -> vector<8x256xf32>
    %222 = arith.mulf %221, %53 : vector<8x256xf32>
    %c16_i32_91 = arith.constant 16 : i32
    %223 = tpu.dynamic_rotate %220 by %c16_i32_91 dim 1 : vector<8x256xf32>, i32 -> vector<8x256xf32>
    %224 = arith.mulf %223, %56 : vector<8x256xf32>
    %c15_i32_92 = arith.constant 15 : i32
    %225 = tpu.dynamic_rotate %220 by %c15_i32_92 dim 1 : vector<8x256xf32>, i32 -> vector<8x256xf32>
    %226 = arith.mulf %225, %59 : vector<8x256xf32>
    %c1_i32_93 = arith.constant 1 : i32
    %227 = tpu.dynamic_rotate %220 by %c1_i32_93 dim 1 : vector<8x256xf32>, i32 -> vector<8x256xf32>
    %228 = arith.mulf %227, %62 : vector<8x256xf32>
    %c255_i32_94 = arith.constant 255 : i32
    %229 = tpu.dynamic_rotate %220 by %c255_i32_94 dim 1 : vector<8x256xf32>, i32 -> vector<8x256xf32>
    %230 = arith.mulf %229, %65 : vector<8x256xf32>
    %c241_i32_95 = arith.constant 241 : i32
    %231 = tpu.dynamic_rotate %220 by %c241_i32_95 dim 1 : vector<8x256xf32>, i32 -> vector<8x256xf32>
    %232 = arith.mulf %231, %68 : vector<8x256xf32>
    %c240_i32_96 = arith.constant 240 : i32
    %233 = tpu.dynamic_rotate %220 by %c240_i32_96 dim 1 : vector<8x256xf32>, i32 -> vector<8x256xf32>
    %234 = arith.mulf %233, %71 : vector<8x256xf32>
    %c239_i32_97 = arith.constant 239 : i32
    %235 = tpu.dynamic_rotate %220 by %c239_i32_97 dim 1 : vector<8x256xf32>, i32 -> vector<8x256xf32>
    %236 = arith.mulf %235, %74 : vector<8x256xf32>
    %237 = tpu.concatenate %222, %224, %226, %228, %220, %230, %232, %234, %236 in 0 : vector<8x256xf32>, vector<8x256xf32>, vector<8x256xf32>, vector<8x256xf32>, vector<8x256xf32>, vector<8x256xf32>, vector<8x256xf32>, vector<8x256xf32>, vector<8x256xf32> -> vector<72x256xf32>
    %cst_98 = arith.constant dense<0.000000e+00> : vector<32x256xf32>
    %238 = tpu.matmul %50, %237, %cst_98 {dimension_numbers = #tpu.dot_dimension_numbers<[1], [0], [0], [1], [0, 0, 1, 1], [], []>} : vector<32x72xf32>, vector<72x256xf32>, vector<32x256xf32> -> vector<32x256xf32>
    %c0_99 = arith.constant 0 : index
    %c1024 = arith.constant 1024 : index
    %239 = vector.load %arg8[%c0_99, %c1024] : memref<32x1280xf32, #tpu.memory_space<vmem>>, vector<32x256xf32>
    %240 = arith.addf %238, %239 : vector<32x256xf32>
    %241 = vector.extract_strided_slice %240 {offsets = [0, 0], sizes = [24, 256], strides = [1, 1]} : vector<32x256xf32> to vector<24x256xf32>
    %242 = arith.negf %241 : vector<24x256xf32>
    %243 = math.exp %242 : vector<24x256xf32>
    %cst_100 = arith.constant 1.000000e+00 : f32
    %244 = vector.broadcast %cst_100 : f32 to vector<24x256xf32>
    %245 = arith.addf %244, %243 : vector<24x256xf32>
    %246 = arith.divf %244, %245 : vector<24x256xf32>
    %247 = vector.extract_strided_slice %240 {offsets = [24, 0], sizes = [8, 256], strides = [1, 1]} : vector<32x256xf32> to vector<8x256xf32>
    %248 = math.tanh %247 : vector<8x256xf32>
    %249 = vector.extract_strided_slice %246 {offsets = [0, 0], sizes = [8, 256], strides = [1, 1]} : vector<24x256xf32> to vector<8x256xf32>
    %250 = vector.extract_strided_slice %246 {offsets = [8, 0], sizes = [8, 256], strides = [1, 1]} : vector<24x256xf32> to vector<8x256xf32>
    %251 = vector.extract_strided_slice %246 {offsets = [16, 0], sizes = [8, 256], strides = [1, 1]} : vector<24x256xf32> to vector<8x256xf32>
    %252 = arith.mulf %250, %218 : vector<8x256xf32>
    %253 = arith.mulf %249, %248 : vector<8x256xf32>
    %254 = arith.addf %252, %253 : vector<8x256xf32>
    %255 = math.tanh %254 : vector<8x256xf32>
    %256 = arith.mulf %251, %255 : vector<8x256xf32>
    %257 = tpu.concatenate %112, %148, %184, %220, %256 in 0 : vector<8x256xf32>, vector<8x256xf32>, vector<8x256xf32>, vector<8x256xf32>, vector<8x256xf32> -> vector<40x256xf32>
    %258 = tpu.concatenate %256, %256, %256, %256, %256 in 0 : vector<8x256xf32>, vector<8x256xf32>, vector<8x256xf32>, vector<8x256xf32>, vector<8x256xf32> -> vector<40x256xf32>
    %259 = arith.mulf %257, %258 : vector<40x256xf32>
    %cst_101 = arith.constant dense<0.000000e+00> : vector<40xf32>
    %260 = vector.multi_reduction <add>, %259, %cst_101 [1] : vector<40x256xf32> to vector<40xf32>
    %261 = vector.shape_cast %260 : vector<40xf32> to vector<40x1xf32>
    %262 = vector.extract_strided_slice %261 {offsets = [0, 0], sizes = [8, 1], strides = [1, 1]} : vector<40x1xf32> to vector<8x1xf32>
    %263 = vector.shape_cast %262 : vector<8x1xf32> to vector<1x8x1xf32>
    %cst_102 = arith.constant dense<0.000000e+00> : vector<1xf32>
    %264 = vector.multi_reduction <add>, %263, %cst_102 [1, 2] : vector<1x8x1xf32> to vector<1xf32>
    %265 = vector.shape_cast %264 : vector<1xf32> to vector<1x1x1xf32>
    %266 = vector.extract %265[0, 0, 0] : f32 from vector<1x1x1xf32>
    %cst_103 = arith.constant 2.000000e-01 : f32
    %267 = arith.mulf %266, %cst_103 : f32
    %268 = vector.extract_strided_slice %261 {offsets = [8, 0], sizes = [8, 1], strides = [1, 1]} : vector<40x1xf32> to vector<8x1xf32>
    %269 = vector.shape_cast %268 : vector<8x1xf32> to vector<1x8x1xf32>
    %cst_104 = arith.constant dense<0.000000e+00> : vector<1xf32>
    %270 = vector.multi_reduction <add>, %269, %cst_104 [1, 2] : vector<1x8x1xf32> to vector<1xf32>
    %271 = vector.shape_cast %270 : vector<1xf32> to vector<1x1x1xf32>
    %272 = vector.extract %271[0, 0, 0] : f32 from vector<1x1x1xf32>
    %cst_105 = arith.constant 2.000000e-01 : f32
    %273 = arith.mulf %272, %cst_105 : f32
    %274 = vector.extract_strided_slice %261 {offsets = [16, 0], sizes = [8, 1], strides = [1, 1]} : vector<40x1xf32> to vector<8x1xf32>
    %275 = vector.shape_cast %274 : vector<8x1xf32> to vector<1x8x1xf32>
    %cst_106 = arith.constant dense<0.000000e+00> : vector<1xf32>
    %276 = vector.multi_reduction <add>, %275, %cst_106 [1, 2] : vector<1x8x1xf32> to vector<1xf32>
    %277 = vector.shape_cast %276 : vector<1xf32> to vector<1x1x1xf32>
    %278 = vector.extract %277[0, 0, 0] : f32 from vector<1x1x1xf32>
    %cst_107 = arith.constant 2.000000e-01 : f32
    %279 = arith.mulf %278, %cst_107 : f32
    %280 = vector.extract_strided_slice %261 {offsets = [24, 0], sizes = [8, 1], strides = [1, 1]} : vector<40x1xf32> to vector<8x1xf32>
    %281 = vector.shape_cast %280 : vector<8x1xf32> to vector<1x8x1xf32>
    %cst_108 = arith.constant dense<0.000000e+00> : vector<1xf32>
    %282 = vector.multi_reduction <add>, %281, %cst_108 [1, 2] : vector<1x8x1xf32> to vector<1xf32>
    %283 = vector.shape_cast %282 : vector<1xf32> to vector<1x1x1xf32>
    %284 = vector.extract %283[0, 0, 0] : f32 from vector<1x1x1xf32>
    %cst_109 = arith.constant 2.000000e-01 : f32
    %285 = arith.mulf %284, %cst_109 : f32
    %286 = vector.extract_strided_slice %261 {offsets = [32, 0], sizes = [8, 1], strides = [1, 1]} : vector<40x1xf32> to vector<8x1xf32>
    %287 = vector.shape_cast %286 : vector<8x1xf32> to vector<1x8x1xf32>
    %cst_110 = arith.constant dense<0.000000e+00> : vector<1xf32>
    %288 = vector.multi_reduction <add>, %287, %cst_110 [1, 2] : vector<1x8x1xf32> to vector<1xf32>
    %289 = vector.shape_cast %288 : vector<1xf32> to vector<1x1x1xf32>
    %290 = vector.extract %289[0, 0, 0] : f32 from vector<1x1x1xf32>
    %cst_111 = arith.constant 2.000000e-01 : f32
    %291 = arith.mulf %290, %cst_111 : f32
    %292 = arith.maximumf %267, %273 : f32
    %293 = arith.maximumf %292, %279 : f32
    %294 = arith.maximumf %293, %285 : f32
    %295 = arith.maximumf %294, %291 : f32
    %296 = arith.subf %267, %295 : f32
    %297 = math.exp %296 : f32
    %298 = arith.subf %273, %295 : f32
    %299 = math.exp %298 : f32
    %300 = arith.subf %279, %295 : f32
    %301 = math.exp %300 : f32
    %302 = arith.subf %285, %295 : f32
    %303 = math.exp %302 : f32
    %304 = arith.subf %291, %295 : f32
    %305 = math.exp %304 : f32
    %306 = arith.addf %297, %299 : f32
    %307 = arith.addf %306, %301 : f32
    %308 = arith.addf %307, %303 : f32
    %309 = arith.addf %308, %305 : f32
    %cst_112 = arith.constant 1.000000e+00 : f32
    %310 = arith.divf %cst_112, %309 : f32
    %311 = arith.mulf %297, %310 : f32
    %312 = vector.broadcast %311 : f32 to vector<8x256xf32>
    %313 = arith.mulf %312, %112 : vector<8x256xf32>
    %314 = arith.mulf %299, %310 : f32
    %315 = vector.broadcast %314 : f32 to vector<8x256xf32>
    %316 = arith.mulf %315, %148 : vector<8x256xf32>
    %317 = arith.addf %313, %316 : vector<8x256xf32>
    %318 = arith.mulf %301, %310 : f32
    %319 = vector.broadcast %318 : f32 to vector<8x256xf32>
    %320 = arith.mulf %319, %184 : vector<8x256xf32>
    %321 = arith.addf %317, %320 : vector<8x256xf32>
    %322 = arith.mulf %303, %310 : f32
    %323 = vector.broadcast %322 : f32 to vector<8x256xf32>
    %324 = arith.mulf %323, %220 : vector<8x256xf32>
    %325 = arith.addf %321, %324 : vector<8x256xf32>
    %326 = arith.mulf %305, %310 : f32
    %327 = vector.broadcast %326 : f32 to vector<8x256xf32>
    %328 = arith.mulf %327, %256 : vector<8x256xf32>
    %329 = arith.addf %325, %328 : vector<8x256xf32>
    %c0_113 = arith.constant 0 : index
    %c0_114 = arith.constant 0 : index
    %330 = vector.load %arg6[%c0_113, %c0_114] : memref<8x256xf32, #tpu.memory_space<vmem>>, vector<8x256xf32>
    tpu.vector_store %arg6[%c0_113, %c0_114], %329 {strides = array<i32>} : memref<8x256xf32, #tpu.memory_space<vmem>>, vector<8x256xf32>,
    return
  }
}

</mosaic_0001>

<llo_original>
// kernel: conv_lstm_attention_forward.1
$region0: #{conv_lstm_attention_forward.1}
  #allocation0 [shape = 'u32[]', space=smem, size = 0x4, offset = 0x4, fixed_abs, tag = 'smem constant byte address 0x4 - core index']
  #allocation1 [shape = 'u32[144,128]{1,0:T(1,128)}', space=vmem, size = 0x12000, scoped, tag = 'internal scratch']
  #allocation2 [shape = 'f32[72,1280]{1,0:T(8,128)}', space=vmem, size = 0x5a000, scoped, tag = 'scratch operand']
  #allocation3 [shape = 'f32[32,1280]{1,0:T(8,128)}', space=vmem, size = 0x28000, scoped, tag = 'scratch operand']
  %s0 = inlined_call_operand.vmem [shape: f32[8,1280], index: 0, kind: input, shape index: {}]
  %s1 = inlined_call_operand.vmem [shape: f32[32,72], index: 1, kind: input, shape index: {}]
  %s2 = inlined_call_operand.vmem [shape: f32[32,72], index: 2, kind: input, shape index: {}]
  %s3 = inlined_call_operand.vmem [shape: f32[32,1], index: 3, kind: input, shape index: {}]
  %s4 = inlined_call_operand.vmem [shape: f32[9,256], index: 4, kind: input, shape index: {}]
  %s5 = inlined_call_operand.vmem [shape: f32[9,1280], index: 5, kind: input, shape index: {}]
  %s6 = inlined_call_operand.vmem [shape: f32[8,256], index: 6, kind: output, shape index: {}]
  %s7 = sld [smem:[#allocation0]]
  $region34: #{conv_lstm_attention_forward.1} parent=0
    _
  %s9 = ssub.s32 1, %s7
  %s10 = scalar_select 0, %s9, %s7
  // Predicated region
  $region2: #{conv_lstm_attention_forward.1} parent=0 // pred_check
    _
  $region3: #{conv_lstm_attention_forward.1} parent=0 // pred_check_branch
    %12 = sbr.rel (0) target = $region5
  $region4: #{conv_lstm_attention_forward.1} parent=0 // pred_region
    _
  $region5: #{conv_lstm_attention_forward.1} parent=0 // pred_fallthru
    _
  // Predicated region
  $region6: #{conv_lstm_attention_forward.1} parent=0 // pred_check
    _
  $region7: #{conv_lstm_attention_forward.1} parent=0 // pred_check_branch
    %14 = sbr.rel (0) target = $region9
  $region8: #{conv_lstm_attention_forward.1} parent=0 // pred_region
    _
  $region9: #{conv_lstm_attention_forward.1} parent=0 // pred_fallthru
    _
  // Predicated region
  $region10: #{conv_lstm_attention_forward.1} parent=0 // pred_check
    _
  $region11: #{conv_lstm_attention_forward.1} parent=0 // pred_check_branch
    %16 = sbr.rel (0) target = $region13
  $region12: #{conv_lstm_attention_forward.1} parent=0 // pred_region
    _
  $region13: #{conv_lstm_attention_forward.1} parent=0 // pred_fallthru
    _
  // Predicated region
  $region14: #{conv_lstm_attention_forward.1} parent=0 // pred_check
    _
  $region15: #{conv_lstm_attention_forward.1} parent=0 // pred_check_branch
    %18 = sbr.rel (0) target = $region17
  $region16: #{conv_lstm_attention_forward.1} parent=0 // pred_region
    _
  $region17: #{conv_lstm_attention_forward.1} parent=0 // pred_fallthru
    _
  // Predicated region
  $region18: #{conv_lstm_attention_forward.1} parent=0 // pred_check
    _
  $region19: #{conv_lstm_attention_forward.1} parent=0 // pred_check_branch
    %20 = sbr.rel (0) target = $region21
  $region20: #{conv_lstm_attention_forward.1} parent=0 // pred_region
    _
  $region21: #{conv_lstm_attention_forward.1} parent=0 // pred_fallthru
    _
  // Predicated region
  $region22: #{conv_lstm_attention_forward.1} parent=0 // pred_check
    _
  $region23: #{conv_lstm_attention_forward.1} parent=0 // pred_check_branch
    %22 = sbr.rel (0) target = $region25
  $region24: #{conv_lstm_attention_forward.1} parent=0 // pred_region
    _
  $region25: #{conv_lstm_attention_forward.1} parent=0 // pred_fallthru
    _
  %v23 = vld [vmem:[%s0] sm:$0xff]
  %v24 = vld [vmem:[%s0 + $0x8] sm:$0xff]
  %v25 = vld [vmem:[%s0 + $0x10] sm:$0xff]
  %v26 = vld [vmem:[%s0 + $0x18] sm:$0xff]
  %v27 = vld [vmem:[%s0 + $0x20] sm:$0xff]
  %v28 = vld [vmem:[%s0 + $0x28] sm:$0xff]
  %v29 = vld [vmem:[%s0 + $0x30] sm:$0xff]
  %v30 = vld [vmem:[%s0 + $0x38] sm:$0xff]
  %v31 = vld [vmem:[%s0 + $0x40] sm:$0xff]
  %v32 = vld [vmem:[%s0 + $0x48] sm:$0xff]
  %33 = vrot.lane.b32.xlu0 %v23, 17
  %v34 = vpop.permute.xlu0 %33
  %35 = vrot.lane.b32.xlu0 %v24, 17
  %v36 = vpop.permute.xlu0 %35
  %37 = vrot.lane.b32.xlu0 %v25, 17
  %v38 = vpop.permute.xlu0 %37
  %39 = vrot.lane.b32.xlu0 %v26, 17
  %v40 = vpop.permute.xlu0 %39
  %41 = vrot.lane.b32.xlu0 %v27, 17
  %v42 = vpop.permute.xlu0 %41
  %43 = vrot.lane.b32.xlu0 %v28, 17
  %v44 = vpop.permute.xlu0 %43
  %45 = vrot.lane.b32.xlu0 %v29, 17
  %v46 = vpop.permute.xlu0 %45
  %47 = vrot.lane.b32.xlu0 %v30, 17
  %v48 = vpop.permute.xlu0 %47
  %49 = vrot.lane.b32.xlu0 %v31, 17
  %v50 = vpop.permute.xlu0 %49
  %51 = vrot.lane.b32.xlu0 %v32, 17
  %v52 = vpop.permute.xlu0 %51
  %v53 = vlaneseq
  %v54 = vand.u32 %v53, 127
  %vm55 = vcmp.lt.s32.totalorder %v54, 17
  %v56 = vsel %vm55, %v50, %v52
  %v57 = vsel %vm55, %v48, %v50
  %v58 = vsel %vm55, %v46, %v48
  %v59 = vsel %vm55, %v44, %v46
  %v60 = vsel %vm55, %v42, %v44
  %v61 = vsel %vm55, %v40, %v42
  %v62 = vsel %vm55, %v38, %v40
  %v63 = vsel %vm55, %v36, %v38
  %v64 = vsel %vm55, %v34, %v36
  %v65 = vsel %vm55, %v52, %v34
  %v66 = vld [vmem:[%s5] ss:$8 sm:$0xf]
  %v67 = vld [vmem:[%s5] ss:$8 sm:$0xf0]
  %v68 = vor.u32 %v66, %v67
  %s69 = scalar_lea.vmem %s5, 64
  %v70 = vld [vmem:[%s69] ss:$8 sm:$0x3]
  %v73 = vlaneseq
  %v74 = vshrl.u32 %v73, 7
  %v75 = vsub.s32 0, %v74
  %v76 = vrot.slane %v68, %v75
  %v77 = vlaneseq
  %v78 = vshrl.u32 %v77, 7
  %v79 = vsub.s32 1, %v78
  %v80 = vrot.slane %v68, %v79
  %v81 = vlaneseq
  %v82 = vshrl.u32 %v81, 7
  %v83 = vsub.s32 2, %v82
  %v84 = vrot.slane %v68, %v83
  %v85 = vlaneseq
  %v86 = vshrl.u32 %v85, 7
  %v87 = vsub.s32 3, %v86
  %v88 = vrot.slane %v68, %v87
  %v89 = vlaneseq
  %v90 = vshrl.u32 %v89, 7
  %v91 = vsub.s32 4, %v90
  %v92 = vrot.slane %v68, %v91
  %v93 = vlaneseq
  %v94 = vshrl.u32 %v93, 7
  %v95 = vsub.s32 5, %v94
  %v96 = vrot.slane %v68, %v95
  %v97 = vlaneseq
  %v98 = vshrl.u32 %v97, 7
  %v99 = vsub.s32 6, %v98
  %v100 = vrot.slane %v68, %v99
  %v101 = vlaneseq
  %v102 = vshrl.u32 %v101, 7
  %v103 = vsub.s32 7, %v102
  %v104 = vrot.slane %v68, %v103
  %v105 = vlaneseq
  %v106 = vshrl.u32 %v105, 7
  %v107 = vsub.s32 0, %v106
  %v108 = vrot.slane %v70, %v107
  %v109 = vlaneseq
  %v110 = vshrl.u32 %v109, 7
  %v111 = vsub.s32 1, %v110
  %v112 = vrot.slane %v70, %v111
  %v123 = vmul.f32 %v65, %v76
  %v124 = vmul.f32 %v64, %v80
  %v125 = vmul.f32 %v63, %v84
  %v126 = vmul.f32 %v62, %v88
  %v127 = vmul.f32 %v61, %v92
  %v128 = vmul.f32 %v60, %v96
  %v129 = vmul.f32 %v59, %v100
  %v130 = vmul.f32 %v58, %v104
  %v131 = vmul.f32 %v57, %v108
  %v132 = vmul.f32 %v56, %v112
  %133 = vst [vmem:[#allocation2] sm:$0xff] %v123
  %134 = vst [vmem:[#allocation2 + $0x8] sm:$0xff] %v124
  %135 = vst [vmem:[#allocation2 + $0x10] sm:$0xff] %v125
  %136 = vst [vmem:[#allocation2 + $0x18] sm:$0xff] %v126
  %137 = vst [vmem:[#allocation2 + $0x20] sm:$0xff] %v127
  %138 = vst [vmem:[#allocation2 + $0x28] sm:$0xff] %v128
  %139 = vst [vmem:[#allocation2 + $0x30] sm:$0xff] %v129
  %140 = vst [vmem:[#allocation2 + $0x38] sm:$0xff] %v130
  %141 = vst [vmem:[#allocation2 + $0x40] sm:$0xff] %v131
  %142 = vst [vmem:[#allocation2 + $0x48] sm:$0xff] %v132
  %143 = vrot.lane.b32.xlu0 %v23, 16
  %v144 = vpop.permute.xlu0 %143
  %145 = vrot.lane.b32.xlu0 %v24, 16
  %v146 = vpop.permute.xlu0 %145
  %147 = vrot.lane.b32.xlu0 %v25, 16
  %v148 = vpop.permute.xlu0 %147
  %149 = vrot.lane.b32.xlu0 %v26, 16
  %v150 = vpop.permute.xlu0 %149
  %151 = vrot.lane.b32.xlu0 %v27, 16
  %v152 = vpop.permute.xlu0 %151
  %153 = vrot.lane.b32.xlu0 %v28, 16
  %v154 = vpop.permute.xlu0 %153
  %155 = vrot.lane.b32.xlu0 %v29, 16
  %v156 = vpop.permute.xlu0 %155
  %157 = vrot.lane.b32.xlu0 %v30, 16
  %v158 = vpop.permute.xlu0 %157
  %159 = vrot.lane.b32.xlu0 %v31, 16
  %v160 = vpop.permute.xlu0 %159
  %161 = vrot.lane.b32.xlu0 %v32, 16
  %v162 = vpop.permute.xlu0 %161
  %vm163 = vcmp.lt.s32.totalorder %v54, 16
  %v164 = vsel %vm163, %v160, %v162
  %v165 = vsel %vm163, %v158, %v160
  %v166 = vsel %vm163, %v156, %v158
  %v167 = vsel %vm163, %v154, %v156
  %v168 = vsel %vm163, %v152, %v154
  %v169 = vsel %vm163, %v150, %v152
  %v170 = vsel %vm163, %v148, %v150
  %v171 = vsel %vm163, %v146, %v148
  %v172 = vsel %vm163, %v144, %v146
  %v173 = vsel %vm163, %v162, %v144
  %s174 = scalar_lea.vmem %s5, 1
  %v175 = vld [vmem:[%s174] ss:$8 sm:$0xf]
  %v176 = vld [vmem:[%s174] ss:$8 sm:$0xf0]
  %v177 = vor.u32 %v175, %v176
  %s178 = scalar_lea.vmem %s5, 65
  %v179 = vld [vmem:[%s178] ss:$8 sm:$0x3]
  %v182 = vlaneseq
  %v183 = vshrl.u32 %v182, 7
  %v184 = vsub.s32 0, %v183
  %v185 = vrot.slane %v177, %v184
  %v186 = vlaneseq
  %v187 = vshrl.u32 %v186, 7
  %v188 = vsub.s32 1, %v187
  %v189 = vrot.slane %v177, %v188
  %v190 = vlaneseq
  %v191 = vshrl.u32 %v190, 7
  %v192 = vsub.s32 2, %v191
  %v193 = vrot.slane %v177, %v192
  %v194 = vlaneseq
  %v195 = vshrl.u32 %v194, 7
  %v196 = vsub.s32 3, %v195
  %v197 = vrot.slane %v177, %v196
  %v198 = vlaneseq
  %v199 = vshrl.u32 %v198, 7
  %v200 = vsub.s32 4, %v199
  %v201 = vrot.slane %v177, %v200
  %v202 = vlaneseq
  %v203 = vshrl.u32 %v202, 7
  %v204 = vsub.s32 5, %v203
  %v205 = vrot.slane %v177, %v204
  %v206 = vlaneseq
  %v207 = vshrl.u32 %v206, 7
  %v208 = vsub.s32 6, %v207
  %v209 = vrot.slane %v177, %v208
  %v210 = vlaneseq
  %v211 = vshrl.u32 %v210, 7
  %v212 = vsub.s32 7, %v211
  %v213 = vrot.slane %v177, %v212
  %v214 = vlaneseq
  %v215 = vshrl.u32 %v214, 7
  %v216 = vsub.s32 0, %v215
  %v217 = vrot.slane %v179, %v216
  %v218 = vlaneseq
  %v219 = vshrl.u32 %v218, 7
  %v220 = vsub.s32 1, %v219
  %v221 = vrot.slane %v179, %v220
  %v232 = vmul.f32 %v173, %v185
  %v233 = vmul.f32 %v172, %v189
  %v234 = vmul.f32 %v171, %v193
  %v235 = vmul.f32 %v170, %v197
  %v236 = vmul.f32 %v169, %v201
  %v237 = vmul.f32 %v168, %v205
  %v238 = vmul.f32 %v167, %v209
  %v239 = vmul.f32 %v166, %v213
  %v240 = vmul.f32 %v165, %v217
  %v241 = vmul.f32 %v164, %v221
  %242 = vst [vmem:[#allocation2 + $0x50] sm:$0xff] %v232
  %243 = vst [vmem:[#allocation2 + $0x58] sm:$0xff] %v233
  %244 = vst [vmem:[#allocation2 + $0x60] sm:$0xff] %v234
  %245 = vst [vmem:[#allocation2 + $0x68] sm:$0xff] %v235
  %246 = vst [vmem:[#allocation2 + $0x70] sm:$0xff] %v236
  %247 = vst [vmem:[#allocation2 + $0x78] sm:$0xff] %v237
  %248 = vst [vmem:[#allocation2 + $0x80] sm:$0xff] %v238
  %249 = vst [vmem:[#allocation2 + $0x88] sm:$0xff] %v239
  %250 = vst [vmem:[#allocation2 + $0x90] sm:$0xff] %v240
  %251 = vst [vmem:[#allocation2 + $0x98] sm:$0xff] %v241
  %252 = vrot.lane.b32.xlu0 %v23, 15
  %v253 = vpop.permute.xlu0 %252
  %254 = vrot.lane.b32.xlu0 %v24, 15
  %v255 = vpop.permute.xlu0 %254
  %256 = vrot.lane.b32.xlu0 %v25, 15
  %v257 = vpop.permute.xlu0 %256
  %258 = vrot.lane.b32.xlu0 %v26, 15
  %v259 = vpop.permute.xlu0 %258
  %260 = vrot.lane.b32.xlu0 %v27, 15
  %v261 = vpop.permute.xlu0 %260
  %262 = vrot.lane.b32.xlu0 %v28, 15
  %v263 = vpop.permute.xlu0 %262
  %264 = vrot.lane.b32.xlu0 %v29, 15
  %v265 = vpop.permute.xlu0 %264
  %266 = vrot.lane.b32.xlu0 %v30, 15
  %v267 = vpop.permute.xlu0 %266
  %268 = vrot.lane.b32.xlu0 %v31, 15
  %v269 = vpop.permute.xlu0 %268
  %270 = vrot.lane.b32.xlu0 %v32, 15
  %v271 = vpop.permute.xlu0 %270
  %vm272 = vcmp.lt.s32.totalorder %v54, 15
  %v273 = vsel %vm272, %v269, %v271
  %v274 = vsel %vm272, %v267, %v269
  %v275 = vsel %vm272, %v265, %v267
  %v276 = vsel %vm272, %v263, %v265
  %v277 = vsel %vm272, %v261, %v263
  %v278 = vsel %vm272, %v259, %v261
  %v279 = vsel %vm272, %v257, %v259
  %v280 = vsel %vm272, %v255, %v257
  %v281 = vsel %vm272, %v253, %v255
  %v282 = vsel %vm272, %v271, %v253
  %s283 = scalar_lea.vmem %s5, 2
  %v284 = vld [vmem:[%s283] ss:$8 sm:$0xf]
  %v285 = vld [vmem:[%s283] ss:$8 sm:$0xf0]
  %v286 = vor.u32 %v284, %v285
  %s287 = scalar_lea.vmem %s5, 66
  %v288 = vld [vmem:[%s287] ss:$8 sm:$0x3]
  %v291 = vlaneseq
  %v292 = vshrl.u32 %v291, 7
  %v293 = vsub.s32 0, %v292
  %v294 = vrot.slane %v286, %v293
  %v295 = vlaneseq
  %v296 = vshrl.u32 %v295, 7
  %v297 = vsub.s32 1, %v296
  %v298 = vrot.slane %v286, %v297
  %v299 = vlaneseq
  %v300 = vshrl.u32 %v299, 7
  %v301 = vsub.s32 2, %v300
  %v302 = vrot.slane %v286, %v301
  %v303 = vlaneseq
  %v304 = vshrl.u32 %v303, 7
  %v305 = vsub.s32 3, %v304
  %v306 = vrot.slane %v286, %v305
  %v307 = vlaneseq
  %v308 = vshrl.u32 %v307, 7
  %v309 = vsub.s32 4, %v308
  %v310 = vrot.slane %v286, %v309
  %v311 = vlaneseq
  %v312 = vshrl.u32 %v311, 7
  %v313 = vsub.s32 5, %v312
  %v314 = vrot.slane %v286, %v313
  %v315 = vlaneseq
  %v316 = vshrl.u32 %v315, 7
  %v317 = vsub.s32 6, %v316
  %v318 = vrot.slane %v286, %v317
  %v319 = vlaneseq
  %v320 = vshrl.u32 %v319, 7
  %v321 = vsub.s32 7, %v320
  %v322 = vrot.slane %v286, %v321
  %v323 = vlaneseq
  %v324 = vshrl.u32 %v323, 7
  %v325 = vsub.s32 0, %v324
  %v326 = vrot.slane %v288, %v325
  %v327 = vlaneseq
  %v328 = vshrl.u32 %v327, 7
  %v329 = vsub.s32 1, %v328
  %v330 = vrot.slane %v288, %v329
  %v341 = vmul.f32 %v282, %v294
  %v342 = vmul.f32 %v281, %v298
  %v343 = vmul.f32 %v280, %v302
  %v344 = vmul.f32 %v279, %v306
  %v345 = vmul.f32 %v278, %v310
  %v346 = vmul.f32 %v277, %v314
  %v347 = vmul.f32 %v276, %v318
  %v348 = vmul.f32 %v275, %v322
  %v349 = vmul.f32 %v274, %v326
  %v350 = vmul.f32 %v273, %v330
  %351 = vst [vmem:[#allocation2 + $0xa0] sm:$0xff] %v341
  %352 = vst [vmem:[#allocation2 + $0xa8] sm:$0xff] %v342
  %353 = vst [vmem:[#allocation2 + $0xb0] sm:$0xff] %v343
  %354 = vst [vmem:[#allocation2 + $0xb8] sm:$0xff] %v344
  %355 = vst [vmem:[#allocation2 + $0xc0] sm:$0xff] %v345
  %356 = vst [vmem:[#allocation2 + $0xc8] sm:$0xff] %v346
  %357 = vst [vmem:[#allocation2 + $0xd0] sm:$0xff] %v347
  %358 = vst [vmem:[#allocation2 + $0xd8] sm:$0xff] %v348
  %359 = vst [vmem:[#allocation2 + $0xe0] sm:$0xff] %v349
  %360 = vst [vmem:[#allocation2 + $0xe8] sm:$0xff] %v350
  %361 = vrot.lane.b32.xlu0 %v23, 1
  %v362 = vpop.permute.xlu0 %361
  %363 = vrot.lane.b32.xlu0 %v24, 1
  %v364 = vpop.permute.xlu0 %363
  %365 = vrot.lane.b32.xlu0 %v25, 1
  %v366 = vpop.permute.xlu0 %365
  %367 = vrot.lane.b32.xlu0 %v26, 1
  %v368 = vpop.permute.xlu0 %367
  %369 = vrot.lane.b32.xlu0 %v27, 1
  %v370 = vpop.permute.xlu0 %369
  %371 = vrot.lane.b32.xlu0 %v28, 1
  %v372 = vpop.permute.xlu0 %371
  %373 = vrot.lane.b32.xlu0 %v29, 1
  %v374 = vpop.permute.xlu0 %373
  %375 = vrot.lane.b32.xlu0 %v30, 1
  %v376 = vpop.permute.xlu0 %375
  %377 = vrot.lane.b32.xlu0 %v31, 1
  %v378 = vpop.permute.xlu0 %377
  %379 = vrot.lane.b32.xlu0 %v32, 1
  %v380 = vpop.permute.xlu0 %379
  %vm381 = vcmp.lt.s32.totalorder %v54, 1
  %v382 = vsel %vm381, %v378, %v380
  %v383 = vsel %vm381, %v376, %v378
  %v384 = vsel %vm381, %v374, %v376
  %v385 = vsel %vm381, %v372, %v374
  %v386 = vsel %vm381, %v370, %v372
  %v387 = vsel %vm381, %v368, %v370
  %v388 = vsel %vm381, %v366, %v368
  %v389 = vsel %vm381, %v364, %v366
  %v390 = vsel %vm381, %v362, %v364
  %v391 = vsel %vm381, %v380, %v362
  %s392 = scalar_lea.vmem %s5, 3
  %v393 = vld [vmem:[%s392] ss:$8 sm:$0xf]
  %v394 = vld [vmem:[%s392] ss:$8 sm:$0xf0]
  %v395 = vor.u32 %v393, %v394
  %s396 = scalar_lea.vmem %s5, 67
  %v397 = vld [vmem:[%s396] ss:$8 sm:$0x3]
  %v400 = vlaneseq
  %v401 = vshrl.u32 %v400, 7
  %v402 = vsub.s32 0, %v401
  %v403 = vrot.slane %v395, %v402
  %v404 = vlaneseq
  %v405 = vshrl.u32 %v404, 7
  %v406 = vsub.s32 1, %v405
  %v407 = vrot.slane %v395, %v406
  %v408 = vlaneseq
  %v409 = vshrl.u32 %v408, 7
  %v410 = vsub.s32 2, %v409
  %v411 = vrot.slane %v395, %v410
  %v412 = vlaneseq
  %v413 = vshrl.u32 %v412, 7
  %v414 = vsub.s32 3, %v413
  %v415 = vrot.slane %v395, %v414
  %v416 = vlaneseq
  %v417 = vshrl.u32 %v416, 7
  %v418 = vsub.s32 4, %v417
  %v419 = vrot.slane %v395, %v418
  %v420 = vlaneseq
  %v421 = vshrl.u32 %v420, 7
  %v422 = vsub.s32 5, %v421
  %v423 = vrot.slane %v395, %v422
  %v424 = vlaneseq
  %v425 = vshrl.u32 %v424, 7
  %v426 = vsub.s32 6, %v425
  %v427 = vrot.slane %v395, %v426
  %v428 = vlaneseq
  %v429 = vshrl.u32 %v428, 7
  %v430 = vsub.s32 7, %v429
  %v431 = vrot.slane %v395, %v430
  %v432 = vlaneseq
  %v433 = vshrl.u32 %v432, 7
  %v434 = vsub.s32 0, %v433
  %v435 = vrot.slane %v397, %v434
  %v436 = vlaneseq
  %v437 = vshrl.u32 %v436, 7
  %v438 = vsub.s32 1, %v437
  %v439 = vrot.slane %v397, %v438
  %v450 = vmul.f32 %v391, %v403
  %v451 = vmul.f32 %v390, %v407
  %v452 = vmul.f32 %v389, %v411
  %v453 = vmul.f32 %v388, %v415
  %v454 = vmul.f32 %v387, %v419
  %v455 = vmul.f32 %v386, %v423
  %v456 = vmul.f32 %v385, %v427
  %v457 = vmul.f32 %v384, %v431
  %v458 = vmul.f32 %v383, %v435
  %v459 = vmul.f32 %v382, %v439
  %460 = vst [vmem:[#allocation2 + $0xf0] sm:$0xff] %v450
  %461 = vst [vmem:[#allocation2 + $0xf8] sm:$0xff] %v451
  %462 = vst [vmem:[#allocation2 + $0x100] sm:$0xff] %v452
  %463 = vst [vmem:[#allocation2 + $0x108] sm:$0xff] %v453
  %464 = vst [vmem:[#allocation2 + $0x110] sm:$0xff] %v454
  %465 = vst [vmem:[#allocation2 + $0x118] sm:$0xff] %v455
  %466 = vst [vmem:[#allocation2 + $0x120] sm:$0xff] %v456
  %467 = vst [vmem:[#allocation2 + $0x128] sm:$0xff] %v457
  %468 = vst [vmem:[#allocation2 + $0x130] sm:$0xff] %v458
  %469 = vst [vmem:[#allocation2 + $0x138] sm:$0xff] %v459
  %470 = vst [vmem:[#allocation2 + $0x140] sm:$0xff] %v23
  %471 = vst [vmem:[#allocation2 + $0x148] sm:$0xff] %v24
  %472 = vst [vmem:[#allocation2 + $0x150] sm:$0xff] %v25
  %473 = vst [vmem:[#allocation2 + $0x158] sm:$0xff] %v26
  %474 = vst [vmem:[#allocation2 + $0x160] sm:$0xff] %v27
  %475 = vst [vmem:[#allocation2 + $0x168] sm:$0xff] %v28
  %476 = vst [vmem:[#allocation2 + $0x170] sm:$0xff] %v29
  %477 = vst [vmem:[#allocation2 + $0x178] sm:$0xff] %v30
  %478 = vst [vmem:[#allocation2 + $0x180] sm:$0xff] %v31
  %479 = vst [vmem:[#allocation2 + $0x188] sm:$0xff] %v32
  %480 = vrot.lane.b32.xlu0 %v23, 127
  %v481 = vpop.permute.xlu0 %480
  %482 = vrot.lane.b32.xlu0 %v24, 127
  %v483 = vpop.permute.xlu0 %482
  %484 = vrot.lane.b32.xlu0 %v25, 127
  %v485 = vpop.permute.xlu0 %484
  %486 = vrot.lane.b32.xlu0 %v26, 127
  %v487 = vpop.permute.xlu0 %486
  %488 = vrot.lane.b32.xlu0 %v27, 127
  %v489 = vpop.permute.xlu0 %488
  %490 = vrot.lane.b32.xlu0 %v28, 127
  %v491 = vpop.permute.xlu0 %490
  %492 = vrot.lane.b32.xlu0 %v29, 127
  %v493 = vpop.permute.xlu0 %492
  %494 = vrot.lane.b32.xlu0 %v30, 127
  %v495 = vpop.permute.xlu0 %494
  %496 = vrot.lane.b32.xlu0 %v31, 127
  %v497 = vpop.permute.xlu0 %496
  %498 = vrot.lane.b32.xlu0 %v32, 127
  %v499 = vpop.permute.xlu0 %498
  %vm500 = vcmp.lt.s32.totalorder %v54, 127
  %v501 = vsel %vm500, %v497, %v499
  %v502 = vsel %vm500, %v495, %v497
  %v503 = vsel %vm500, %v493, %v495
  %v504 = vsel %vm500, %v491, %v493
  %v505 = vsel %vm500, %v489, %v491
  %v506 = vsel %vm500, %v487, %v489
  %v507 = vsel %vm500, %v485, %v487
  %v508 = vsel %vm500, %v483, %v485
  %v509 = vsel %vm500, %v481, %v483
  %v510 = vsel %vm500, %v499, %v481
  %s511 = scalar_lea.vmem %s5, 5
  %v512 = vld [vmem:[%s511] ss:$8 sm:$0xf]
  %v513 = vld [vmem:[%s511] ss:$8 sm:$0xf0]
  %v514 = vor.u32 %v512, %v513
  %s515 = scalar_lea.vmem %s5, 69
  %v516 = vld [vmem:[%s515] ss:$8 sm:$0x3]
  %v519 = vlaneseq
  %v520 = vshrl.u32 %v519, 7
  %v521 = vsub.s32 0, %v520
  %v522 = vrot.slane %v514, %v521
  %v523 = vlaneseq
  %v524 = vshrl.u32 %v523, 7
  %v525 = vsub.s32 1, %v524
  %v526 = vrot.slane %v514, %v525
  %v527 = vlaneseq
  %v528 = vshrl.u32 %v527, 7
  %v529 = vsub.s32 2, %v528
  %v530 = vrot.slane %v514, %v529
  %v531 = vlaneseq
  %v532 = vshrl.u32 %v531, 7
  %v533 = vsub.s32 3, %v532
  %v534 = vrot.slane %v514, %v533
  %v535 = vlaneseq
  %v536 = vshrl.u32 %v535, 7
  %v537 = vsub.s32 4, %v536
  %v538 = vrot.slane %v514, %v537
  %v539 = vlaneseq
  %v540 = vshrl.u32 %v539, 7
  %v541 = vsub.s32 5, %v540
  %v542 = vrot.slane %v514, %v541
  %v543 = vlaneseq
  %v544 = vshrl.u32 %v543, 7
  %v545 = vsub.s32 6, %v544
  %v546 = vrot.slane %v514, %v545
  %v547 = vlaneseq
  %v548 = vshrl.u32 %v547, 7
  %v549 = vsub.s32 7, %v548
  %v550 = vrot.slane %v514, %v549
  %v551 = vlaneseq
  %v552 = vshrl.u32 %v551, 7
  %v553 = vsub.s32 0, %v552
  %v554 = vrot.slane %v516, %v553
  %v555 = vlaneseq
  %v556 = vshrl.u32 %v555, 7
  %v557 = vsub.s32 1, %v556
  %v558 = vrot.slane %v516, %v557
  %v569 = vmul.f32 %v509, %v522
  %v570 = vmul.f32 %v508, %v526
  %v571 = vmul.f32 %v507, %v530
  %v572 = vmul.f32 %v506, %v534
  %v573 = vmul.f32 %v505, %v538
  %v574 = vmul.f32 %v504, %v542
  %v575 = vmul.f32 %v503, %v546
  %v576 = vmul.f32 %v502, %v550
  %v577 = vmul.f32 %v501, %v554
  %v578 = vmul.f32 %v510, %v558
  %579 = vst [vmem:[#allocation2 + $0x190] sm:$0xff] %v569
  %580 = vst [vmem:[#allocation2 + $0x198] sm:$0xff] %v570
  %581 = vst [vmem:[#allocation2 + $0x1a0] sm:$0xff] %v571
  %582 = vst [vmem:[#allocation2 + $0x1a8] sm:$0xff] %v572
  %583 = vst [vmem:[#allocation2 + $0x1b0] sm:$0xff] %v573
  %584 = vst [vmem:[#allocation2 + $0x1b8] sm:$0xff] %v574
  %585 = vst [vmem:[#allocation2 + $0x1c0] sm:$0xff] %v575
  %586 = vst [vmem:[#allocation2 + $0x1c8] sm:$0xff] %v576
  %587 = vst [vmem:[#allocation2 + $0x1d0] sm:$0xff] %v577
  %588 = vst [vmem:[#allocation2 + $0x1d8] sm:$0xff] %v578
  %589 = vrot.lane.b32.xlu0 %v23, 113
  %v590 = vpop.permute.xlu0 %589
  %591 = vrot.lane.b32.xlu0 %v24, 113
  %v592 = vpop.permute.xlu0 %591
  %593 = vrot.lane.b32.xlu0 %v25, 113
  %v594 = vpop.permute.xlu0 %593
  %595 = vrot.lane.b32.xlu0 %v26, 113
  %v596 = vpop.permute.xlu0 %595
  %597 = vrot.lane.b32.xlu0 %v27, 113
  %v598 = vpop.permute.xlu0 %597
  %599 = vrot.lane.b32.xlu0 %v28, 113
  %v600 = vpop.permute.xlu0 %599
  %601 = vrot.lane.b32.xlu0 %v29, 113
  %v602 = vpop.permute.xlu0 %601
  %603 = vrot.lane.b32.xlu0 %v30, 113
  %v604 = vpop.permute.xlu0 %603
  %605 = vrot.lane.b32.xlu0 %v31, 113
  %v606 = vpop.permute.xlu0 %605
  %607 = vrot.lane.b32.xlu0 %v32, 113
  %v608 = vpop.permute.xlu0 %607
  %vm609 = vcmp.lt.s32.totalorder %v54, 113
  %v610 = vsel %vm609, %v606, %v608
  %v611 = vsel %vm609, %v604, %v606
  %v612 = vsel %vm609, %v602, %v604
  %v613 = vsel %vm609, %v600, %v602
  %v614 = vsel %vm609, %v598, %v600
  %v615 = vsel %vm609, %v596, %v598
  %v616 = vsel %vm609, %v594, %v596
  %v617 = vsel %vm609, %v592, %v594
  %v618 = vsel %vm609, %v590, %v592
  %v619 = vsel %vm609, %v608, %v590
  %s620 = scalar_lea.vmem %s5, 6
  %v621 = vld [vmem:[%s620] ss:$8 sm:$0xf]
  %v622 = vld [vmem:[%s620] ss:$8 sm:$0xf0]
  %v623 = vor.u32 %v621, %v622
  %s624 = scalar_lea.vmem %s5, 70
  %v625 = vld [vmem:[%s624] ss:$8 sm:$0x3]
  %v628 = vlaneseq
  %v629 = vshrl.u32 %v628, 7
  %v630 = vsub.s32 0, %v629
  %v631 = vrot.slane %v623, %v630
  %v632 = vlaneseq
  %v633 = vshrl.u32 %v632, 7
  %v634 = vsub.s32 1, %v633
  %v635 = vrot.slane %v623, %v634
  %v636 = vlaneseq
  %v637 = vshrl.u32 %v636, 7
  %v638 = vsub.s32 2, %v637
  %v639 = vrot.slane %v623, %v638
  %v640 = vlaneseq
  %v641 = vshrl.u32 %v640, 7
  %v642 = vsub.s32 3, %v641
  %v643 = vrot.slane %v623, %v642
  %v644 = vlaneseq
  %v645 = vshrl.u32 %v644, 7
  %v646 = vsub.s32 4, %v645
  %v647 = vrot.slane %v623, %v646
  %v648 = vlaneseq
  %v649 = vshrl.u32 %v648, 7
  %v650 = vsub.s32 5, %v649
  %v651 = vrot.slane %v623, %v650
  %v652 = vlaneseq
  %v653 = vshrl.u32 %v652, 7
  %v654 = vsub.s32 6, %v653
  %v655 = vrot.slane %v623, %v654
  %v656 = vlaneseq
  %v657 = vshrl.u32 %v656, 7
  %v658 = vsub.s32 7, %v657
  %v659 = vrot.slane %v623, %v658
  %v660 = vlaneseq
  %v661 = vshrl.u32 %v660, 7
  %v662 = vsub.s32 0, %v661
  %v663 = vrot.slane %v625, %v662
  %v664 = vlaneseq
  %v665 = vshrl.u32 %v664, 7
  %v666 = vsub.s32 1, %v665
  %v667 = vrot.slane %v625, %v666
  %v678 = vmul.f32 %v618, %v631
  %v679 = vmul.f32 %v617, %v635
  %v680 = vmul.f32 %v616, %v639
  %v681 = vmul.f32 %v615, %v643
  %v682 = vmul.f32 %v614, %v647
  %v683 = vmul.f32 %v613, %v651
  %v684 = vmul.f32 %v612, %v655
  %v685 = vmul.f32 %v611, %v659
  %v686 = vmul.f32 %v610, %v663
  %v687 = vmul.f32 %v619, %v667
  %688 = vst [vmem:[#allocation2 + $0x1e0] sm:$0xff] %v678
  %689 = vst [vmem:[#allocation2 + $0x1e8] sm:$0xff] %v679
  %690 = vst [vmem:[#allocation2 + $0x1f0] sm:$0xff] %v680
  %691 = vst [vmem:[#allocation2 + $0x1f8] sm:$0xff] %v681
  %692 = vst [vmem:[#allocation2 + $0x200] sm:$0xff] %v682
  %693 = vst [vmem:[#allocation2 + $0x208] sm:$0xff] %v683
  %694 = vst [vmem:[#allocation2 + $0x210] sm:$0xff] %v684
  %695 = vst [vmem:[#allocation2 + $0x218] sm:$0xff] %v685
  %696 = vst [vmem:[#allocation2 + $0x220] sm:$0xff] %v686
  %697 = vst [vmem:[#allocation2 + $0x228] sm:$0xff] %v687
  %698 = vrot.lane.b32.xlu0 %v23, 112
  %v699 = vpop.permute.xlu0 %698
  %700 = vrot.lane.b32.xlu0 %v24, 112
  %v701 = vpop.permute.xlu0 %700
  %702 = vrot.lane.b32.xlu0 %v25, 112
  %v703 = vpop.permute.xlu0 %702
  %704 = vrot.lane.b32.xlu0 %v26, 112
  %v705 = vpop.permute.xlu0 %704
  %706 = vrot.lane.b32.xlu0 %v27, 112
  %v707 = vpop.permute.xlu0 %706
  %708 = vrot.lane.b32.xlu0 %v28, 112
  %v709 = vpop.permute.xlu0 %708
  %710 = vrot.lane.b32.xlu0 %v29, 112
  %v711 = vpop.permute.xlu0 %710
  %712 = vrot.lane.b32.xlu0 %v30, 112
  %v713 = vpop.permute.xlu0 %712
  %714 = vrot.lane.b32.xlu0 %v31, 112
  %v715 = vpop.permute.xlu0 %714
  %716 = vrot.lane.b32.xlu0 %v32, 112
  %v717 = vpop.permute.xlu0 %716
  %vm718 = vcmp.lt.s32.totalorder %v54, 112
  %v719 = vsel %vm718, %v715, %v717
  %v720 = vsel %vm718, %v713, %v715
  %v721 = vsel %vm718, %v711, %v713
  %v722 = vsel %vm718, %v709, %v711
  %v723 = vsel %vm718, %v707, %v709
  %v724 = vsel %vm718, %v705, %v707
  %v725 = vsel %vm718, %v703, %v705
  %v726 = vsel %vm718, %v701, %v703
  %v727 = vsel %vm718, %v699, %v701
  %v728 = vsel %vm718, %v717, %v699
  %s729 = scalar_lea.vmem %s5, 7
  %v730 = vld [vmem:[%s729] ss:$8 sm:$0xf]
  %v731 = vld [vmem:[%s729] ss:$8 sm:$0xf0]
  %v732 = vor.u32 %v730, %v731
  %s733 = scalar_lea.vmem %s5, 71
  %v734 = vld [vmem:[%s733] ss:$8 sm:$0x3]
  %v737 = vlaneseq
  %v738 = vshrl.u32 %v737, 7
  %v739 = vsub.s32 0, %v738
  %v740 = vrot.slane %v732, %v739
  %v741 = vlaneseq
  %v742 = vshrl.u32 %v741, 7
  %v743 = vsub.s32 1, %v742
  %v744 = vrot.slane %v732, %v743
  %v745 = vlaneseq
  %v746 = vshrl.u32 %v745, 7
  %v747 = vsub.s32 2, %v746
  %v748 = vrot.slane %v732, %v747
  %v749 = vlaneseq
  %v750 = vshrl.u32 %v749, 7
  %v751 = vsub.s32 3, %v750
  %v752 = vrot.slane %v732, %v751
  %v753 = vlaneseq
  %v754 = vshrl.u32 %v753, 7
  %v755 = vsub.s32 4, %v754
  %v756 = vrot.slane %v732, %v755
  %v757 = vlaneseq
  %v758 = vshrl.u32 %v757, 7
  %v759 = vsub.s32 5, %v758
  %v760 = vrot.slane %v732, %v759
  %v761 = vlaneseq
  %v762 = vshrl.u32 %v761, 7
  %v763 = vsub.s32 6, %v762
  %v764 = vrot.slane %v732, %v763
  %v765 = vlaneseq
  %v766 = vshrl.u32 %v765, 7
  %v767 = vsub.s32 7, %v766
  %v768 = vrot.slane %v732, %v767
  %v769 = vlaneseq
  %v770 = vshrl.u32 %v769, 7
  %v771 = vsub.s32 0, %v770
  %v772 = vrot.slane %v734, %v771
  %v773 = vlaneseq
  %v774 = vshrl.u32 %v773, 7
  %v775 = vsub.s32 1, %v774
  %v776 = vrot.slane %v734, %v775
  %v787 = vmul.f32 %v727, %v740
  %v788 = vmul.f32 %v726, %v744
  %v789 = vmul.f32 %v725, %v748
  %v790 = vmul.f32 %v724, %v752
  %v791 = vmul.f32 %v723, %v756
  %v792 = vmul.f32 %v722, %v760
  %v793 = vmul.f32 %v721, %v764
  %v794 = vmul.f32 %v720, %v768
  %v795 = vmul.f32 %v719, %v772
  %v796 = vmul.f32 %v728, %v776
  %797 = vst [vmem:[#allocation2 + $0x230] sm:$0xff] %v787
  %798 = vst [vmem:[#allocation2 + $0x238] sm:$0xff] %v788
  %799 = vst [vmem:[#allocation2 + $0x240] sm:$0xff] %v789
  %800 = vst [vmem:[#allocation2 + $0x248] sm:$0xff] %v790
  %801 = vst [vmem:[#allocation2 + $0x250] sm:$0xff] %v791
  %802 = vst [vmem:[#allocation2 + $0x258] sm:$0xff] %v792
  %803 = vst [vmem:[#allocation2 + $0x260] sm:$0xff] %v793
  %804 = vst [vmem:[#allocation2 + $0x268] sm:$0xff] %v794
  %805 = vst [vmem:[#allocation2 + $0x270] sm:$0xff] %v795
  %806 = vst [vmem:[#allocation2 + $0x278] sm:$0xff] %v796
  %807 = vrot.lane.b32.xlu0 %v23, 111
  %v808 = vpop.permute.xlu0 %807
  %809 = vrot.lane.b32.xlu0 %v24, 111
  %v810 = vpop.permute.xlu0 %809
  %811 = vrot.lane.b32.xlu0 %v25, 111
  %v812 = vpop.permute.xlu0 %811
  %813 = vrot.lane.b32.xlu0 %v26, 111
  %v814 = vpop.permute.xlu0 %813
  %815 = vrot.lane.b32.xlu0 %v27, 111
  %v816 = vpop.permute.xlu0 %815
  %817 = vrot.lane.b32.xlu0 %v28, 111
  %v818 = vpop.permute.xlu0 %817
  %819 = vrot.lane.b32.xlu0 %v29, 111
  %v820 = vpop.permute.xlu0 %819
  %821 = vrot.lane.b32.xlu0 %v30, 111
  %v822 = vpop.permute.xlu0 %821
  %823 = vrot.lane.b32.xlu0 %v31, 111
  %v824 = vpop.permute.xlu0 %823
  %825 = vrot.lane.b32.xlu0 %v32, 111
  %v826 = vpop.permute.xlu0 %825
  %vm827 = vcmp.lt.s32.totalorder %v54, 111
  %v828 = vsel %vm827, %v824, %v826
  %v829 = vsel %vm827, %v822, %v824
  %v830 = vsel %vm827, %v820, %v822
  %v831 = vsel %vm827, %v818, %v820
  %v832 = vsel %vm827, %v816, %v818
  %v833 = vsel %vm827, %v814, %v816
  %v834 = vsel %vm827, %v812, %v814
  %v835 = vsel %vm827, %v810, %v812
  %v836 = vsel %vm827, %v808, %v810
  %v837 = vsel %vm827, %v826, %v808
  %s838 = scalar_lea.vmem %s5, 80
  %v839 = vld [vmem:[%s838] ss:$8 sm:$0xf]
  %v840 = vld [vmem:[%s838] ss:$8 sm:$0xf0]
  %v841 = vor.u32 %v839, %v840
  %s842 = scalar_lea.vmem %s5, 144
  %v843 = vld [vmem:[%s842] ss:$8 sm:$0x3]
  %v846 = vlaneseq
  %v847 = vshrl.u32 %v846, 7
  %v848 = vsub.s32 0, %v847
  %v849 = vrot.slane %v841, %v848
  %v850 = vlaneseq
  %v851 = vshrl.u32 %v850, 7
  %v852 = vsub.s32 1, %v851
  %v853 = vrot.slane %v841, %v852
  %v854 = vlaneseq
  %v855 = vshrl.u32 %v854, 7
  %v856 = vsub.s32 2, %v855
  %v857 = vrot.slane %v841, %v856
  %v858 = vlaneseq
  %v859 = vshrl.u32 %v858, 7
  %v860 = vsub.s32 3, %v859
  %v861 = vrot.slane %v841, %v860
  %v862 = vlaneseq
  %v863 = vshrl.u32 %v862, 7
  %v864 = vsub.s32 4, %v863
  %v865 = vrot.slane %v841, %v864
  %v866 = vlaneseq
  %v867 = vshrl.u32 %v866, 7
  %v868 = vsub.s32 5, %v867
  %v869 = vrot.slane %v841, %v868
  %v870 = vlaneseq
  %v871 = vshrl.u32 %v870, 7
  %v872 = vsub.s32 6, %v871
  %v873 = vrot.slane %v841, %v872
  %v874 = vlaneseq
  %v875 = vshrl.u32 %v874, 7
  %v876 = vsub.s32 7, %v875
  %v877 = vrot.slane %v841, %v876
  %v878 = vlaneseq
  %v879 = vshrl.u32 %v878, 7
  %v880 = vsub.s32 0, %v879
  %v881 = vrot.slane %v843, %v880
  %v882 = vlaneseq
  %v883 = vshrl.u32 %v882, 7
  %v884 = vsub.s32 1, %v883
  %v885 = vrot.slane %v843, %v884
  %v896 = vmul.f32 %v836, %v849
  %v897 = vmul.f32 %v835, %v853
  %v898 = vmul.f32 %v834, %v857
  %v899 = vmul.f32 %v833, %v861
  %v900 = vmul.f32 %v832, %v865
  %v901 = vmul.f32 %v831, %v869
  %v902 = vmul.f32 %v830, %v873
  %v903 = vmul.f32 %v829, %v877
  %v904 = vmul.f32 %v828, %v881
  %v905 = vmul.f32 %v837, %v885
  %906 = vst [vmem:[#allocation2 + $0x280] sm:$0xff] %v896
  %907 = vst [vmem:[#allocation2 + $0x288] sm:$0xff] %v897
  %908 = vst [vmem:[#allocation2 + $0x290] sm:$0xff] %v898
  %909 = vst [vmem:[#allocation2 + $0x298] sm:$0xff] %v899
  %910 = vst [vmem:[#allocation2 + $0x2a0] sm:$0xff] %v900
  %911 = vst [vmem:[#allocation2 + $0x2a8] sm:$0xff] %v901
  %912 = vst [vmem:[#allocation2 + $0x2b0] sm:$0xff] %v902
  %913 = vst [vmem:[#allocation2 + $0x2b8] sm:$0xff] %v903
  %914 = vst [vmem:[#allocation2 + $0x2c0] sm:$0xff] %v904
  %915 = vst [vmem:[#allocation2 + $0x2c8] sm:$0xff] %v905
  %v916 = vld [vmem:[%s3] sm:$0xff]
  %v917 = vld [vmem:[%s3 + $0x8] sm:$0xff]
  %v918 = vld [vmem:[%s3 + $0x10] sm:$0xff]
  %v919 = vld [vmem:[%s3 + $0x18] sm:$0xff]
  %921 = vset.pattern.permute.xlu0 0
  %922 = vperm.xlu0 %921, %v916
  %v923 = vpop.permute.xlu0 %922
  %926 = vset.pattern.permute.xlu0 0
  %927 = vperm.xlu0 %926, %v917
  %v928 = vpop.permute.xlu0 %927
  %931 = vset.pattern.permute.xlu0 0
  %932 = vperm.xlu0 %931, %v918
  %v933 = vpop.permute.xlu0 %932
  %936 = vset.pattern.permute.xlu0 0
  %937 = vperm.xlu0 %936, %v919
  %v938 = vpop.permute.xlu0 %937
  %v940 = vld [vmem:[%s1] sm:$0xff]
  %v941 = vld [vmem:[%s1 + $0x8] sm:$0xff]
  %v942 = vld [vmem:[%s1 + $0x10] sm:$0xff]
  %v943 = vld [vmem:[%s1 + $0x18] sm:$0xff]
  %v944 = vld [vmem:[#allocation2] sm:$0xff]
  %v945 = vld [vmem:[#allocation2 + $0x8] sm:$0xff]
  %v946 = vld [vmem:[#allocation2 + $0x10] sm:$0xff]
  %v947 = vld [vmem:[#allocation2 + $0x18] sm:$0xff]
  %v948 = vld [vmem:[#allocation2 + $0x20] sm:$0xff]
  %v949 = vld [vmem:[#allocation2 + $0x28] sm:$0xff]
  %v950 = vld [vmem:[#allocation2 + $0x30] sm:$0xff]
  %v951 = vld [vmem:[#allocation2 + $0x38] sm:$0xff]
  %v952 = vld [vmem:[#allocation2 + $0x40] sm:$0xff]
  %v953 = vld [vmem:[#allocation2 + $0x48] sm:$0xff]
  %v954 = vld [vmem:[#allocation2 + $0x50] sm:$0xff]
  %v955 = vld [vmem:[#allocation2 + $0x58] sm:$0xff]
  %v956 = vld [vmem:[#allocation2 + $0x60] sm:$0xff]
  %v957 = vld [vmem:[#allocation2 + $0x68] sm:$0xff]
  %v958 = vld [vmem:[#allocation2 + $0x70] sm:$0xff]
  %v959 = vld [vmem:[#allocation2 + $0x78] sm:$0xff]
  %v960 = vld [vmem:[#allocation2 + $0x80] sm:$0xff]
  %v961 = vld [vmem:[#allocation2 + $0x88] sm:$0xff]
  %v962 = vld [vmem:[#allocation2 + $0x90] sm:$0xff]
  %v963 = vld [vmem:[#allocation2 + $0x98] sm:$0xff]
  %v964 = vld [vmem:[#allocation2 + $0xa0] sm:$0xff]
  %v965 = vld [vmem:[#allocation2 + $0xa8] sm:$0xff]
  %v966 = vld [vmem:[#allocation2 + $0xb0] sm:$0xff]
  %v967 = vld [vmem:[#allocation2 + $0xb8] sm:$0xff]
  %v968 = vld [vmem:[#allocation2 + $0xc0] sm:$0xff]
  %v969 = vld [vmem:[#allocation2 + $0xc8] sm:$0xff]
  %v970 = vld [vmem:[#allocation2 + $0xd0] sm:$0xff]
  %v971 = vld [vmem:[#allocation2 + $0xd8] sm:$0xff]
  %v972 = vld [vmem:[#allocation2 + $0xe0] sm:$0xff]
  %v973 = vld [vmem:[#allocation2 + $0xe8] sm:$0xff]
  %v974 = vld [vmem:[#allocation2 + $0xf0] sm:$0xff]
  %v975 = vld [vmem:[#allocation2 + $0xf8] sm:$0xff]
  %v976 = vld [vmem:[#allocation2 + $0x100] sm:$0xff]
  %v977 = vld [vmem:[#allocation2 + $0x108] sm:$0xff]
  %v978 = vld [vmem:[#allocation2 + $0x110] sm:$0xff]
  %v979 = vld [vmem:[#allocation2 + $0x118] sm:$0xff]
  %v980 = vld [vmem:[#allocation2 + $0x120] sm:$0xff]
  %v981 = vld [vmem:[#allocation2 + $0x128] sm:$0xff]
  %v982 = vld [vmem:[#allocation2 + $0x130] sm:$0xff]
  %v983 = vld [vmem:[#allocation2 + $0x138] sm:$0xff]
  %v984 = vld [vmem:[#allocation2 + $0x140] sm:$0xff]
  %v985 = vld [vmem:[#allocation2 + $0x148] sm:$0xff]
  %v986 = vld [vmem:[#allocation2 + $0x150] sm:$0xff]
  %v987 = vld [vmem:[#allocation2 + $0x158] sm:$0xff]
  %v988 = vld [vmem:[#allocation2 + $0x160] sm:$0xff]
  %v989 = vld [vmem:[#allocation2 + $0x168] sm:$0xff]
  %v990 = vld [vmem:[#allocation2 + $0x170] sm:$0xff]
  %v991 = vld [vmem:[#allocation2 + $0x178] sm:$0xff]
  %v992 = vld [vmem:[#allocation2 + $0x180] sm:$0xff]
  %v993 = vld [vmem:[#allocation2 + $0x188] sm:$0xff]
  %v994 = vld [vmem:[#allocation2 + $0x190] sm:$0xff]
  %v995 = vld [vmem:[#allocation2 + $0x198] sm:$0xff]
  %v996 = vld [vmem:[#allocation2 + $0x1a0] sm:$0xff]
  %v997 = vld [vmem:[#allocation2 + $0x1a8] sm:$0xff]
  %v998 = vld [vmem:[#allocation2 + $0x1b0] sm:$0xff]
  %v999 = vld [vmem:[#allocation2 + $0x1b8] sm:$0xff]
  %v1000 = vld [vmem:[#allocation2 + $0x1c0] sm:$0xff]
  %v1001 = vld [vmem:[#allocation2 + $0x1c8] sm:$0xff]
  %v1002 = vld [vmem:[#allocation2 + $0x1d0] sm:$0xff]
  %v1003 = vld [vmem:[#allocation2 + $0x1d8] sm:$0xff]
  %v1004 = vld [vmem:[#allocation2 + $0x1e0] sm:$0xff]
  %v1005 = vld [vmem:[#allocation2 + $0x1e8] sm:$0xff]
  %v1006 = vld [vmem:[#allocation2 + $0x1f0] sm:$0xff]
  %v1007 = vld [vmem:[#allocation2 + $0x1f8] sm:$0xff]
  %v1008 = vld [vmem:[#allocation2 + $0x200] sm:$0xff]
  %v1009 = vld [vmem:[#allocation2 + $0x208] sm:$0xff]
  %v1010 = vld [vmem:[#allocation2 + $0x210] sm:$0xff]
  %v1011 = vld [vmem:[#allocation2 + $0x218] sm:$0xff]
  %v1012 = vld [vmem:[#allocation2 + $0x220] sm:$0xff]
  %v1013 = vld [vmem:[#allocation2 + $0x228] sm:$0xff]
  %v1014 = vld [vmem:[#allocation2 + $0x230] sm:$0xff]
  %v1015 = vld [vmem:[#allocation2 + $0x238] sm:$0xff]
  %v1016 = vld [vmem:[#allocation2 + $0x240] sm:$0xff]
  %v1017 = vld [vmem:[#allocation2 + $0x248] sm:$0xff]
  %v1018 = vld [vmem:[#allocation2 + $0x250] sm:$0xff]
  %v1019 = vld [vmem:[#allocation2 + $0x258] sm:$0xff]
  %v1020 = vld [vmem:[#allocation2 + $0x260] sm:$0xff]
  %v1021 = vld [vmem:[#allocation2 + $0x268] sm:$0xff]
  %v1022 = vld [vmem:[#allocation2 + $0x270] sm:$0xff]
  %v1023 = vld [vmem:[#allocation2 + $0x278] sm:$0xff]
  %v1024 = vld [vmem:[#allocation2 + $0x280] sm:$0xff]
  %v1025 = vld [vmem:[#allocation2 + $0x288] sm:$0xff]
  %v1026 = vld [vmem:[#allocation2 + $0x290] sm:$0xff]
  %v1027 = vld [vmem:[#allocation2 + $0x298] sm:$0xff]
  %v1028 = vld [vmem:[#allocation2 + $0x2a0] sm:$0xff]
  %v1029 = vld [vmem:[#allocation2 + $0x2a8] sm:$0xff]
  %v1030 = vld [vmem:[#allocation2 + $0x2b0] sm:$0xff]
  %v1031 = vld [vmem:[#allocation2 + $0x2b8] sm:$0xff]
  %v1032 = vld [vmem:[#allocation2 + $0x2c0] sm:$0xff]
  %v1033 = vld [vmem:[#allocation2 + $0x2c8] sm:$0xff]
  %vm1034 = vcmask 588800
  %v1036 = vsel %vm1034, %v940, 0
  %v1039 = vsel %vm1034, %v941, 0
  %v1042 = vsel %vm1034, %v942, 0
  %v1045 = vsel %vm1034, %v943, 0
  %1047 = vmatprep.subr.mxu0 %v945
  %1048 = vmatpush1.msra.mxu0 %v944
  %1049 = vmatprep.subr.mxu0 %v955
  %1050 = vmatpush1.msra.mxu0 %v954
  %1051 = vmatprep.subr.mxu0 %v965
  %1052 = vmatpush1.msra.mxu0 %v964
  %1053 = vmatprep.subr.mxu0 %v975
  %1054 = vmatpush1.msra.mxu0 %v974
  %1055 = vmatprep.subr.mxu0 %v985
  %1056 = vmatpush1.msra.mxu0 %v984
  %1057 = vmatprep.subr.mxu0 %v995
  %1058 = vmatpush1.msra.mxu0 %v994
  %1059 = vmatprep.subr.mxu0 %v1005
  %1060 = vmatpush1.msra.mxu0 %v1004
  %1061 = vmatprep.subr.mxu0 %v1015
  %1062 = vmatpush1.msra.mxu0 %v1014
  %1063 = vmatprep.subr.mxu0 %v1025
  %1064 = vmatpush1.msra.mxu0 %v1024
  %1065 = vmatprep.subr.mxu0 0.0
  %1066 = vmatpush1.msra.mxu0 0.0
  %1067 = vmatprep.subr.mxu0 0.0
  %1068 = vmatpush1.msra.mxu0 0.0
  %1069 = vmatprep.subr.mxu0 0.0
  %1070 = vmatpush1.msra.mxu0 0.0
  %1071 = vmatprep.subr.mxu0 0.0
  %1072 = vmatpush1.msra.mxu0 0.0
  %1073 = vmatprep.subr.mxu0 0.0
  %1074 = vmatpush1.msra.mxu0 0.0
  %1075 = vmatprep.subr.mxu0 0.0
  %1076 = vmatpush1.msra.mxu0 0.0
  %1077 = vmatprep.subr.mxu0 0.0
  %1078 = vmatpush1.msra.mxu0 0.0
  %1079 = vmatprep.subr.mxu0 0.0
  %1080 = vmatpush1.msra.mxu0 0.0
  %1081 = vmatprep.subr.mxu0 0.0
  %1082 = vmatpush1.msra.mxu0 0.0
  %1083 = vmatprep.subr.mxu0 0.0
  %1084 = vmatpush1.msra.mxu0 0.0
  %1085 = vmatprep.subr.mxu0 0.0
  %1086 = vmatpush1.msra.mxu0 0.0
  %1087 = vmatprep.subr.mxu0 0.0
  %1088 = vmatpush1.msra.mxu0 0.0
  %1089 = vmatprep.subr.mxu0 0.0
  %1090 = vmatpush1.msra.mxu0 0.0
  %1091 = vmatprep.subr.mxu0 0.0
  %1092 = vmatpush1.msra.mxu0 0.0
  %1093 = vmatprep.subr.mxu0 0.0
  %1094 = vmatpush1.msra.mxu0 0.0
  %1095 = vmatprep.subr.mxu0 0.0
  %1096 = vmatpush1.msra.mxu0 0.0
  %1097 = vmatprep.subr.mxu0 0.0
  %1098 = vmatpush1.msra.mxu0 0.0
  %1099 = vmatprep.subr.mxu0 0.0
  %1100 = vmatpush1.msra.mxu0 0.0
  %1101 = vmatprep.subr.mxu0 0.0
  %1102 = vmatpush1.msra.mxu0 0.0
  %1103 = vmatprep.subr.mxu0 0.0
  %1104 = vmatpush1.msra.mxu0 0.0
  %1105 = vmatprep.subr.mxu0 0.0
  %1106 = vmatpush1.msra.mxu0 0.0
  %1107 = vmatprep.subr.mxu0 0.0
  %1108 = vmatpush1.msra.mxu0 0.0
  %1109 = vmatprep.subr.mxu0 0.0
  %1110 = vmatpush1.msra.mxu0 0.0
  %1111 = vmatprep.mubr.f32.mxu0 0.0
  %1112 = vmatmul.mubr.f32.gmra.mrb[0].mxu0 %v1036
  %v1113 = vpop.f32.mrb[0].mxu0
  %v1114 = vadd.f32 %v923, %v1113
  %v1115 = vpop.f32.mrb[0].mxu0
  %v1116 = vadd.f32 %v923, %v1115
  %1117 = vmatprep.mubr.f32.mxu0 0.0
  %1118 = vmatmul.mubr.f32.gmra.mrb[0].mxu0 %v1039
  %v1119 = vpop.f32.mrb[0].mxu0
  %v1120 = vadd.f32 %v928, %v1119
  %v1121 = vpop.f32.mrb[0].mxu0
  %v1122 = vadd.f32 %v928, %v1121
  %1123 = vmatprep.mubr.f32.mxu0 0.0
  %1124 = vmatmul.mubr.f32.gmra.mrb[0].mxu0 %v1042
  %v1125 = vpop.f32.mrb[0].mxu0
  %v1126 = vadd.f32 %v933, %v1125
  %v1127 = vpop.f32.mrb[0].mxu0
  %v1128 = vadd.f32 %v933, %v1127
  %1129 = vmatprep.mubr.f32.mxu0 0.0
  %1130 = vmatmul.mubr.f32.gmra.mrb[0].mxu0 %v1045
  %v1131 = vpop.f32.mrb[0].mxu0
  %v1132 = vadd.f32 %v938, %v1131
  %v1133 = vpop.f32.mrb[0].mxu0
  %v1134 = vadd.f32 %v938, %v1133
  %1135 = vdwg.mxu0
  %1136 = vmatprep.subr.mxu0 %v947
  %1137 = vmatpush1.msra.mxu0 %v946
  %1138 = vmatprep.subr.mxu0 %v957
  %1139 = vmatpush1.msra.mxu0 %v956
  %1140 = vmatprep.subr.mxu0 %v967
  %1141 = vmatpush1.msra.mxu0 %v966
  %1142 = vmatprep.subr.mxu0 %v977
  %1143 = vmatpush1.msra.mxu0 %v976
  %1144 = vmatprep.subr.mxu0 %v987
  %1145 = vmatpush1.msra.mxu0 %v986
  %1146 = vmatprep.subr.mxu0 %v997
  %1147 = vmatpush1.msra.mxu0 %v996
  %1148 = vmatprep.subr.mxu0 %v1007
  %1149 = vmatpush1.msra.mxu0 %v1006
  %1150 = vmatprep.subr.mxu0 %v1017
  %1151 = vmatpush1.msra.mxu0 %v1016
  %1152 = vmatprep.subr.mxu0 %v1027
  %1153 = vmatpush1.msra.mxu0 %v1026
  %1154 = vmatprep.subr.mxu0 0.0
  %1155 = vmatpush1.msra.mxu0 0.0
  %1156 = vmatprep.subr.mxu0 0.0
  %1157 = vmatpush1.msra.mxu0 0.0
  %1158 = vmatprep.subr.mxu0 0.0
  %1159 = vmatpush1.msra.mxu0 0.0
  %1160 = vmatprep.subr.mxu0 0.0
  %1161 = vmatpush1.msra.mxu0 0.0
  %1162 = vmatprep.subr.mxu0 0.0
  %1163 = vmatpush1.msra.mxu0 0.0
  %1164 = vmatprep.subr.mxu0 0.0
  %1165 = vmatpush1.msra.mxu0 0.0
  %1166 = vmatprep.subr.mxu0 0.0
  %1167 = vmatpush1.msra.mxu0 0.0
  %1168 = vmatprep.subr.mxu0 0.0
  %1169 = vmatpush1.msra.mxu0 0.0
  %1170 = vmatprep.subr.mxu0 0.0
  %1171 = vmatpush1.msra.mxu0 0.0
  %1172 = vmatprep.subr.mxu0 0.0
  %1173 = vmatpush1.msra.mxu0 0.0
  %1174 = vmatprep.subr.mxu0 0.0
  %1175 = vmatpush1.msra.mxu0 0.0
  %1176 = vmatprep.subr.mxu0 0.0
  %1177 = vmatpush1.msra.mxu0 0.0
  %1178 = vmatprep.subr.mxu0 0.0
  %1179 = vmatpush1.msra.mxu0 0.0
  %1180 = vmatprep.subr.mxu0 0.0
  %1181 = vmatpush1.msra.mxu0 0.0
  %1182 = vmatprep.subr.mxu0 0.0
  %1183 = vmatpush1.msra.mxu0 0.0
  %1184 = vmatprep.subr.mxu0 0.0
  %1185 = vmatpush1.msra.mxu0 0.0
  %1186 = vmatprep.subr.mxu0 0.0
  %1187 = vmatpush1.msra.mxu0 0.0
  %1188 = vmatprep.subr.mxu0 0.0
  %1189 = vmatpush1.msra.mxu0 0.0
  %1190 = vmatprep.subr.mxu0 0.0
  %1191 = vmatpush1.msra.mxu0 0.0
  %1192 = vmatprep.subr.mxu0 0.0
  %1193 = vmatpush1.msra.mxu0 0.0
  %1194 = vmatprep.subr.mxu0 0.0
  %1195 = vmatpush1.msra.mxu0 0.0
  %1196 = vmatprep.subr.mxu0 0.0
  %1197 = vmatpush1.msra.mxu0 0.0
  %1198 = vmatprep.subr.mxu0 0.0
  %1199 = vmatpush1.msra.mxu0 0.0
  %1200 = vmatprep.mubr.f32.mxu0 0.0
  %1201 = vmatmul.mubr.f32.gmra.mrb[0].mxu0 %v1036
  %v1202 = vpop.f32.mrb[0].mxu0
  %v1203 = vadd.f32 %v923, %v1202
  %v1204 = vpop.f32.mrb[0].mxu0
  %v1205 = vadd.f32 %v923, %v1204
  %1206 = vmatprep.mubr.f32.mxu0 0.0
  %1207 = vmatmul.mubr.f32.gmra.mrb[0].mxu0 %v1039
  %v1208 = vpop.f32.mrb[0].mxu0
  %v1209 = vadd.f32 %v928, %v1208
  %v1210 = vpop.f32.mrb[0].mxu0
  %v1211 = vadd.f32 %v928, %v1210
  %1212 = vmatprep.mubr.f32.mxu0 0.0
  %1213 = vmatmul.mubr.f32.gmra.mrb[0].mxu0 %v1042
  %v1214 = vpop.f32.mrb[0].mxu0
  %v1215 = vadd.f32 %v933, %v1214
  %v1216 = vpop.f32.mrb[0].mxu0
  %v1217 = vadd.f32 %v933, %v1216
  %1218 = vmatprep.mubr.f32.mxu0 0.0
  %1219 = vmatmul.mubr.f32.gmra.mrb[0].mxu0 %v1045
  %v1220 = vpop.f32.mrb[0].mxu0
  %v1221 = vadd.f32 %v938, %v1220
  %v1222 = vpop.f32.mrb[0].mxu0
  %v1223 = vadd.f32 %v938, %v1222
  %1224 = vdwg.mxu0
  %1225 = vmatprep.subr.mxu0 %v949
  %1226 = vmatpush1.msra.mxu0 %v948
  %1227 = vmatprep.subr.mxu0 %v959
  %1228 = vmatpush1.msra.mxu0 %v958
  %1229 = vmatprep.subr.mxu0 %v969
  %1230 = vmatpush1.msra.mxu0 %v968
  %1231 = vmatprep.subr.mxu0 %v979
  %1232 = vmatpush1.msra.mxu0 %v978
  %1233 = vmatprep.subr.mxu0 %v989
  %1234 = vmatpush1.msra.mxu0 %v988
  %1235 = vmatprep.subr.mxu0 %v999
  %1236 = vmatpush1.msra.mxu0 %v998
  %1237 = vmatprep.subr.mxu0 %v1009
  %1238 = vmatpush1.msra.mxu0 %v1008
  %1239 = vmatprep.subr.mxu0 %v1019
  %1240 = vmatpush1.msra.mxu0 %v1018
  %1241 = vmatprep.subr.mxu0 %v1029
  %1242 = vmatpush1.msra.mxu0 %v1028
  %1243 = vmatprep.subr.mxu0 0.0
  %1244 = vmatpush1.msra.mxu0 0.0
  %1245 = vmatprep.subr.mxu0 0.0
  %1246 = vmatpush1.msra.mxu0 0.0
  %1247 = vmatprep.subr.mxu0 0.0
  %1248 = vmatpush1.msra.mxu0 0.0
  %1249 = vmatprep.subr.mxu0 0.0
  %1250 = vmatpush1.msra.mxu0 0.0
  %1251 = vmatprep.subr.mxu0 0.0
  %1252 = vmatpush1.msra.mxu0 0.0
  %1253 = vmatprep.subr.mxu0 0.0
  %1254 = vmatpush1.msra.mxu0 0.0
  %1255 = vmatprep.subr.mxu0 0.0
  %1256 = vmatpush1.msra.mxu0 0.0
  %1257 = vmatprep.subr.mxu0 0.0
  %1258 = vmatpush1.msra.mxu0 0.0
  %1259 = vmatprep.subr.mxu0 0.0
  %1260 = vmatpush1.msra.mxu0 0.0
  %1261 = vmatprep.subr.mxu0 0.0
  %1262 = vmatpush1.msra.mxu0 0.0
  %1263 = vmatprep.subr.mxu0 0.0
  %1264 = vmatpush1.msra.mxu0 0.0
  %1265 = vmatprep.subr.mxu0 0.0
  %1266 = vmatpush1.msra.mxu0 0.0
  %1267 = vmatprep.subr.mxu0 0.0
  %1268 = vmatpush1.msra.mxu0 0.0
  %1269 = vmatprep.subr.mxu0 0.0
  %1270 = vmatpush1.msra.mxu0 0.0
  %1271 = vmatprep.subr.mxu0 0.0
  %1272 = vmatpush1.msra.mxu0 0.0
  %1273 = vmatprep.subr.mxu0 0.0
  %1274 = vmatpush1.msra.mxu0 0.0
  %1275 = vmatprep.subr.mxu0 0.0
  %1276 = vmatpush1.msra.mxu0 0.0
  %1277 = vmatprep.subr.mxu0 0.0
  %1278 = vmatpush1.msra.mxu0 0.0
  %1279 = vmatprep.subr.mxu0 0.0
  %1280 = vmatpush1.msra.mxu0 0.0
  %1281 = vmatprep.subr.mxu0 0.0
  %1282 = vmatpush1.msra.mxu0 0.0
  %1283 = vmatprep.subr.mxu0 0.0
  %1284 = vmatpush1.msra.mxu0 0.0
  %1285 = vmatprep.subr.mxu0 0.0
  %1286 = vmatpush1.msra.mxu0 0.0
  %1287 = vmatprep.subr.mxu0 0.0
  %1288 = vmatpush1.msra.mxu0 0.0
  %1289 = vmatprep.mubr.f32.mxu0 0.0
  %1290 = vmatmul.mubr.f32.gmra.mrb[0].mxu0 %v1036
  %v1291 = vpop.f32.mrb[0].mxu0
  %v1292 = vadd.f32 %v923, %v1291
  %v1293 = vpop.f32.mrb[0].mxu0
  %v1294 = vadd.f32 %v923, %v1293
  %1295 = vmatprep.mubr.f32.mxu0 0.0
  %1296 = vmatmul.mubr.f32.gmra.mrb[0].mxu0 %v1039
  %v1297 = vpop.f32.mrb[0].mxu0
  %v1298 = vadd.f32 %v928, %v1297
  %v1299 = vpop.f32.mrb[0].mxu0
  %v1300 = vadd.f32 %v928, %v1299
  %1301 = vmatprep.mubr.f32.mxu0 0.0
  %1302 = vmatmul.mubr.f32.gmra.mrb[0].mxu0 %v1042
  %v1303 = vpop.f32.mrb[0].mxu0
  %v1304 = vadd.f32 %v933, %v1303
  %v1305 = vpop.f32.mrb[0].mxu0
  %v1306 = vadd.f32 %v933, %v1305
  %1307 = vmatprep.mubr.f32.mxu0 0.0
  %1308 = vmatmul.mubr.f32.gmra.mrb[0].mxu0 %v1045
  %v1309 = vpop.f32.mrb[0].mxu0
  %v1310 = vadd.f32 %v938, %v1309
  %v1311 = vpop.f32.mrb[0].mxu0
  %v1312 = vadd.f32 %v938, %v1311
  %1313 = vdwg.mxu0
  %1314 = vmatprep.subr.mxu0 %v951
  %1315 = vmatpush1.msra.mxu0 %v950
  %1316 = vmatprep.subr.mxu0 %v961
  %1317 = vmatpush1.msra.mxu0 %v960
  %1318 = vmatprep.subr.mxu0 %v971
  %1319 = vmatpush1.msra.mxu0 %v970
  %1320 = vmatprep.subr.mxu0 %v981
  %1321 = vmatpush1.msra.mxu0 %v980
  %1322 = vmatprep.subr.mxu0 %v991
  %1323 = vmatpush1.msra.mxu0 %v990
  %1324 = vmatprep.subr.mxu0 %v1001
  %1325 = vmatpush1.msra.mxu0 %v1000
  %1326 = vmatprep.subr.mxu0 %v1011
  %1327 = vmatpush1.msra.mxu0 %v1010
  %1328 = vmatprep.subr.mxu0 %v1021
  %1329 = vmatpush1.msra.mxu0 %v1020
  %1330 = vmatprep.subr.mxu0 %v1031
  %1331 = vmatpush1.msra.mxu0 %v1030
  %1332 = vmatprep.subr.mxu0 0.0
  %1333 = vmatpush1.msra.mxu0 0.0
  %1334 = vmatprep.subr.mxu0 0.0
  %1335 = vmatpush1.msra.mxu0 0.0
  %1336 = vmatprep.subr.mxu0 0.0
  %1337 = vmatpush1.msra.mxu0 0.0
  %1338 = vmatprep.subr.mxu0 0.0
  %1339 = vmatpush1.msra.mxu0 0.0
  %1340 = vmatprep.subr.mxu0 0.0
  %1341 = vmatpush1.msra.mxu0 0.0
  %1342 = vmatprep.subr.mxu0 0.0
  %1343 = vmatpush1.msra.mxu0 0.0
  %1344 = vmatprep.subr.mxu0 0.0
  %1345 = vmatpush1.msra.mxu0 0.0
  %1346 = vmatprep.subr.mxu0 0.0
  %1347 = vmatpush1.msra.mxu0 0.0
  %1348 = vmatprep.subr.mxu0 0.0
  %1349 = vmatpush1.msra.mxu0 0.0
  %1350 = vmatprep.subr.mxu0 0.0
  %1351 = vmatpush1.msra.mxu0 0.0
  %1352 = vmatprep.subr.mxu0 0.0
  %1353 = vmatpush1.msra.mxu0 0.0
  %1354 = vmatprep.subr.mxu0 0.0
  %1355 = vmatpush1.msra.mxu0 0.0
  %1356 = vmatprep.subr.mxu0 0.0
  %1357 = vmatpush1.msra.mxu0 0.0
  %1358 = vmatprep.subr.mxu0 0.0
  %1359 = vmatpush1.msra.mxu0 0.0
  %1360 = vmatprep.subr.mxu0 0.0
  %1361 = vmatpush1.msra.mxu0 0.0
  %1362 = vmatprep.subr.mxu0 0.0
  %1363 = vmatpush1.msra.mxu0 0.0
  %1364 = vmatprep.subr.mxu0 0.0
  %1365 = vmatpush1.msra.mxu0 0.0
  %1366 = vmatprep.subr.mxu0 0.0
  %1367 = vmatpush1.msra.mxu0 0.0
  %1368 = vmatprep.subr.mxu0 0.0
  %1369 = vmatpush1.msra.mxu0 0.0
  %1370 = vmatprep.subr.mxu0 0.0
  %1371 = vmatpush1.msra.mxu0 0.0
  %1372 = vmatprep.subr.mxu0 0.0
  %1373 = vmatpush1.msra.mxu0 0.0
  %1374 = vmatprep.subr.mxu0 0.0
  %1375 = vmatpush1.msra.mxu0 0.0
  %1376 = vmatprep.subr.mxu0 0.0
  %1377 = vmatpush1.msra.mxu0 0.0
  %1378 = vmatprep.mubr.f32.mxu0 0.0
  %1379 = vmatmul.mubr.f32.gmra.mrb[0].mxu0 %v1036
  %v1380 = vpop.f32.mrb[0].mxu0
  %v1381 = vadd.f32 %v923, %v1380
  %v1382 = vpop.f32.mrb[0].mxu0
  %v1383 = vadd.f32 %v923, %v1382
  %1384 = vmatprep.mubr.f32.mxu0 0.0
  %1385 = vmatmul.mubr.f32.gmra.mrb[0].mxu0 %v1039
  %v1386 = vpop.f32.mrb[0].mxu0
  %v1387 = vadd.f32 %v928, %v1386
  %v1388 = vpop.f32.mrb[0].mxu0
  %v1389 = vadd.f32 %v928, %v1388
  %1390 = vmatprep.mubr.f32.mxu0 0.0
  %1391 = vmatmul.mubr.f32.gmra.mrb[0].mxu0 %v1042
  %v1392 = vpop.f32.mrb[0].mxu0
  %v1393 = vadd.f32 %v933, %v1392
  %v1394 = vpop.f32.mrb[0].mxu0
  %v1395 = vadd.f32 %v933, %v1394
  %1396 = vmatprep.mubr.f32.mxu0 0.0
  %1397 = vmatmul.mubr.f32.gmra.mrb[0].mxu0 %v1045
  %v1398 = vpop.f32.mrb[0].mxu0
  %v1399 = vadd.f32 %v938, %v1398
  %v1400 = vpop.f32.mrb[0].mxu0
  %v1401 = vadd.f32 %v938, %v1400
  %1402 = vdwg.mxu0
  %1403 = vmatprep.subr.mxu0 %v953
  %1404 = vmatpush1.msra.mxu0 %v952
  %1405 = vmatprep.subr.mxu0 %v963
  %1406 = vmatpush1.msra.mxu0 %v962
  %1407 = vmatprep.subr.mxu0 %v973
  %1408 = vmatpush1.msra.mxu0 %v972
  %1409 = vmatprep.subr.mxu0 %v983
  %1410 = vmatpush1.msra.mxu0 %v982
  %1411 = vmatprep.subr.mxu0 %v993
  %1412 = vmatpush1.msra.mxu0 %v992
  %1413 = vmatprep.subr.mxu0 %v1003
  %1414 = vmatpush1.msra.mxu0 %v1002
  %1415 = vmatprep.subr.mxu0 %v1013
  %1416 = vmatpush1.msra.mxu0 %v1012
  %1417 = vmatprep.subr.mxu0 %v1023
  %1418 = vmatpush1.msra.mxu0 %v1022
  %1419 = vmatprep.subr.mxu0 %v1033
  %1420 = vmatpush1.msra.mxu0 %v1032
  %1421 = vmatprep.subr.mxu0 0.0
  %1422 = vmatpush1.msra.mxu0 0.0
  %1423 = vmatprep.subr.mxu0 0.0
  %1424 = vmatpush1.msra.mxu0 0.0
  %1425 = vmatprep.subr.mxu0 0.0
  %1426 = vmatpush1.msra.mxu0 0.0
  %1427 = vmatprep.subr.mxu0 0.0
  %1428 = vmatpush1.msra.mxu0 0.0
  %1429 = vmatprep.subr.mxu0 0.0
  %1430 = vmatpush1.msra.mxu0 0.0
  %1431 = vmatprep.subr.mxu0 0.0
  %1432 = vmatpush1.msra.mxu0 0.0
  %1433 = vmatprep.subr.mxu0 0.0
  %1434 = vmatpush1.msra.mxu0 0.0
  %1435 = vmatprep.subr.mxu0 0.0
  %1436 = vmatpush1.msra.mxu0 0.0
  %1437 = vmatprep.subr.mxu0 0.0
  %1438 = vmatpush1.msra.mxu0 0.0
  %1439 = vmatprep.subr.mxu0 0.0
  %1440 = vmatpush1.msra.mxu0 0.0
  %1441 = vmatprep.subr.mxu0 0.0
  %1442 = vmatpush1.msra.mxu0 0.0
  %1443 = vmatprep.subr.mxu0 0.0
  %1444 = vmatpush1.msra.mxu0 0.0
  %1445 = vmatprep.subr.mxu0 0.0
  %1446 = vmatpush1.msra.mxu0 0.0
  %1447 = vmatprep.subr.mxu0 0.0
  %1448 = vmatpush1.msra.mxu0 0.0
  %1449 = vmatprep.subr.mxu0 0.0
  %1450 = vmatpush1.msra.mxu0 0.0
  %1451 = vmatprep.subr.mxu0 0.0
  %1452 = vmatpush1.msra.mxu0 0.0
  %1453 = vmatprep.subr.mxu0 0.0
  %1454 = vmatpush1.msra.mxu0 0.0
  %1455 = vmatprep.subr.mxu0 0.0
  %1456 = vmatpush1.msra.mxu0 0.0
  %1457 = vmatprep.subr.mxu0 0.0
  %1458 = vmatpush1.msra.mxu0 0.0
  %1459 = vmatprep.subr.mxu0 0.0
  %1460 = vmatpush1.msra.mxu0 0.0
  %1461 = vmatprep.subr.mxu0 0.0
  %1462 = vmatpush1.msra.mxu0 0.0
  %1463 = vmatprep.subr.mxu0 0.0
  %1464 = vmatpush1.msra.mxu0 0.0
  %1465 = vmatprep.subr.mxu0 0.0
  %1466 = vmatpush1.msra.mxu0 0.0
  %1467 = vmatprep.mubr.f32.mxu0 0.0
  %1468 = vmatmul.mubr.f32.gmra.mrb[0].mxu0 %v1036
  %v1469 = vpop.f32.mrb[0].mxu0
  %v1470 = vadd.f32 %v923, %v1469
  %v1471 = vpop.f32.mrb[0].mxu0
  %v1472 = vadd.f32 %v923, %v1471
  %1473 = vmatprep.mubr.f32.mxu0 0.0
  %1474 = vmatmul.mubr.f32.gmra.mrb[0].mxu0 %v1039
  %v1475 = vpop.f32.mrb[0].mxu0
  %v1476 = vadd.f32 %v928, %v1475
  %v1477 = vpop.f32.mrb[0].mxu0
  %v1478 = vadd.f32 %v928, %v1477
  %1479 = vmatprep.mubr.f32.mxu0 0.0
  %1480 = vmatmul.mubr.f32.gmra.mrb[0].mxu0 %v1042
  %v1481 = vpop.f32.mrb[0].mxu0
  %v1482 = vadd.f32 %v933, %v1481
  %v1483 = vpop.f32.mrb[0].mxu0
  %v1484 = vadd.f32 %v933, %v1483
  %1485 = vmatprep.mubr.f32.mxu0 0.0
  %1486 = vmatmul.mubr.f32.gmra.mrb[0].mxu0 %v1045
  %v1487 = vpop.f32.mrb[0].mxu0
  %v1488 = vadd.f32 %v938, %v1487
  %v1489 = vpop.f32.mrb[0].mxu0
  %v1490 = vadd.f32 %v938, %v1489
  %1491 = vdwg.mxu0
  %1492 = vst [vmem:[#allocation3] sm:$0xff] %v1114
  %1493 = vst [vmem:[#allocation3 + $0x8] sm:$0xff] %v1116
  %1494 = vst [vmem:[#allocation3 + $0x10] sm:$0xff] %v1203
  %1495 = vst [vmem:[#allocation3 + $0x18] sm:$0xff] %v1205
  %1496 = vst [vmem:[#allocation3 + $0x20] sm:$0xff] %v1292
  %1497 = vst [vmem:[#allocation3 + $0x28] sm:$0xff] %v1294
  %1498 = vst [vmem:[#allocation3 + $0x30] sm:$0xff] %v1381
  %1499 = vst [vmem:[#allocation3 + $0x38] sm:$0xff] %v1383
  %1500 = vst [vmem:[#allocation3 + $0x40] sm:$0xff] %v1470
  %1501 = vst [vmem:[#allocation3 + $0x48] sm:$0xff] %v1472
  %1502 = vst [vmem:[#allocation3 + $0x50] sm:$0xff] %v1120
  %1503 = vst [vmem:[#allocation3 + $0x58] sm:$0xff] %v1122
  %1504 = vst [vmem:[#allocation3 + $0x60] sm:$0xff] %v1209
  %1505 = vst [vmem:[#allocation3 + $0x68] sm:$0xff] %v1211
  %1506 = vst [vmem:[#allocation3 + $0x70] sm:$0xff] %v1298
  %1507 = vst [vmem:[#allocation3 + $0x78] sm:$0xff] %v1300
  %1508 = vst [vmem:[#allocation3 + $0x80] sm:$0xff] %v1387
  %1509 = vst [vmem:[#allocation3 + $0x88] sm:$0xff] %v1389
  %1510 = vst [vmem:[#allocation3 + $0x90] sm:$0xff] %v1476
  %1511 = vst [vmem:[#allocation3 + $0x98] sm:$0xff] %v1478
  %1512 = vst [vmem:[#allocation3 + $0xa0] sm:$0xff] %v1126
  %1513 = vst [vmem:[#allocation3 + $0xa8] sm:$0xff] %v1128
  %1514 = vst [vmem:[#allocation3 + $0xb0] sm:$0xff] %v1215
  %1515 = vst [vmem:[#allocation3 + $0xb8] sm:$0xff] %v1217
  %1516 = vst [vmem:[#allocation3 + $0xc0] sm:$0xff] %v1304
  %1517 = vst [vmem:[#allocation3 + $0xc8] sm:$0xff] %v1306
  %1518 = vst [vmem:[#allocation3 + $0xd0] sm:$0xff] %v1393
  %1519 = vst [vmem:[#allocation3 + $0xd8] sm:$0xff] %v1395
  %1520 = vst [vmem:[#allocation3 + $0xe0] sm:$0xff] %v1482
  %1521 = vst [vmem:[#allocation3 + $0xe8] sm:$0xff] %v1484
  %1522 = vst [vmem:[#allocation3 + $0xf0] sm:$0xff] %v1132
  %1523 = vst [vmem:[#allocation3 + $0xf8] sm:$0xff] %v1134
  %1524 = vst [vmem:[#allocation3 + $0x100] sm:$0xff] %v1221
  %1525 = vst [vmem:[#allocation3 + $0x108] sm:$0xff] %v1223
  %1526 = vst [vmem:[#allocation3 + $0x110] sm:$0xff] %v1310
  %1527 = vst [vmem:[#allocation3 + $0x118] sm:$0xff] %v1312
  %1528 = vst [vmem:[#allocation3 + $0x120] sm:$0xff] %v1399
  %1529 = vst [vmem:[#allocation3 + $0x128] sm:$0xff] %v1401
  %1530 = vst [vmem:[#allocation3 + $0x130] sm:$0xff] %v1488
  %1531 = vst [vmem:[#allocation3 + $0x138] sm:$0xff] %v1490
  %v1532 = vld [vmem:[%s2] sm:$0xff]
  %v1533 = vld [vmem:[%s2 + $0x8] sm:$0xff]
  %v1534 = vld [vmem:[%s2 + $0x10] sm:$0xff]
  %v1535 = vld [vmem:[%s2 + $0x18] sm:$0xff]
  %v1536 = vld [vmem:[%s4] ss:$8 sm:$0x3]
  %v1538 = vlaneseq
  %v1539 = vshrl.u32 %v1538, 7
  %v1540 = vsub.s32 0, %v1539
  %v1541 = vrot.slane %v1536, %v1540
  %v1542 = vlaneseq
  %v1543 = vshrl.u32 %v1542, 7
  %v1544 = vsub.s32 1, %v1543
  %v1545 = vrot.slane %v1536, %v1544
  %s1548 = scalar_lea.vmem %s4, 1
  %v1549 = vld [vmem:[%s1548] ss:$8 sm:$0x3]
  %v1551 = vlaneseq
  %v1552 = vshrl.u32 %v1551, 7
  %v1553 = vsub.s32 0, %v1552
  %v1554 = vrot.slane %v1549, %v1553
  %v1555 = vlaneseq
  %v1556 = vshrl.u32 %v1555, 7
  %v1557 = vsub.s32 1, %v1556
  %v1558 = vrot.slane %v1549, %v1557
  %s1561 = scalar_lea.vmem %s4, 2
  %v1562 = vld [vmem:[%s1561] ss:$8 sm:$0x3]
  %v1564 = vlaneseq
  %v1565 = vshrl.u32 %v1564, 7
  %v1566 = vsub.s32 0, %v1565
  %v1567 = vrot.slane %v1562, %v1566
  %v1568 = vlaneseq
  %v1569 = vshrl.u32 %v1568, 7
  %v1570 = vsub.s32 1, %v1569
  %v1571 = vrot.slane %v1562, %v1570
  %s1574 = scalar_lea.vmem %s4, 3
  %v1575 = vld [vmem:[%s1574] ss:$8 sm:$0x3]
  %v1577 = vlaneseq
  %v1578 = vshrl.u32 %v1577, 7
  %v1579 = vsub.s32 0, %v1578
  %v1580 = vrot.slane %v1575, %v1579
  %v1581 = vlaneseq
  %v1582 = vshrl.u32 %v1581, 7
  %v1583 = vsub.s32 1, %v1582
  %v1584 = vrot.slane %v1575, %v1583
  %s1587 = scalar_lea.vmem %s4, 5
  %v1588 = vld [vmem:[%s1587] ss:$8 sm:$0x3]
  %v1590 = vlaneseq
  %v1591 = vshrl.u32 %v1590, 7
  %v1592 = vsub.s32 0, %v1591
  %v1593 = vrot.slane %v1588, %v1592
  %v1594 = vlaneseq
  %v1595 = vshrl.u32 %v1594, 7
  %v1596 = vsub.s32 1, %v1595
  %v1597 = vrot.slane %v1588, %v1596
  %s1600 = scalar_lea.vmem %s4, 6
  %v1601 = vld [vmem:[%s1600] ss:$8 sm:$0x3]
  %v1603 = vlaneseq
  %v1604 = vshrl.u32 %v1603, 7
  %v1605 = vsub.s32 0, %v1604
  %v1606 = vrot.slane %v1601, %v1605
  %v1607 = vlaneseq
  %v1608 = vshrl.u32 %v1607, 7
  %v1609 = vsub.s32 1, %v1608
  %v1610 = vrot.slane %v1601, %v1609
  %s1613 = scalar_lea.vmem %s4, 7
  %v1614 = vld [vmem:[%s1613] ss:$8 sm:$0x3]
  %v1616 = vlaneseq
  %v1617 = vshrl.u32 %v1616, 7
  %v1618 = vsub.s32 0, %v1617
  %v1619 = vrot.slane %v1614, %v1618
  %v1620 = vlaneseq
  %v1621 = vshrl.u32 %v1620, 7
  %v1622 = vsub.s32 1, %v1621
  %v1623 = vrot.slane %v1614, %v1622
  %s1626 = scalar_lea.vmem %s4, 16
  %v1627 = vld [vmem:[%s1626] ss:$8 sm:$0x3]
  %v1629 = vlaneseq
  %v1630 = vshrl.u32 %v1629, 7
  %v1631 = vsub.s32 0, %v1630
  %v1632 = vrot.slane %v1627, %v1631
  %v1633 = vlaneseq
  %v1634 = vshrl.u32 %v1633, 7
  %v1635 = vsub.s32 1, %v1634
  %v1636 = vrot.slane %v1627, %v1635
  %1639 = vrot.lane.b32.xlu0 0.0, 17
  %v1640 = vpop.permute.xlu0 %1639
  %v1641 = vmul.f32 %v1640, %v1541
  %v1642 = vmul.f32 %v1640, %v1545
  %1643 = vrot.lane.b32.xlu0 0.0, 16
  %v1644 = vpop.permute.xlu0 %1643
  %v1645 = vmul.f32 %v1644, %v1554
  %v1646 = vmul.f32 %v1644, %v1558
  %1647 = vrot.lane.b32.xlu0 0.0, 15
  %v1648 = vpop.permute.xlu0 %1647
  %v1649 = vmul.f32 %v1648, %v1567
  %v1650 = vmul.f32 %v1648, %v1571
  %1651 = vrot.lane.b32.xlu0 0.0, 1
  %v1652 = vpop.permute.xlu0 %1651
  %v1653 = vmul.f32 %v1652, %v1580
  %v1654 = vmul.f32 %v1652, %v1584
  %1655 = vrot.lane.b32.xlu0 0.0, 127
  %v1656 = vpop.permute.xlu0 %1655
  %v1657 = vmul.f32 %v1656, %v1593
  %v1658 = vmul.f32 %v1656, %v1597
  %1659 = vrot.lane.b32.xlu0 0.0, 113
  %v1660 = vpop.permute.xlu0 %1659
  %v1661 = vmul.f32 %v1660, %v1606
  %v1662 = vmul.f32 %v1660, %v1610
  %1663 = vrot.lane.b32.xlu0 0.0, 112
  %v1664 = vpop.permute.xlu0 %1663
  %v1665 = vmul.f32 %v1664, %v1619
  %v1666 = vmul.f32 %v1664, %v1623
  %1667 = vrot.lane.b32.xlu0 0.0, 111
  %v1668 = vpop.permute.xlu0 %1667
  %v1669 = vmul.f32 %v1668, %v1632
  %v1670 = vmul.f32 %v1668, %v1636
  %v1671 = vld [vmem:[#allocation3] sm:$0xff]
  %v1672 = vld [vmem:[#allocation3 + $0x8] sm:$0xff]
  %v1673 = vld [vmem:[#allocation3 + $0x50] sm:$0xff]
  %v1674 = vld [vmem:[#allocation3 + $0x58] sm:$0xff]
  %v1675 = vld [vmem:[#allocation3 + $0xa0] sm:$0xff]
  %v1676 = vld [vmem:[#allocation3 + $0xa8] sm:$0xff]
  %v1677 = vld [vmem:[#allocation3 + $0xf0] sm:$0xff]
  %v1678 = vld [vmem:[#allocation3 + $0xf8] sm:$0xff]
  %v1680 = vsel %vm1034, %v1532, 0
  %v1683 = vsel %vm1034, %v1533, 0
  %v1686 = vsel %vm1034, %v1534, 0
  %v1689 = vsel %vm1034, %v1535, 0
  %1691 = vmatprep.subr.mxu0 %v1642
  %1692 = vmatpush1.msra.mxu0 %v1641
  %1693 = vmatprep.subr.mxu0 %v1646
  %1694 = vmatpush1.msra.mxu0 %v1645
  %1695 = vmatprep.subr.mxu0 %v1650
  %1696 = vmatpush1.msra.mxu0 %v1649
  %1697 = vmatprep.subr.mxu0 %v1654
  %1698 = vmatpush1.msra.mxu0 %v1653
  %1699 = vmatprep.subr.mxu0 0.0
  %1700 = vmatpush1.msra.mxu0 0.0
  %1701 = vmatprep.subr.mxu0 %v1658
  %1702 = vmatpush1.msra.mxu0 %v1657
  %1703 = vmatprep.subr.mxu0 %v1662
  %1704 = vmatpush1.msra.mxu0 %v1661
  %1705 = vmatprep.subr.mxu0 %v1666
  %1706 = vmatpush1.msra.mxu0 %v1665
  %1707 = vmatprep.subr.mxu0 %v1670
  %1708 = vmatpush1.msra.mxu0 %v1669
  %1709 = vmatprep.subr.mxu0 0.0
  %1710 = vmatpush1.msra.mxu0 0.0
  %1711 = vmatprep.subr.mxu0 0.0
  %1712 = vmatpush1.msra.mxu0 0.0
  %1713 = vmatprep.subr.mxu0 0.0
  %1714 = vmatpush1.msra.mxu0 0.0
  %1715 = vmatprep.subr.mxu0 0.0
  %1716 = vmatpush1.msra.mxu0 0.0
  %1717 = vmatprep.subr.mxu0 0.0
  %1718 = vmatpush1.msra.mxu0 0.0
  %1719 = vmatprep.subr.mxu0 0.0
  %1720 = vmatpush1.msra.mxu0 0.0
  %1721 = vmatprep.subr.mxu0 0.0
  %1722 = vmatpush1.msra.mxu0 0.0
  %1723 = vmatprep.subr.mxu0 0.0
  %1724 = vmatpush1.msra.mxu0 0.0
  %1725 = vmatprep.subr.mxu0 0.0
  %1726 = vmatpush1.msra.mxu0 0.0
  %1727 = vmatprep.subr.mxu0 0.0
  %1728 = vmatpush1.msra.mxu0 0.0
  %1729 = vmatprep.subr.mxu0 0.0
  %1730 = vmatpush1.msra.mxu0 0.0
  %1731 = vmatprep.subr.mxu0 0.0
  %1732 = vmatpush1.msra.mxu0 0.0
  %1733 = vmatprep.subr.mxu0 0.0
  %1734 = vmatpush1.msra.mxu0 0.0
  %1735 = vmatprep.subr.mxu0 0.0
  %1736 = vmatpush1.msra.mxu0 0.0
  %1737 = vmatprep.subr.mxu0 0.0
  %1738 = vmatpush1.msra.mxu0 0.0
  %1739 = vmatprep.subr.mxu0 0.0
  %1740 = vmatpush1.msra.mxu0 0.0
  %1741 = vmatprep.subr.mxu0 0.0
  %1742 = vmatpush1.msra.mxu0 0.0
  %1743 = vmatprep.subr.mxu0 0.0
  %1744 = vmatpush1.msra.mxu0 0.0
  %1745 = vmatprep.subr.mxu0 0.0
  %1746 = vmatpush1.msra.mxu0 0.0
  %1747 = vmatprep.subr.mxu0 0.0
  %1748 = vmatpush1.msra.mxu0 0.0
  %1749 = vmatprep.subr.mxu0 0.0
  %1750 = vmatpush1.msra.mxu0 0.0
  %1751 = vmatprep.subr.mxu0 0.0
  %1752 = vmatpush1.msra.mxu0 0.0
  %1753 = vmatprep.subr.mxu0 0.0
  %1754 = vmatpush1.msra.mxu0 0.0
  %1755 = vmatprep.mubr.f32.mxu0 0.0
  %1756 = vmatmul.mubr.f32.gmra.mrb[0].mxu0 %v1680
  %v1757 = vpop.f32.mrb[0].mxu0
  %v1758 = vadd.f32 %v1671, %v1757
  %v1759 = vpop.f32.mrb[0].mxu0
  %v1760 = vadd.f32 %v1672, %v1759
  %1761 = vmatprep.mubr.f32.mxu0 0.0
  %1762 = vmatmul.mubr.f32.gmra.mrb[0].mxu0 %v1683
  %v1763 = vpop.f32.mrb[0].mxu0
  %v1764 = vadd.f32 %v1673, %v1763
  %v1765 = vpop.f32.mrb[0].mxu0
  %v1766 = vadd.f32 %v1674, %v1765
  %1767 = vmatprep.mubr.f32.mxu0 0.0
  %1768 = vmatmul.mubr.f32.gmra.mrb[0].mxu0 %v1686
  %v1769 = vpop.f32.mrb[0].mxu0
  %v1770 = vadd.f32 %v1675, %v1769
  %v1771 = vpop.f32.mrb[0].mxu0
  %v1772 = vadd.f32 %v1676, %v1771
  %1773 = vmatprep.mubr.f32.mxu0 0.0
  %1774 = vmatmul.mubr.f32.gmra.mrb[0].mxu0 %v1689
  %v1775 = vpop.f32.mrb[0].mxu0
  %v1776 = vadd.f32 %v1677, %v1775
  %v1777 = vpop.f32.mrb[0].mxu0
  %v1778 = vadd.f32 %v1678, %v1777
  %1779 = vdwg.mxu0
  %v1780 = vxor.u32 %v1758, 2147483648
  %v1781 = vxor.u32 %v1760, 2147483648
  %v1782 = vxor.u32 %v1764, 2147483648
  %v1783 = vxor.u32 %v1766, 2147483648
  %v1784 = vxor.u32 %v1770, 2147483648
  %v1785 = vxor.u32 %v1772, 2147483648
  %v1786 = vmul.f32 %v1780, 1.442695
  %v1787 = vpow.pop %v1786
  %v1788 = vmul.f32 %v1781, 1.442695
  %v1789 = vpow.pop %v1788
  %v1790 = vmul.f32 %v1782, 1.442695
  %v1791 = vpow.pop %v1790
  %v1792 = vmul.f32 %v1783, 1.442695
  %v1793 = vpow.pop %v1792
  %v1794 = vmul.f32 %v1784, 1.442695
  %v1795 = vpow.pop %v1794
  %v1796 = vmul.f32 %v1785, 1.442695
  %v1797 = vpow.pop %v1796
  %v1798 = vadd.f32 %v1787, 1.0
  %v1799 = vadd.f32 %v1789, 1.0
  %v1800 = vadd.f32 %v1791, 1.0
  %v1801 = vadd.f32 %v1793, 1.0
  %v1802 = vadd.f32 %v1795, 1.0
  %v1803 = vadd.f32 %v1797, 1.0
  %v1804 = vrcp.pop %v1798
  %v1805 = vmul.f32 1.0, %v1804
  %v1806 = vrcp.pop %v1799
  %v1807 = vmul.f32 1.0, %v1806
  %v1808 = vrcp.pop %v1800
  %v1809 = vmul.f32 1.0, %v1808
  %v1810 = vrcp.pop %v1801
  %v1811 = vmul.f32 1.0, %v1810
  %v1812 = vrcp.pop %v1802
  %v1813 = vmul.f32 1.0, %v1812
  %v1814 = vrcp.pop %v1803
  %v1815 = vmul.f32 1.0, %v1814
  %v1816 = vtanh.pop %v1776
  %v1817 = vtanh.pop %v1778
  %v1818 = vmul.f32 %v1809, 0.0
  %v1819 = vmul.f32 %v1811, 0.0
  %v1820 = vmul.f32 %v1805, %v1816
  %v1821 = vmul.f32 %v1807, %v1817
  %v1822 = vadd.f32 %v1818, %v1820
  %v1823 = vadd.f32 %v1819, %v1821
  %v1824 = vtanh.pop %v1822
  %v1825 = vtanh.pop %v1823
  %v1826 = vmul.f32 %v1813, %v1824
  %v1827 = vmul.f32 %v1815, %v1825
  %1828 = vrot.lane.b32.xlu0 %v1826, 17
  %v1829 = vpop.permute.xlu0 %1828
  %1830 = vrot.lane.b32.xlu0 %v1827, 17
  %v1831 = vpop.permute.xlu0 %1830
  %v1832 = vsel %vm55, %v1829, %v1831
  %v1833 = vsel %vm55, %v1831, %v1829
  %v1834 = vmul.f32 %v1833, %v1541
  %v1835 = vmul.f32 %v1832, %v1545
  %1836 = vrot.lane.b32.xlu0 %v1826, 16
  %v1837 = vpop.permute.xlu0 %1836
  %1838 = vrot.lane.b32.xlu0 %v1827, 16
  %v1839 = vpop.permute.xlu0 %1838
  %v1840 = vsel %vm163, %v1837, %v1839
  %v1841 = vsel %vm163, %v1839, %v1837
  %v1842 = vmul.f32 %v1841, %v1554
  %v1843 = vmul.f32 %v1840, %v1558
  %1844 = vrot.lane.b32.xlu0 %v1826, 15
  %v1845 = vpop.permute.xlu0 %1844
  %1846 = vrot.lane.b32.xlu0 %v1827, 15
  %v1847 = vpop.permute.xlu0 %1846
  %v1848 = vsel %vm272, %v1845, %v1847
  %v1849 = vsel %vm272, %v1847, %v1845
  %v1850 = vmul.f32 %v1849, %v1567
  %v1851 = vmul.f32 %v1848, %v1571
  %1852 = vrot.lane.b32.xlu0 %v1826, 1
  %v1853 = vpop.permute.xlu0 %1852
  %1854 = vrot.lane.b32.xlu0 %v1827, 1
  %v1855 = vpop.permute.xlu0 %1854
  %v1856 = vsel %vm381, %v1853, %v1855
  %v1857 = vsel %vm381, %v1855, %v1853
  %v1858 = vmul.f32 %v1857, %v1580
  %v1859 = vmul.f32 %v1856, %v1584
  %1860 = vrot.lane.b32.xlu0 %v1826, 127
  %v1861 = vpop.permute.xlu0 %1860
  %1862 = vrot.lane.b32.xlu0 %v1827, 127
  %v1863 = vpop.permute.xlu0 %1862
  %v1864 = vsel %vm500, %v1861, %v1863
  %v1865 = vsel %vm500, %v1863, %v1861
  %v1866 = vmul.f32 %v1864, %v1593
  %v1867 = vmul.f32 %v1865, %v1597
  %1868 = vrot.lane.b32.xlu0 %v1826, 113
  %v1869 = vpop.permute.xlu0 %1868
  %1870 = vrot.lane.b32.xlu0 %v1827, 113
  %v1871 = vpop.permute.xlu0 %1870
  %v1872 = vsel %vm609, %v1869, %v1871
  %v1873 = vsel %vm609, %v1871, %v1869
  %v1874 = vmul.f32 %v1872, %v1606
  %v1875 = vmul.f32 %v1873, %v1610
  %1876 = vrot.lane.b32.xlu0 %v1826, 112
  %v1877 = vpop.permute.xlu0 %1876
  %1878 = vrot.lane.b32.xlu0 %v1827, 112
  %v1879 = vpop.permute.xlu0 %1878
  %v1880 = vsel %vm718, %v1877, %v1879
  %v1881 = vsel %vm718, %v1879, %v1877
  %v1882 = vmul.f32 %v1880, %v1619
  %v1883 = vmul.f32 %v1881, %v1623
  %1884 = vrot.lane.b32.xlu0 %v1826, 111
  %v1885 = vpop.permute.xlu0 %1884
  %1886 = vrot.lane.b32.xlu0 %v1827, 111
  %v1887 = vpop.permute.xlu0 %1886
  %v1888 = vsel %vm827, %v1885, %v1887
  %v1889 = vsel %vm827, %v1887, %v1885
  %v1890 = vmul.f32 %v1888, %v1632
  %v1891 = vmul.f32 %v1889, %v1636
  %v1892 = vld [vmem:[#allocation3 + $0x10] sm:$0xff]
  %v1893 = vld [vmem:[#allocation3 + $0x18] sm:$0xff]
  %v1894 = vld [vmem:[#allocation3 + $0x60] sm:$0xff]
  %v1895 = vld [vmem:[#allocation3 + $0x68] sm:$0xff]
  %v1896 = vld [vmem:[#allocation3 + $0xb0] sm:$0xff]
  %v1897 = vld [vmem:[#allocation3 + $0xb8] sm:$0xff]
  %v1898 = vld [vmem:[#allocation3 + $0x100] sm:$0xff]
  %v1899 = vld [vmem:[#allocation3 + $0x108] sm:$0xff]
  %1900 = vmatprep.subr.mxu0 %v1835
  %1901 = vmatpush1.msra.mxu0 %v1834
  %1902 = vmatprep.subr.mxu0 %v1843
  %1903 = vmatpush1.msra.mxu0 %v1842
  %1904 = vmatprep.subr.mxu0 %v1851
  %1905 = vmatpush1.msra.mxu0 %v1850
  %1906 = vmatprep.subr.mxu0 %v1859
  %1907 = vmatpush1.msra.mxu0 %v1858
  %1908 = vmatprep.subr.mxu0 %v1827
  %1909 = vmatpush1.msra.mxu0 %v1826
  %1910 = vmatprep.subr.mxu0 %v1867
  %1911 = vmatpush1.msra.mxu0 %v1866
  %1912 = vmatprep.subr.mxu0 %v1875
  %1913 = vmatpush1.msra.mxu0 %v1874
  %1914 = vmatprep.subr.mxu0 %v1883
  %1915 = vmatpush1.msra.mxu0 %v1882
  %1916 = vmatprep.subr.mxu0 %v1891
  %1917 = vmatpush1.msra.mxu0 %v1890
  %1918 = vmatprep.subr.mxu0 0.0
  %1919 = vmatpush1.msra.mxu0 0.0
  %1920 = vmatprep.subr.mxu0 0.0
  %1921 = vmatpush1.msra.mxu0 0.0
  %1922 = vmatprep.subr.mxu0 0.0
  %1923 = vmatpush1.msra.mxu0 0.0
  %1924 = vmatprep.subr.mxu0 0.0
  %1925 = vmatpush1.msra.mxu0 0.0
  %1926 = vmatprep.subr.mxu0 0.0
  %1927 = vmatpush1.msra.mxu0 0.0
  %1928 = vmatprep.subr.mxu0 0.0
  %1929 = vmatpush1.msra.mxu0 0.0
  %1930 = vmatprep.subr.mxu0 0.0
  %1931 = vmatpush1.msra.mxu0 0.0
  %1932 = vmatprep.subr.mxu0 0.0
  %1933 = vmatpush1.msra.mxu0 0.0
  %1934 = vmatprep.subr.mxu0 0.0
  %1935 = vmatpush1.msra.mxu0 0.0
  %1936 = vmatprep.subr.mxu0 0.0
  %1937 = vmatpush1.msra.mxu0 0.0
  %1938 = vmatprep.subr.mxu0 0.0
  %1939 = vmatpush1.msra.mxu0 0.0
  %1940 = vmatprep.subr.mxu0 0.0
  %1941 = vmatpush1.msra.mxu0 0.0
  %1942 = vmatprep.subr.mxu0 0.0
  %1943 = vmatpush1.msra.mxu0 0.0
  %1944 = vmatprep.subr.mxu0 0.0
  %1945 = vmatpush1.msra.mxu0 0.0
  %1946 = vmatprep.subr.mxu0 0.0
  %1947 = vmatpush1.msra.mxu0 0.0
  %1948 = vmatprep.subr.mxu0 0.0
  %1949 = vmatpush1.msra.mxu0 0.0
  %1950 = vmatprep.subr.mxu0 0.0
  %1951 = vmatpush1.msra.mxu0 0.0
  %1952 = vmatprep.subr.mxu0 0.0
  %1953 = vmatpush1.msra.mxu0 0.0
  %1954 = vmatprep.subr.mxu0 0.0
  %1955 = vmatpush1.msra.mxu0 0.0
  %1956 = vmatprep.subr.mxu0 0.0
  %1957 = vmatpush1.msra.mxu0 0.0
  %1958 = vmatprep.subr.mxu0 0.0
  %1959 = vmatpush1.msra.mxu0 0.0
  %1960 = vmatprep.subr.mxu0 0.0
  %1961 = vmatpush1.msra.mxu0 0.0
  %1962 = vmatprep.subr.mxu0 0.0
  %1963 = vmatpush1.msra.mxu0 0.0
  %1964 = vmatprep.mubr.f32.mxu0 0.0
  %1965 = vmatmul.mubr.f32.gmra.mrb[0].mxu0 %v1680
  %v1966 = vpop.f32.mrb[0].mxu0
  %v1967 = vadd.f32 %v1892, %v1966
  %v1968 = vpop.f32.mrb[0].mxu0
  %v1969 = vadd.f32 %v1893, %v1968
  %1970 = vmatprep.mubr.f32.mxu0 0.0
  %1971 = vmatmul.mubr.f32.gmra.mrb[0].mxu0 %v1683
  %v1972 = vpop.f32.mrb[0].mxu0
  %v1973 = vadd.f32 %v1894, %v1972
  %v1974 = vpop.f32.mrb[0].mxu0
  %v1975 = vadd.f32 %v1895, %v1974
  %1976 = vmatprep.mubr.f32.mxu0 0.0
  %1977 = vmatmul.mubr.f32.gmra.mrb[0].mxu0 %v1686
  %v1978 = vpop.f32.mrb[0].mxu0
  %v1979 = vadd.f32 %v1896, %v1978
  %v1980 = vpop.f32.mrb[0].mxu0
  %v1981 = vadd.f32 %v1897, %v1980
  %1982 = vmatprep.mubr.f32.mxu0 0.0
  %1983 = vmatmul.mubr.f32.gmra.mrb[0].mxu0 %v1689
  %v1984 = vpop.f32.mrb[0].mxu0
  %v1985 = vadd.f32 %v1898, %v1984
  %v1986 = vpop.f32.mrb[0].mxu0
  %v1987 = vadd.f32 %v1899, %v1986
  %1988 = vdwg.mxu0
  %v1989 = vxor.u32 %v1967, 2147483648
  %v1990 = vxor.u32 %v1969, 2147483648
  %v1991 = vxor.u32 %v1973, 2147483648
  %v1992 = vxor.u32 %v1975, 2147483648
  %v1993 = vxor.u32 %v1979, 2147483648
  %v1994 = vxor.u32 %v1981, 2147483648
  %v1995 = vmul.f32 %v1989, 1.442695
  %v1996 = vpow.pop %v1995
  %v1997 = vmul.f32 %v1990, 1.442695
  %v1998 = vpow.pop %v1997
  %v1999 = vmul.f32 %v1991, 1.442695
  %v2000 = vpow.pop %v1999
  %v2001 = vmul.f32 %v1992, 1.442695
  %v2002 = vpow.pop %v2001
  %v2003 = vmul.f32 %v1993, 1.442695
  %v2004 = vpow.pop %v2003
  %v2005 = vmul.f32 %v1994, 1.442695
  %v2006 = vpow.pop %v2005
  %v2007 = vadd.f32 %v1996, 1.0
  %v2008 = vadd.f32 %v1998, 1.0
  %v2009 = vadd.f32 %v2000, 1.0
  %v2010 = vadd.f32 %v2002, 1.0
  %v2011 = vadd.f32 %v2004, 1.0
  %v2012 = vadd.f32 %v2006, 1.0
  %v2013 = vrcp.pop %v2007
  %v2014 = vmul.f32 1.0, %v2013
  %v2015 = vrcp.pop %v2008
  %v2016 = vmul.f32 1.0, %v2015
  %v2017 = vrcp.pop %v2009
  %v2018 = vmul.f32 1.0, %v2017
  %v2019 = vrcp.pop %v2010
  %v2020 = vmul.f32 1.0, %v2019
  %v2021 = vrcp.pop %v2011
  %v2022 = vmul.f32 1.0, %v2021
  %v2023 = vrcp.pop %v2012
  %v2024 = vmul.f32 1.0, %v2023
  %v2025 = vtanh.pop %v1985
  %v2026 = vtanh.pop %v1987
  %v2027 = vmul.f32 %v2018, %v1822
  %v2028 = vmul.f32 %v2020, %v1823
  %v2029 = vmul.f32 %v2014, %v2025
  %v2030 = vmul.f32 %v2016, %v2026
  %v2031 = vadd.f32 %v2027, %v2029
  %v2032 = vadd.f32 %v2028, %v2030
  %v2033 = vtanh.pop %v2031
  %v2034 = vtanh.pop %v2032
  %v2035 = vmul.f32 %v2022, %v2033
  %v2036 = vmul.f32 %v2024, %v2034
  %2037 = vrot.lane.b32.xlu0 %v2035, 17
  %v2038 = vpop.permute.xlu0 %2037
  %2039 = vrot.lane.b32.xlu0 %v2036, 17
  %v2040 = vpop.permute.xlu0 %2039
  %v2041 = vsel %vm55, %v2038, %v2040
  %v2042 = vsel %vm55, %v2040, %v2038
  %v2043 = vmul.f32 %v2042, %v1541
  %v2044 = vmul.f32 %v2041, %v1545
  %2045 = vrot.lane.b32.xlu0 %v2035, 16
  %v2046 = vpop.permute.xlu0 %2045
  %2047 = vrot.lane.b32.xlu0 %v2036, 16
  %v2048 = vpop.permute.xlu0 %2047
  %v2049 = vsel %vm163, %v2046, %v2048
  %v2050 = vsel %vm163, %v2048, %v2046
  %v2051 = vmul.f32 %v2050, %v1554
  %v2052 = vmul.f32 %v2049, %v1558
  %2053 = vrot.lane.b32.xlu0 %v2035, 15
  %v2054 = vpop.permute.xlu0 %2053
  %2055 = vrot.lane.b32.xlu0 %v2036, 15
  %v2056 = vpop.permute.xlu0 %2055
  %v2057 = vsel %vm272, %v2054, %v2056
  %v2058 = vsel %vm272, %v2056, %v2054
  %v2059 = vmul.f32 %v2058, %v1567
  %v2060 = vmul.f32 %v2057, %v1571
  %2061 = vrot.lane.b32.xlu0 %v2035, 1
  %v2062 = vpop.permute.xlu0 %2061
  %2063 = vrot.lane.b32.xlu0 %v2036, 1
  %v2064 = vpop.permute.xlu0 %2063
  %v2065 = vsel %vm381, %v2062, %v2064
  %v2066 = vsel %vm381, %v2064, %v2062
  %v2067 = vmul.f32 %v2066, %v1580
  %v2068 = vmul.f32 %v2065, %v1584
  %2069 = vrot.lane.b32.xlu0 %v2035, 127
  %v2070 = vpop.permute.xlu0 %2069
  %2071 = vrot.lane.b32.xlu0 %v2036, 127
  %v2072 = vpop.permute.xlu0 %2071
  %v2073 = vsel %vm500, %v2070, %v2072
  %v2074 = vsel %vm500, %v2072, %v2070
  %v2075 = vmul.f32 %v2073, %v1593
  %v2076 = vmul.f32 %v2074, %v1597
  %2077 = vrot.lane.b32.xlu0 %v2035, 113
  %v2078 = vpop.permute.xlu0 %2077
  %2079 = vrot.lane.b32.xlu0 %v2036, 113
  %v2080 = vpop.permute.xlu0 %2079
  %v2081 = vsel %vm609, %v2078, %v2080
  %v2082 = vsel %vm609, %v2080, %v2078
  %v2083 = vmul.f32 %v2081, %v1606
  %v2084 = vmul.f32 %v2082, %v1610
  %2085 = vrot.lane.b32.xlu0 %v2035, 112
  %v2086 = vpop.permute.xlu0 %2085
  %2087 = vrot.lane.b32.xlu0 %v2036, 112
  %v2088 = vpop.permute.xlu0 %2087
  %v2089 = vsel %vm718, %v2086, %v2088
  %v2090 = vsel %vm718, %v2088, %v2086
  %v2091 = vmul.f32 %v2089, %v1619
  %v2092 = vmul.f32 %v2090, %v1623
  %2093 = vrot.lane.b32.xlu0 %v2035, 111
  %v2094 = vpop.permute.xlu0 %2093
  %2095 = vrot.lane.b32.xlu0 %v2036, 111
  %v2096 = vpop.permute.xlu0 %2095
  %v2097 = vsel %vm827, %v2094, %v2096
  %v2098 = vsel %vm827, %v2096, %v2094
  %v2099 = vmul.f32 %v2097, %v1632
  %v2100 = vmul.f32 %v2098, %v1636
  %v2101 = vld [vmem:[#allocation3 + $0x20] sm:$0xff]
  %v2102 = vld [vmem:[#allocation3 + $0x28] sm:$0xff]
  %v2103 = vld [vmem:[#allocation3 + $0x70] sm:$0xff]
  %v2104 = vld [vmem:[#allocation3 + $0x78] sm:$0xff]
  %v2105 = vld [vmem:[#allocation3 + $0xc0] sm:$0xff]
  %v2106 = vld [vmem:[#allocation3 + $0xc8] sm:$0xff]
  %v2107 = vld [vmem:[#allocation3 + $0x110] sm:$0xff]
  %v2108 = vld [vmem:[#allocation3 + $0x118] sm:$0xff]
  %2109 = vmatprep.subr.mxu0 %v2044
  %2110 = vmatpush1.msra.mxu0 %v2043
  %2111 = vmatprep.subr.mxu0 %v2052
  %2112 = vmatpush1.msra.mxu0 %v2051
  %2113 = vmatprep.subr.mxu0 %v2060
  %2114 = vmatpush1.msra.mxu0 %v2059
  %2115 = vmatprep.subr.mxu0 %v2068
  %2116 = vmatpush1.msra.mxu0 %v2067
  %2117 = vmatprep.subr.mxu0 %v2036
  %2118 = vmatpush1.msra.mxu0 %v2035
  %2119 = vmatprep.subr.mxu0 %v2076
  %2120 = vmatpush1.msra.mxu0 %v2075
  %2121 = vmatprep.subr.mxu0 %v2084
  %2122 = vmatpush1.msra.mxu0 %v2083
  %2123 = vmatprep.subr.mxu0 %v2092
  %2124 = vmatpush1.msra.mxu0 %v2091
  %2125 = vmatprep.subr.mxu0 %v2100
  %2126 = vmatpush1.msra.mxu0 %v2099
  %2127 = vmatprep.subr.mxu0 0.0
  %2128 = vmatpush1.msra.mxu0 0.0
  %2129 = vmatprep.subr.mxu0 0.0
  %2130 = vmatpush1.msra.mxu0 0.0
  %2131 = vmatprep.subr.mxu0 0.0
  %2132 = vmatpush1.msra.mxu0 0.0
  %2133 = vmatprep.subr.mxu0 0.0
  %2134 = vmatpush1.msra.mxu0 0.0
  %2135 = vmatprep.subr.mxu0 0.0
  %2136 = vmatpush1.msra.mxu0 0.0
  %2137 = vmatprep.subr.mxu0 0.0
  %2138 = vmatpush1.msra.mxu0 0.0
  %2139 = vmatprep.subr.mxu0 0.0
  %2140 = vmatpush1.msra.mxu0 0.0
  %2141 = vmatprep.subr.mxu0 0.0
  %2142 = vmatpush1.msra.mxu0 0.0
  %2143 = vmatprep.subr.mxu0 0.0
  %2144 = vmatpush1.msra.mxu0 0.0
  %2145 = vmatprep.subr.mxu0 0.0
  %2146 = vmatpush1.msra.mxu0 0.0
  %2147 = vmatprep.subr.mxu0 0.0
  %2148 = vmatpush1.msra.mxu0 0.0
  %2149 = vmatprep.subr.mxu0 0.0
  %2150 = vmatpush1.msra.mxu0 0.0
  %2151 = vmatprep.subr.mxu0 0.0
  %2152 = vmatpush1.msra.mxu0 0.0
  %2153 = vmatprep.subr.mxu0 0.0
  %2154 = vmatpush1.msra.mxu0 0.0
  %2155 = vmatprep.subr.mxu0 0.0
  %2156 = vmatpush1.msra.mxu0 0.0
  %2157 = vmatprep.subr.mxu0 0.0
  %2158 = vmatpush1.msra.mxu0 0.0
  %2159 = vmatprep.subr.mxu0 0.0
  %2160 = vmatpush1.msra.mxu0 0.0
  %2161 = vmatprep.subr.mxu0 0.0
  %2162 = vmatpush1.msra.mxu0 0.0
  %2163 = vmatprep.subr.mxu0 0.0
  %2164 = vmatpush1.msra.mxu0 0.0
  %2165 = vmatprep.subr.mxu0 0.0
  %2166 = vmatpush1.msra.mxu0 0.0
  %2167 = vmatprep.subr.mxu0 0.0
  %2168 = vmatpush1.msra.mxu0 0.0
  %2169 = vmatprep.subr.mxu0 0.0
  %2170 = vmatpush1.msra.mxu0 0.0
  %2171 = vmatprep.subr.mxu0 0.0
  %2172 = vmatpush1.msra.mxu0 0.0
  %2173 = vmatprep.mubr.f32.mxu0 0.0
  %2174 = vmatmul.mubr.f32.gmra.mrb[0].mxu0 %v1680
  %v2175 = vpop.f32.mrb[0].mxu0
  %v2176 = vadd.f32 %v2101, %v2175
  %v2177 = vpop.f32.mrb[0].mxu0
  %v2178 = vadd.f32 %v2102, %v2177
  %2179 = vmatprep.mubr.f32.mxu0 0.0
  %2180 = vmatmul.mubr.f32.gmra.mrb[0].mxu0 %v1683
  %v2181 = vpop.f32.mrb[0].mxu0
  %v2182 = vadd.f32 %v2103, %v2181
  %v2183 = vpop.f32.mrb[0].mxu0
  %v2184 = vadd.f32 %v2104, %v2183
  %2185 = vmatprep.mubr.f32.mxu0 0.0
  %2186 = vmatmul.mubr.f32.gmra.mrb[0].mxu0 %v1686
  %v2187 = vpop.f32.mrb[0].mxu0
  %v2188 = vadd.f32 %v2105, %v2187
  %v2189 = vpop.f32.mrb[0].mxu0
  %v2190 = vadd.f32 %v2106, %v2189
  %2191 = vmatprep.mubr.f32.mxu0 0.0
  %2192 = vmatmul.mubr.f32.gmra.mrb[0].mxu0 %v1689
  %v2193 = vpop.f32.mrb[0].mxu0
  %v2194 = vadd.f32 %v2107, %v2193
  %v2195 = vpop.f32.mrb[0].mxu0
  %v2196 = vadd.f32 %v2108, %v2195
  %2197 = vdwg.mxu0
  %v2198 = vxor.u32 %v2176, 2147483648
  %v2199 = vxor.u32 %v2178, 2147483648
  %v2200 = vxor.u32 %v2182, 2147483648
  %v2201 = vxor.u32 %v2184, 2147483648
  %v2202 = vxor.u32 %v2188, 2147483648
  %v2203 = vxor.u32 %v2190, 2147483648
  %v2204 = vmul.f32 %v2198, 1.442695
  %v2205 = vpow.pop %v2204
  %v2206 = vmul.f32 %v2199, 1.442695
  %v2207 = vpow.pop %v2206
  %v2208 = vmul.f32 %v2200, 1.442695
  %v2209 = vpow.pop %v2208
  %v2210 = vmul.f32 %v2201, 1.442695
  %v2211 = vpow.pop %v2210
  %v2212 = vmul.f32 %v2202, 1.442695
  %v2213 = vpow.pop %v2212
  %v2214 = vmul.f32 %v2203, 1.442695
  %v2215 = vpow.pop %v2214
  %v2216 = vadd.f32 %v2205, 1.0
  %v2217 = vadd.f32 %v2207, 1.0
  %v2218 = vadd.f32 %v2209, 1.0
  %v2219 = vadd.f32 %v2211, 1.0
  %v2220 = vadd.f32 %v2213, 1.0
  %v2221 = vadd.f32 %v2215, 1.0
  %v2222 = vrcp.pop %v2216
  %v2223 = vmul.f32 1.0, %v2222
  %v2224 = vrcp.pop %v2217
  %v2225 = vmul.f32 1.0, %v2224
  %v2226 = vrcp.pop %v2218
  %v2227 = vmul.f32 1.0, %v2226
  %v2228 = vrcp.pop %v2219
  %v2229 = vmul.f32 1.0, %v2228
  %v2230 = vrcp.pop %v2220
  %v2231 = vmul.f32 1.0, %v2230
  %v2232 = vrcp.pop %v2221
  %v2233 = vmul.f32 1.0, %v2232
  %v2234 = vtanh.pop %v2194
  %v2235 = vtanh.pop %v2196
  %v2236 = vmul.f32 %v2227, %v2031
  %v2237 = vmul.f32 %v2229, %v2032
  %v2238 = vmul.f32 %v2223, %v2234
  %v2239 = vmul.f32 %v2225, %v2235
  %v2240 = vadd.f32 %v2236, %v2238
  %v2241 = vadd.f32 %v2237, %v2239
  %v2242 = vtanh.pop %v2240
  %v2243 = vtanh.pop %v2241
  %v2244 = vmul.f32 %v2231, %v2242
  %v2245 = vmul.f32 %v2233, %v2243
  %2246 = vrot.lane.b32.xlu0 %v2244, 17
  %v2247 = vpop.permute.xlu0 %2246
  %2248 = vrot.lane.b32.xlu0 %v2245, 17
  %v2249 = vpop.permute.xlu0 %2248
  %v2250 = vsel %vm55, %v2247, %v2249
  %v2251 = vsel %vm55, %v2249, %v2247
  %v2252 = vmul.f32 %v2251, %v1541
  %v2253 = vmul.f32 %v2250, %v1545
  %2254 = vrot.lane.b32.xlu0 %v2244, 16
  %v2255 = vpop.permute.xlu0 %2254
  %2256 = vrot.lane.b32.xlu0 %v2245, 16
  %v2257 = vpop.permute.xlu0 %2256
  %v2258 = vsel %vm163, %v2255, %v2257
  %v2259 = vsel %vm163, %v2257, %v2255
  %v2260 = vmul.f32 %v2259, %v1554
  %v2261 = vmul.f32 %v2258, %v1558
  %2262 = vrot.lane.b32.xlu0 %v2244, 15
  %v2263 = vpop.permute.xlu0 %2262
  %2264 = vrot.lane.b32.xlu0 %v2245, 15
  %v2265 = vpop.permute.xlu0 %2264
  %v2266 = vsel %vm272, %v2263, %v2265
  %v2267 = vsel %vm272, %v2265, %v2263
  %v2268 = vmul.f32 %v2267, %v1567
  %v2269 = vmul.f32 %v2266, %v1571
  %2270 = vrot.lane.b32.xlu0 %v2244, 1
  %v2271 = vpop.permute.xlu0 %2270
  %2272 = vrot.lane.b32.xlu0 %v2245, 1
  %v2273 = vpop.permute.xlu0 %2272
  %v2274 = vsel %vm381, %v2271, %v2273
  %v2275 = vsel %vm381, %v2273, %v2271
  %v2276 = vmul.f32 %v2275, %v1580
  %v2277 = vmul.f32 %v2274, %v1584
  %2278 = vrot.lane.b32.xlu0 %v2244, 127
  %v2279 = vpop.permute.xlu0 %2278
  %2280 = vrot.lane.b32.xlu0 %v2245, 127
  %v2281 = vpop.permute.xlu0 %2280
  %v2282 = vsel %vm500, %v2279, %v2281
  %v2283 = vsel %vm500, %v2281, %v2279
  %v2284 = vmul.f32 %v2282, %v1593
  %v2285 = vmul.f32 %v2283, %v1597
  %2286 = vrot.lane.b32.xlu0 %v2244, 113
  %v2287 = vpop.permute.xlu0 %2286
  %2288 = vrot.lane.b32.xlu0 %v2245, 113
  %v2289 = vpop.permute.xlu0 %2288
  %v2290 = vsel %vm609, %v2287, %v2289
  %v2291 = vsel %vm609, %v2289, %v2287
  %v2292 = vmul.f32 %v2290, %v1606
  %v2293 = vmul.f32 %v2291, %v1610
  %2294 = vrot.lane.b32.xlu0 %v2244, 112
  %v2295 = vpop.permute.xlu0 %2294
  %2296 = vrot.lane.b32.xlu0 %v2245, 112
  %v2297 = vpop.permute.xlu0 %2296
  %v2298 = vsel %vm718, %v2295, %v2297
  %v2299 = vsel %vm718, %v2297, %v2295
  %v2300 = vmul.f32 %v2298, %v1619
  %v2301 = vmul.f32 %v2299, %v1623
  %2302 = vrot.lane.b32.xlu0 %v2244, 111
  %v2303 = vpop.permute.xlu0 %2302
  %2304 = vrot.lane.b32.xlu0 %v2245, 111
  %v2305 = vpop.permute.xlu0 %2304
  %v2306 = vsel %vm827, %v2303, %v2305
  %v2307 = vsel %vm827, %v2305, %v2303
  %v2308 = vmul.f32 %v2306, %v1632
  %v2309 = vmul.f32 %v2307, %v1636
  %v2310 = vld [vmem:[#allocation3 + $0x30] sm:$0xff]
  %v2311 = vld [vmem:[#allocation3 + $0x38] sm:$0xff]
  %v2312 = vld [vmem:[#allocation3 + $0x80] sm:$0xff]
  %v2313 = vld [vmem:[#allocation3 + $0x88] sm:$0xff]
  %v2314 = vld [vmem:[#allocation3 + $0xd0] sm:$0xff]
  %v2315 = vld [vmem:[#allocation3 + $0xd8] sm:$0xff]
  %v2316 = vld [vmem:[#allocation3 + $0x120] sm:$0xff]
  %v2317 = vld [vmem:[#allocation3 + $0x128] sm:$0xff]
  %2318 = vmatprep.subr.mxu0 %v2253
  %2319 = vmatpush1.msra.mxu0 %v2252
  %2320 = vmatprep.subr.mxu0 %v2261
  %2321 = vmatpush1.msra.mxu0 %v2260
  %2322 = vmatprep.subr.mxu0 %v2269
  %2323 = vmatpush1.msra.mxu0 %v2268
  %2324 = vmatprep.subr.mxu0 %v2277
  %2325 = vmatpush1.msra.mxu0 %v2276
  %2326 = vmatprep.subr.mxu0 %v2245
  %2327 = vmatpush1.msra.mxu0 %v2244
  %2328 = vmatprep.subr.mxu0 %v2285
  %2329 = vmatpush1.msra.mxu0 %v2284
  %2330 = vmatprep.subr.mxu0 %v2293
  %2331 = vmatpush1.msra.mxu0 %v2292
  %2332 = vmatprep.subr.mxu0 %v2301
  %2333 = vmatpush1.msra.mxu0 %v2300
  %2334 = vmatprep.subr.mxu0 %v2309
  %2335 = vmatpush1.msra.mxu0 %v2308
  %2336 = vmatprep.subr.mxu0 0.0
  %2337 = vmatpush1.msra.mxu0 0.0
  %2338 = vmatprep.subr.mxu0 0.0
  %2339 = vmatpush1.msra.mxu0 0.0
  %2340 = vmatprep.subr.mxu0 0.0
  %2341 = vmatpush1.msra.mxu0 0.0
  %2342 = vmatprep.subr.mxu0 0.0
  %2343 = vmatpush1.msra.mxu0 0.0
  %2344 = vmatprep.subr.mxu0 0.0
  %2345 = vmatpush1.msra.mxu0 0.0
  %2346 = vmatprep.subr.mxu0 0.0
  %2347 = vmatpush1.msra.mxu0 0.0
  %2348 = vmatprep.subr.mxu0 0.0
  %2349 = vmatpush1.msra.mxu0 0.0
  %2350 = vmatprep.subr.mxu0 0.0
  %2351 = vmatpush1.msra.mxu0 0.0
  %2352 = vmatprep.subr.mxu0 0.0
  %2353 = vmatpush1.msra.mxu0 0.0
  %2354 = vmatprep.subr.mxu0 0.0
  %2355 = vmatpush1.msra.mxu0 0.0
  %2356 = vmatprep.subr.mxu0 0.0
  %2357 = vmatpush1.msra.mxu0 0.0
  %2358 = vmatprep.subr.mxu0 0.0
  %2359 = vmatpush1.msra.mxu0 0.0
  %2360 = vmatprep.subr.mxu0 0.0
  %2361 = vmatpush1.msra.mxu0 0.0
  %2362 = vmatprep.subr.mxu0 0.0
  %2363 = vmatpush1.msra.mxu0 0.0
  %2364 = vmatprep.subr.mxu0 0.0
  %2365 = vmatpush1.msra.mxu0 0.0
  %2366 = vmatprep.subr.mxu0 0.0
  %2367 = vmatpush1.msra.mxu0 0.0
  %2368 = vmatprep.subr.mxu0 0.0
  %2369 = vmatpush1.msra.mxu0 0.0
  %2370 = vmatprep.subr.mxu0 0.0
  %2371 = vmatpush1.msra.mxu0 0.0
  %2372 = vmatprep.subr.mxu0 0.0
  %2373 = vmatpush1.msra.mxu0 0.0
  %2374 = vmatprep.subr.mxu0 0.0
  %2375 = vmatpush1.msra.mxu0 0.0
  %2376 = vmatprep.subr.mxu0 0.0
  %2377 = vmatpush1.msra.mxu0 0.0
  %2378 = vmatprep.subr.mxu0 0.0
  %2379 = vmatpush1.msra.mxu0 0.0
  %2380 = vmatprep.subr.mxu0 0.0
  %2381 = vmatpush1.msra.mxu0 0.0
  %2382 = vmatprep.mubr.f32.mxu0 0.0
  %2383 = vmatmul.mubr.f32.gmra.mrb[0].mxu0 %v1680
  %v2384 = vpop.f32.mrb[0].mxu0
  %v2385 = vadd.f32 %v2310, %v2384
  %v2386 = vpop.f32.mrb[0].mxu0
  %v2387 = vadd.f32 %v2311, %v2386
  %2388 = vmatprep.mubr.f32.mxu0 0.0
  %2389 = vmatmul.mubr.f32.gmra.mrb[0].mxu0 %v1683
  %v2390 = vpop.f32.mrb[0].mxu0
  %v2391 = vadd.f32 %v2312, %v2390
  %v2392 = vpop.f32.mrb[0].mxu0
  %v2393 = vadd.f32 %v2313, %v2392
  %2394 = vmatprep.mubr.f32.mxu0 0.0
  %2395 = vmatmul.mubr.f32.gmra.mrb[0].mxu0 %v1686
  %v2396 = vpop.f32.mrb[0].mxu0
  %v2397 = vadd.f32 %v2314, %v2396
  %v2398 = vpop.f32.mrb[0].mxu0
  %v2399 = vadd.f32 %v2315, %v2398
  %2400 = vmatprep.mubr.f32.mxu0 0.0
  %2401 = vmatmul.mubr.f32.gmra.mrb[0].mxu0 %v1689
  %v2402 = vpop.f32.mrb[0].mxu0
  %v2403 = vadd.f32 %v2316, %v2402
  %v2404 = vpop.f32.mrb[0].mxu0
  %v2405 = vadd.f32 %v2317, %v2404
  %2406 = vdwg.mxu0
  %v2407 = vxor.u32 %v2385, 2147483648
  %v2408 = vxor.u32 %v2387, 2147483648
  %v2409 = vxor.u32 %v2391, 2147483648
  %v2410 = vxor.u32 %v2393, 2147483648
  %v2411 = vxor.u32 %v2397, 2147483648
  %v2412 = vxor.u32 %v2399, 2147483648
  %v2413 = vmul.f32 %v2407, 1.442695
  %v2414 = vpow.pop %v2413
  %v2415 = vmul.f32 %v2408, 1.442695
  %v2416 = vpow.pop %v2415
  %v2417 = vmul.f32 %v2409, 1.442695
  %v2418 = vpow.pop %v2417
  %v2419 = vmul.f32 %v2410, 1.442695
  %v2420 = vpow.pop %v2419
  %v2421 = vmul.f32 %v2411, 1.442695
  %v2422 = vpow.pop %v2421
  %v2423 = vmul.f32 %v2412, 1.442695
  %v2424 = vpow.pop %v2423
  %v2425 = vadd.f32 %v2414, 1.0
  %v2426 = vadd.f32 %v2416, 1.0
  %v2427 = vadd.f32 %v2418, 1.0
  %v2428 = vadd.f32 %v2420, 1.0
  %v2429 = vadd.f32 %v2422, 1.0
  %v2430 = vadd.f32 %v2424, 1.0
  %v2431 = vrcp.pop %v2425
  %v2432 = vmul.f32 1.0, %v2431
  %v2433 = vrcp.pop %v2426
  %v2434 = vmul.f32 1.0, %v2433
  %v2435 = vrcp.pop %v2427
  %v2436 = vmul.f32 1.0, %v2435
  %v2437 = vrcp.pop %v2428
  %v2438 = vmul.f32 1.0, %v2437
  %v2439 = vrcp.pop %v2429
  %v2440 = vmul.f32 1.0, %v2439
  %v2441 = vrcp.pop %v2430
  %v2442 = vmul.f32 1.0, %v2441
  %v2443 = vtanh.pop %v2403
  %v2444 = vtanh.pop %v2405
  %v2445 = vmul.f32 %v2436, %v2240
  %v2446 = vmul.f32 %v2438, %v2241
  %v2447 = vmul.f32 %v2432, %v2443
  %v2448 = vmul.f32 %v2434, %v2444
  %v2449 = vadd.f32 %v2445, %v2447
  %v2450 = vadd.f32 %v2446, %v2448
  %v2451 = vtanh.pop %v2449
  %v2452 = vtanh.pop %v2450
  %v2453 = vmul.f32 %v2440, %v2451
  %v2454 = vmul.f32 %v2442, %v2452
  %2455 = vrot.lane.b32.xlu0 %v2453, 17
  %v2456 = vpop.permute.xlu0 %2455
  %2457 = vrot.lane.b32.xlu0 %v2454, 17
  %v2458 = vpop.permute.xlu0 %2457
  %v2459 = vsel %vm55, %v2456, %v2458
  %v2460 = vsel %vm55, %v2458, %v2456
  %v2461 = vmul.f32 %v2460, %v1541
  %v2462 = vmul.f32 %v2459, %v1545
  %2463 = vrot.lane.b32.xlu0 %v2453, 16
  %v2464 = vpop.permute.xlu0 %2463
  %2465 = vrot.lane.b32.xlu0 %v2454, 16
  %v2466 = vpop.permute.xlu0 %2465
  %v2467 = vsel %vm163, %v2464, %v2466
  %v2468 = vsel %vm163, %v2466, %v2464
  %v2469 = vmul.f32 %v2468, %v1554
  %v2470 = vmul.f32 %v2467, %v1558
  %2471 = vrot.lane.b32.xlu0 %v2453, 15
  %v2472 = vpop.permute.xlu0 %2471
  %2473 = vrot.lane.b32.xlu0 %v2454, 15
  %v2474 = vpop.permute.xlu0 %2473
  %v2475 = vsel %vm272, %v2472, %v2474
  %v2476 = vsel %vm272, %v2474, %v2472
  %v2477 = vmul.f32 %v2476, %v1567
  %v2478 = vmul.f32 %v2475, %v1571
  %2479 = vrot.lane.b32.xlu0 %v2453, 1
  %v2480 = vpop.permute.xlu0 %2479
  %2481 = vrot.lane.b32.xlu0 %v2454, 1
  %v2482 = vpop.permute.xlu0 %2481
  %v2483 = vsel %vm381, %v2480, %v2482
  %v2484 = vsel %vm381, %v2482, %v2480
  %v2485 = vmul.f32 %v2484, %v1580
  %v2486 = vmul.f32 %v2483, %v1584
  %2487 = vrot.lane.b32.xlu0 %v2453, 127
  %v2488 = vpop.permute.xlu0 %2487
  %2489 = vrot.lane.b32.xlu0 %v2454, 127
  %v2490 = vpop.permute.xlu0 %2489
  %v2491 = vsel %vm500, %v2488, %v2490
  %v2492 = vsel %vm500, %v2490, %v2488
  %v2493 = vmul.f32 %v2491, %v1593
  %v2494 = vmul.f32 %v2492, %v1597
  %2495 = vrot.lane.b32.xlu0 %v2453, 113
  %v2496 = vpop.permute.xlu0 %2495
  %2497 = vrot.lane.b32.xlu0 %v2454, 113
  %v2498 = vpop.permute.xlu0 %2497
  %v2499 = vsel %vm609, %v2496, %v2498
  %v2500 = vsel %vm609, %v2498, %v2496
  %v2501 = vmul.f32 %v2499, %v1606
  %v2502 = vmul.f32 %v2500, %v1610
  %2503 = vrot.lane.b32.xlu0 %v2453, 112
  %v2504 = vpop.permute.xlu0 %2503
  %2505 = vrot.lane.b32.xlu0 %v2454, 112
  %v2506 = vpop.permute.xlu0 %2505
  %v2507 = vsel %vm718, %v2504, %v2506
  %v2508 = vsel %vm718, %v2506, %v2504
  %v2509 = vmul.f32 %v2507, %v1619
  %v2510 = vmul.f32 %v2508, %v1623
  %2511 = vrot.lane.b32.xlu0 %v2453, 111
  %v2512 = vpop.permute.xlu0 %2511
  %2513 = vrot.lane.b32.xlu0 %v2454, 111
  %v2514 = vpop.permute.xlu0 %2513
  %v2515 = vsel %vm827, %v2512, %v2514
  %v2516 = vsel %vm827, %v2514, %v2512
  %v2517 = vmul.f32 %v2515, %v1632
  %v2518 = vmul.f32 %v2516, %v1636
  %v2519 = vld [vmem:[#allocation3 + $0x40] sm:$0xff]
  %v2520 = vld [vmem:[#allocation3 + $0x48] sm:$0xff]
  %v2521 = vld [vmem:[#allocation3 + $0x90] sm:$0xff]
  %v2522 = vld [vmem:[#allocation3 + $0x98] sm:$0xff]
  %v2523 = vld [vmem:[#allocation3 + $0xe0] sm:$0xff]
  %v2524 = vld [vmem:[#allocation3 + $0xe8] sm:$0xff]
  %v2525 = vld [vmem:[#allocation3 + $0x130] sm:$0xff]
  %v2526 = vld [vmem:[#allocation3 + $0x138] sm:$0xff]
  %2527 = vmatprep.subr.mxu0 %v2462
  %2528 = vmatpush1.msra.mxu0 %v2461
  %2529 = vmatprep.subr.mxu0 %v2470
  %2530 = vmatpush1.msra.mxu0 %v2469
  %2531 = vmatprep.subr.mxu0 %v2478
  %2532 = vmatpush1.msra.mxu0 %v2477
  %2533 = vmatprep.subr.mxu0 %v2486
  %2534 = vmatpush1.msra.mxu0 %v2485
  %2535 = vmatprep.subr.mxu0 %v2454
  %2536 = vmatpush1.msra.mxu0 %v2453
  %2537 = vmatprep.subr.mxu0 %v2494
  %2538 = vmatpush1.msra.mxu0 %v2493
  %2539 = vmatprep.subr.mxu0 %v2502
  %2540 = vmatpush1.msra.mxu0 %v2501
  %2541 = vmatprep.subr.mxu0 %v2510
  %2542 = vmatpush1.msra.mxu0 %v2509
  %2543 = vmatprep.subr.mxu0 %v2518
  %2544 = vmatpush1.msra.mxu0 %v2517
  %2545 = vmatprep.subr.mxu0 0.0
  %2546 = vmatpush1.msra.mxu0 0.0
  %2547 = vmatprep.subr.mxu0 0.0
  %2548 = vmatpush1.msra.mxu0 0.0
  %2549 = vmatprep.subr.mxu0 0.0
  %2550 = vmatpush1.msra.mxu0 0.0
  %2551 = vmatprep.subr.mxu0 0.0
  %2552 = vmatpush1.msra.mxu0 0.0
  %2553 = vmatprep.subr.mxu0 0.0
  %2554 = vmatpush1.msra.mxu0 0.0
  %2555 = vmatprep.subr.mxu0 0.0
  %2556 = vmatpush1.msra.mxu0 0.0
  %2557 = vmatprep.subr.mxu0 0.0
  %2558 = vmatpush1.msra.mxu0 0.0
  %2559 = vmatprep.subr.mxu0 0.0
  %2560 = vmatpush1.msra.mxu0 0.0
  %2561 = vmatprep.subr.mxu0 0.0
  %2562 = vmatpush1.msra.mxu0 0.0
  %2563 = vmatprep.subr.mxu0 0.0
  %2564 = vmatpush1.msra.mxu0 0.0
  %2565 = vmatprep.subr.mxu0 0.0
  %2566 = vmatpush1.msra.mxu0 0.0
  %2567 = vmatprep.subr.mxu0 0.0
  %2568 = vmatpush1.msra.mxu0 0.0
  %2569 = vmatprep.subr.mxu0 0.0
  %2570 = vmatpush1.msra.mxu0 0.0
  %2571 = vmatprep.subr.mxu0 0.0
  %2572 = vmatpush1.msra.mxu0 0.0
  %2573 = vmatprep.subr.mxu0 0.0
  %2574 = vmatpush1.msra.mxu0 0.0
  %2575 = vmatprep.subr.mxu0 0.0
  %2576 = vmatpush1.msra.mxu0 0.0
  %2577 = vmatprep.subr.mxu0 0.0
  %2578 = vmatpush1.msra.mxu0 0.0
  %2579 = vmatprep.subr.mxu0 0.0
  %2580 = vmatpush1.msra.mxu0 0.0
  %2581 = vmatprep.subr.mxu0 0.0
  %2582 = vmatpush1.msra.mxu0 0.0
  %2583 = vmatprep.subr.mxu0 0.0
  %2584 = vmatpush1.msra.mxu0 0.0
  %2585 = vmatprep.subr.mxu0 0.0
  %2586 = vmatpush1.msra.mxu0 0.0
  %2587 = vmatprep.subr.mxu0 0.0
  %2588 = vmatpush1.msra.mxu0 0.0
  %2589 = vmatprep.subr.mxu0 0.0
  %2590 = vmatpush1.msra.mxu0 0.0
  %2591 = vmatprep.mubr.f32.mxu0 0.0
  %2592 = vmatmul.mubr.f32.gmra.mrb[0].mxu0 %v1680
  %v2593 = vpop.f32.mrb[0].mxu0
  %v2594 = vadd.f32 %v2519, %v2593
  %v2595 = vpop.f32.mrb[0].mxu0
  %v2596 = vadd.f32 %v2520, %v2595
  %2597 = vmatprep.mubr.f32.mxu0 0.0
  %2598 = vmatmul.mubr.f32.gmra.mrb[0].mxu0 %v1683
  %v2599 = vpop.f32.mrb[0].mxu0
  %v2600 = vadd.f32 %v2521, %v2599
  %v2601 = vpop.f32.mrb[0].mxu0
  %v2602 = vadd.f32 %v2522, %v2601
  %2603 = vmatprep.mubr.f32.mxu0 0.0
  %2604 = vmatmul.mubr.f32.gmra.mrb[0].mxu0 %v1686
  %v2605 = vpop.f32.mrb[0].mxu0
  %v2606 = vadd.f32 %v2523, %v2605
  %v2607 = vpop.f32.mrb[0].mxu0
  %v2608 = vadd.f32 %v2524, %v2607
  %2609 = vmatprep.mubr.f32.mxu0 0.0
  %2610 = vmatmul.mubr.f32.gmra.mrb[0].mxu0 %v1689
  %v2611 = vpop.f32.mrb[0].mxu0
  %v2612 = vadd.f32 %v2525, %v2611
  %v2613 = vpop.f32.mrb[0].mxu0
  %v2614 = vadd.f32 %v2526, %v2613
  %2615 = vdwg.mxu0
  %v2616 = vxor.u32 %v2594, 2147483648
  %v2617 = vxor.u32 %v2596, 2147483648
  %v2618 = vxor.u32 %v2600, 2147483648
  %v2619 = vxor.u32 %v2602, 2147483648
  %v2620 = vxor.u32 %v2606, 2147483648
  %v2621 = vxor.u32 %v2608, 2147483648
  %v2622 = vmul.f32 %v2616, 1.442695
  %v2623 = vpow.pop %v2622
  %v2624 = vmul.f32 %v2617, 1.442695
  %v2625 = vpow.pop %v2624
  %v2626 = vmul.f32 %v2618, 1.442695
  %v2627 = vpow.pop %v2626
  %v2628 = vmul.f32 %v2619, 1.442695
  %v2629 = vpow.pop %v2628
  %v2630 = vmul.f32 %v2620, 1.442695
  %v2631 = vpow.pop %v2630
  %v2632 = vmul.f32 %v2621, 1.442695
  %v2633 = vpow.pop %v2632
  %v2634 = vadd.f32 %v2623, 1.0
  %v2635 = vadd.f32 %v2625, 1.0
  %v2636 = vadd.f32 %v2627, 1.0
  %v2637 = vadd.f32 %v2629, 1.0
  %v2638 = vadd.f32 %v2631, 1.0
  %v2639 = vadd.f32 %v2633, 1.0
  %v2640 = vrcp.pop %v2634
  %v2641 = vmul.f32 1.0, %v2640
  %v2642 = vrcp.pop %v2635
  %v2643 = vmul.f32 1.0, %v2642
  %v2644 = vrcp.pop %v2636
  %v2645 = vmul.f32 1.0, %v2644
  %v2646 = vrcp.pop %v2637
  %v2647 = vmul.f32 1.0, %v2646
  %v2648 = vrcp.pop %v2638
  %v2649 = vmul.f32 1.0, %v2648
  %v2650 = vrcp.pop %v2639
  %v2651 = vmul.f32 1.0, %v2650
  %v2652 = vtanh.pop %v2612
  %v2653 = vtanh.pop %v2614
  %v2654 = vmul.f32 %v2645, %v2449
  %v2655 = vmul.f32 %v2647, %v2450
  %v2656 = vmul.f32 %v2641, %v2652
  %v2657 = vmul.f32 %v2643, %v2653
  %v2658 = vadd.f32 %v2654, %v2656
  %v2659 = vadd.f32 %v2655, %v2657
  %v2660 = vtanh.pop %v2658
  %v2661 = vtanh.pop %v2659
  %v2662 = vmul.f32 %v2649, %v2660
  %v2663 = vmul.f32 %v2651, %v2661
  %v2664 = vmul.f32 %v1826, %v2662
  %v2665 = vmul.f32 %v1827, %v2663
  %v2666 = vmul.f32 %v2035, %v2662
  %v2667 = vmul.f32 %v2036, %v2663
  %v2668 = vmul.f32 %v2244, %v2662
  %v2669 = vmul.f32 %v2245, %v2663
  %v2670 = vmul.f32 %v2453, %v2662
  %v2671 = vmul.f32 %v2454, %v2663
  %v2672 = vmul.f32 %v2662, %v2662
  %v2673 = vmul.f32 %v2663, %v2663
  %v2674 = vadd.f32 %v2664, %v2665
  %2675 = vadd.xlane.f32.xlu0 %v2674
  %v2676 = vpop.xlane.xlu0 %2675
  %v2677 = vadd.f32 %v2666, %v2667
  %2678 = vadd.xlane.f32.xlu0 %v2677
  %v2679 = vpop.xlane.xlu0 %2678
  %v2680 = vadd.f32 %v2668, %v2669
  %2681 = vadd.xlane.f32.xlu0 %v2680
  %v2682 = vpop.xlane.xlu0 %2681
  %v2683 = vadd.f32 %v2670, %v2671
  %2684 = vadd.xlane.f32.xlu0 %v2683
  %v2685 = vpop.xlane.xlu0 %2684
  %v2686 = vadd.f32 %v2672, %v2673
  %2687 = vadd.xlane.f32.xlu0 %v2686
  %v2688 = vpop.xlane.xlu0 %2687
  %vm2689 = vcmask 7168
  %v2690 = vsel %vm2689, %v2676, 0.0
  %2691 = vadd.xlane.f32.xlu0 %v2690
  %v2692 = vpop.xlane.xlu0 %2691
  %v2693 = vrot.slane %v2692, 4
  %v2694 = vadd.f32 %v2692, %v2693
  %v2695 = vrot.slane %v2694, 2
  %v2696 = vadd.f32 %v2694, %v2695
  %v2697 = vrot.slane %v2696, 1
  %v2698 = vadd.f32 %v2696, %v2697
  %s2699 = vtos %v2698
  %s2700 = smul.f32 %s2699, 0.2
  %v2701 = vsel %vm2689, %v2679, 0.0
  %2702 = vadd.xlane.f32.xlu0 %v2701
  %v2703 = vpop.xlane.xlu0 %2702
  %v2704 = vrot.slane %v2703, 4
  %v2705 = vadd.f32 %v2703, %v2704
  %v2706 = vrot.slane %v2705, 2
  %v2707 = vadd.f32 %v2705, %v2706
  %v2708 = vrot.slane %v2707, 1
  %v2709 = vadd.f32 %v2707, %v2708
  %s2710 = vtos %v2709
  %s2711 = smul.f32 %s2710, 0.2
  %v2712 = vsel %vm2689, %v2682, 0.0
  %2713 = vadd.xlane.f32.xlu0 %v2712
  %v2714 = vpop.xlane.xlu0 %2713
  %v2715 = vrot.slane %v2714, 4
  %v2716 = vadd.f32 %v2714, %v2715
  %v2717 = vrot.slane %v2716, 2
  %v2718 = vadd.f32 %v2716, %v2717
  %v2719 = vrot.slane %v2718, 1
  %v2720 = vadd.f32 %v2718, %v2719
  %s2721 = vtos %v2720
  %s2722 = smul.f32 %s2721, 0.2
  %v2723 = vsel %vm2689, %v2685, 0.0
  %2724 = vadd.xlane.f32.xlu0 %v2723
  %v2725 = vpop.xlane.xlu0 %2724
  %v2726 = vrot.slane %v2725, 4
  %v2727 = vadd.f32 %v2725, %v2726
  %v2728 = vrot.slane %v2727, 2
  %v2729 = vadd.f32 %v2727, %v2728
  %v2730 = vrot.slane %v2729, 1
  %v2731 = vadd.f32 %v2729, %v2730
  %s2732 = vtos %v2731
  %s2733 = smul.f32 %s2732, 0.2
  %v2734 = vsel %vm2689, %v2688, 0.0
  %2735 = vadd.xlane.f32.xlu0 %v2734
  %v2736 = vpop.xlane.xlu0 %2735
  %v2737 = vrot.slane %v2736, 4
  %v2738 = vadd.f32 %v2736, %v2737
  %v2739 = vrot.slane %v2738, 2
  %v2740 = vadd.f32 %v2738, %v2739
  %v2741 = vrot.slane %v2740, 1
  %v2742 = vadd.f32 %v2740, %v2741
  %s2743 = vtos %v2742
  %s2744 = smul.f32 %s2743, 0.2
  %s2745 = smax.f32 %s2700, %s2711
  %s2746 = smax.f32 %s2745, %s2722
  %s2747 = smax.f32 %s2746, %s2733
  %s2748 = smax.f32 %s2747, %s2744
  %s2749 = ssub.f32 %s2700, %s2748
  %v2750 = vstv %s2749
  %v2751 = vmul.f32 %v2750, 1.442695
  %v2752 = vpow.pop %v2751
  %s2753 = vtos %v2752
  %s2754 = ssub.f32 %s2711, %s2748
  %v2755 = vstv %s2754
  %v2756 = vmul.f32 %v2755, 1.442695
  %v2757 = vpow.pop %v2756
  %s2758 = vtos %v2757
  %s2759 = ssub.f32 %s2722, %s2748
  %v2760 = vstv %s2759
  %v2761 = vmul.f32 %v2760, 1.442695
  %v2762 = vpow.pop %v2761
  %s2763 = vtos %v2762
  %s2764 = ssub.f32 %s2733, %s2748
  %v2765 = vstv %s2764
  %v2766 = vmul.f32 %v2765, 1.442695
  %v2767 = vpow.pop %v2766
  %s2768 = vtos %v2767
  %s2769 = ssub.f32 %s2744, %s2748
  %v2770 = vstv %s2769
  %v2771 = vmul.f32 %v2770, 1.442695
  %v2772 = vpow.pop %v2771
  %s2773 = vtos %v2772
  %s2774 = sadd.f32 %s2753, %s2758
  %s2775 = sadd.f32 %s2774, %s2763
  %s2776 = sadd.f32 %s2775, %s2768
  %s2777 = sadd.f32 %s2776, %s2773
  %v2778 = vstv %s2777
  %v2779 = vrcp.pop %v2778
  %s2780 = vtos %v2779
  %s2781 = smul.f32 %s2753, %s2780
  %v2782 = vstv %s2781
  %v2783 = vmul.f32 %v2782, %v1826
  %v2784 = vmul.f32 %v2782, %v1827
  %s2785 = smul.f32 %s2758, %s2780
  %v2786 = vstv %s2785
  %v2787 = vmul.f32 %v2786, %v2035
  %v2788 = vmul.f32 %v2786, %v2036
  %v2789 = vadd.f32 %v2783, %v2787
  %v2790 = vadd.f32 %v2784, %v2788
  %s2791 = smul.f32 %s2763, %s2780
  %v2792 = vstv %s2791
  %v2793 = vmul.f32 %v2792, %v2244
  %v2794 = vmul.f32 %v2792, %v2245
  %v2795 = vadd.f32 %v2789, %v2793
  %v2796 = vadd.f32 %v2790, %v2794
  %s2797 = smul.f32 %s2768, %s2780
  %v2798 = vstv %s2797
  %v2799 = vmul.f32 %v2798, %v2453
  %v2800 = vmul.f32 %v2798, %v2454
  %v2801 = vadd.f32 %v2795, %v2799
  %v2802 = vadd.f32 %v2796, %v2800
  %s2803 = smul.f32 %s2773, %s2780
  %v2804 = vstv %s2803
  %v2805 = vmul.f32 %v2804, %v2662
  %v2806 = vmul.f32 %v2804, %v2663
  %v2807 = vadd.f32 %v2801, %v2805
  %v2808 = vadd.f32 %v2802, %v2806
  %2809 = vst [vmem:[%s6] sm:$0xff] %v2807
  %2810 = vst [vmem:[%s6 + $0x8] sm:$0xff] %v2808
  // Predicated region
  $region26: #{conv_lstm_attention_forward.1} parent=0 // pred_check
    _
  $region27: #{conv_lstm_attention_forward.1} parent=0 // pred_check_branch
    %2812 = sbr.rel (0) target = $region29
  $region28: #{conv_lstm_attention_forward.1} parent=0 // pred_region
    _
  $region29: #{conv_lstm_attention_forward.1} parent=0 // pred_fallthru
    _
  // Predicated region
  $region30: #{conv_lstm_attention_forward.1} parent=0 // pred_check
    _
  $region31: #{conv_lstm_attention_forward.1} parent=0 // pred_check_branch
    %2814 = sbr.rel (0) target = $region33
  $region32: #{conv_lstm_attention_forward.1} parent=0 // pred_region
    _
  $region33: #{conv_lstm_attention_forward.1} parent=0 // pred_fallthru
    _

</llo_original>
